<compile_context>
chip_gen: v7x
topology: tpu7x:2x2x1
jax: 0.10.0
libtpu: 0.0.40
codegen_flags: <defaults>
</compile_context>

<pallas_src>
import jax
import jax.numpy as jnp
from jax.experimental import pallas as pl
from jax.experimental.pallas import tpu as pltpu


def _round_up(x, m):
    return ((x + m - 1) // m) * m


# --------------------------- fully fused CTC kernel ---------------------------
def _ctc_fused_kernel(x_ref, wih1_ref, b1_ref, whh1_ref, w2_ref, b2_ref,
                      whead_ref, bhead_ref, o_ref):
    # x_ref:     (T*B, D)   time-major rows (row t*B + b)
    # wih1_ref:  (D, 4H)    layer-1 W_ih^T
    # b1_ref:    (1, 4H)    layer-1 b_ih + b_hh
    # whh1_ref:  (H, 4H)    layer-1 W_hh^T
    # w2_ref:    (2H, 4H)   layer-2 [W_ih^T ; W_hh^T] merged
    # b2_ref:    (1, 4H)    layer-2 b_ih + b_hh
    # whead_ref: (H, Cp)    (fc ∘ cls) combined weight, class dim padded to 128
    # bhead_ref: (1, Cp)    combined bias, padded
    # o_ref:     (T, B, Cp) output (log_softmax over time of padded logits)
    T, B, Cp = o_ref.shape
    H = whh1_ref.shape[0]

    # ---- (1) layer-1 input projection, hoisted out of the serial recurrence:
    #          one batched MXU dot over all T*B rows (off the critical path).
    xp1 = (jnp.dot(x_ref[...], wih1_ref[...],
                   preferred_element_type=jnp.float32)
           + b1_ref[...])                                     # (T*B, 4H)

    # hoist constant weight/bias loads out of the timestep loop
    whh1 = whh1_ref[...]
    w2 = w2_ref[...]
    b2 = b2_ref[...]
    whead = whead_ref[...]
    bhead = bhead_ref[...]

    def act(gates, c_old):
        # PyTorch LSTM gate order: i, f, g, o
        i_g = jax.nn.sigmoid(gates[:, 0 * H:1 * H])
        f_g = jax.nn.sigmoid(gates[:, 1 * H:2 * H])
        g_g = jnp.tanh(gates[:, 2 * H:3 * H])
        o_g = jax.nn.sigmoid(gates[:, 3 * H:4 * H])
        c_new = f_g * c_old + i_g * g_g
        h_new = o_g * jnp.tanh(c_new)
        return h_new, c_new

    # ---- (2) fused 2-layer recurrence; state carried in vregs.  T is static
    #          so the loop fully unrolls (static slices / static stores only).
    zeros = jnp.zeros((B, H), jnp.float32)
    h1, c1, h2, c2 = zeros, zeros, zeros, zeros
    for t in range(T):
        # layer 1: x-projection already folded into xp1
        g1 = xp1[t * B:(t + 1) * B, :] + jnp.dot(
            h1, whh1, preferred_element_type=jnp.float32)
        h1, c1 = act(g1, c1)
        # layer 2: single merged dot against [W_ih2^T ; W_hh2^T]
        hcat = jnp.concatenate([h1, h2], axis=1)              # (B, 2H)
        g2 = jnp.dot(hcat, w2, preferred_element_type=jnp.float32) + b2
        h2, c2 = act(g2, c2)
        # ---- (3) collapsed fc∘cls head per step (independent of the serial
        #          chain, overlaps under unrolling); lane-dense (B, 128) store.
        o_ref[t] = (jnp.dot(h2, whead, preferred_element_type=jnp.float32)
                    + bhead)

    # ---- (4) log_softmax over the TIME axis (torch log_softmax(dim=1) on the
    #          batch_first tensor), applied in place on the output block.
    #          Zero-padded class lanes are harmless: the reduction is over T.
    logits = o_ref[...]                                       # (T, B, Cp)
    m = jnp.max(logits, axis=0, keepdims=True)
    s = logits - m
    lse = jnp.log(jnp.sum(jnp.exp(s), axis=0, keepdims=True))
    o_ref[...] = (s - lse).astype(o_ref.dtype)


# ------------------------------- CTC forward ----------------------------------
def ctc_forward(params, x_btd):
    assert len(params["lstm"]) == 2, "fused kernel implements num_layers=2"
    x = x_btd.astype(jnp.float32)
    B, T, D = x.shape
    lp1, lp2 = params["lstm"]
    H = lp1["w_hh"].shape[1]
    C = params["cls_w"].shape[0]
    c_pad = _round_up(C, 128)

    # time-major, flattened rows (row index = t*B + b)
    x_flat = jnp.transpose(x, (1, 0, 2)).reshape(T * B, D)

    # one-time weight prep (plain XLA, tiny)
    wih1_t = jnp.transpose(lp1["w_ih"])                                  # (D, 4H)
    b1 = (lp1["b_ih"] + lp1["b_hh"]).reshape(1, 4 * H)
    whh1_t = jnp.transpose(lp1["w_hh"])                                  # (H, 4H)
    w2_comb = jnp.concatenate([jnp.transpose(lp2["w_ih"]),
                               jnp.transpose(lp2["w_hh"])], axis=0)      # (2H, 4H)
    b2 = (lp2["b_ih"] + lp2["b_hh"]).reshape(1, 4 * H)
    w_head = jnp.transpose(params["fc_w"]) @ jnp.transpose(params["cls_w"])   # (H, C)
    b_head = params["fc_b"] @ jnp.transpose(params["cls_w"]) + params["cls_b"]
    w_head = jnp.pad(w_head, ((0, 0), (0, c_pad - C)))                   # (H, 128)
    b_head = jnp.pad(b_head, (0, c_pad - C)).reshape(1, c_pad)           # (1, 128)

    out = pl.pallas_call(
        _ctc_fused_kernel,
        out_shape=jax.ShapeDtypeStruct((T, B, c_pad), jnp.float32),
        grid=(1,),
        in_specs=[
            pl.BlockSpec((T * B, D), lambda i: (0, 0)),
            pl.BlockSpec((D, 4 * H), lambda i: (0, 0)),
            pl.BlockSpec((1, 4 * H), lambda i: (0, 0)),
            pl.BlockSpec((H, 4 * H), lambda i: (0, 0)),
            pl.BlockSpec((2 * H, 4 * H), lambda i: (0, 0)),
            pl.BlockSpec((1, 4 * H), lambda i: (0, 0)),
            pl.BlockSpec((H, c_pad), lambda i: (0, 0)),
            pl.BlockSpec((1, c_pad), lambda i: (0, 0)),
        ],
        out_specs=pl.BlockSpec((T, B, c_pad), lambda i: (0, 0, 0)),
        compiler_params=pltpu.CompilerParams(
            dimension_semantics=("arbitrary",),     # serial recurrence inside
            vmem_limit_bytes=32 * 1024 * 1024),
    )(x_flat, wih1_t, b1, whh1_t, w2_comb, b2, w_head, b_head)
    return out[:, :, :C]


# -------------------------- deterministic params -------------------------------
def init_params(key, d_in, d_out, n_class, n_layers=2):
    params = {"lstm": []}
    bound = 1.0 / float(jnp.sqrt(d_out))
    for layer in range(n_layers):
        in_dim = d_in if layer == 0 else d_out
        key, k1, k2, k3, k4 = jax.random.split(key, 5)
        params["lstm"].append({
            "w_ih": jax.random.uniform(k1, (4 * d_out, in_dim), jnp.float32, -bound, bound),
            "w_hh": jax.random.uniform(k2, (4 * d_out, d_out), jnp.float32, -bound, bound),
            "b_ih": jax.random.uniform(k3, (4 * d_out,), jnp.float32, -bound, bound),
            "b_hh": jax.random.uniform(k4, (4 * d_out,), jnp.float32, -bound, bound),
        })
    key, k1, k2, k3, k4 = jax.random.split(key, 5)
    params["fc_w"] = jax.random.uniform(k1, (d_out, d_out), jnp.float32, -bound, bound)
    params["fc_b"] = jax.random.uniform(k2, (d_out,), jnp.float32, -bound, bound)
    params["cls_w"] = jax.random.uniform(k3, (n_class, d_out), jnp.float32, -bound, bound)
    params["cls_b"] = jax.random.uniform(k4, (n_class,), jnp.float32, -bound, bound)
    return params


# --------------------------- pure-JAX reference --------------------------------
def reference_forward(params, x_btd):
    x = x_btd.astype(jnp.float32)
    B = x.shape[0]
    h_seq = jnp.transpose(x, (1, 0, 2))              # (T, B, D)
    for lp in params["lstm"]:
        H = lp["w_hh"].shape[1]

        def step(carry, xt, lp=lp):
            h, c = carry
            gates = xt @ lp["w_ih"].T + lp["b_ih"] + h @ lp["w_hh"].T + lp["b_hh"]
            i, f, g, o = jnp.split(gates, 4, axis=-1)
            c = jax.nn.sigmoid(f) * c + jax.nn.sigmoid(i) * jnp.tanh(g)
            h = jax.nn.sigmoid(o) * jnp.tanh(c)
            return (h, c), h

        init = (jnp.zeros((B, H), jnp.float32), jnp.zeros((B, H), jnp.float32))
        _, h_seq = jax.lax.scan(step, init, h_seq)
    z = h_seq @ params["fc_w"].T + params["fc_b"]
    logits = z @ params["cls_w"].T + params["cls_b"]   # (T, B, C)
    return jax.nn.log_softmax(logits, axis=0)          # softmax over time


if __name__ == "__main__":
    B, T = 2, 8
    D_IN, D_OUT, N_CLASS = 16, 32, 10

    key = jax.random.PRNGKey(0)
    key, kx = jax.random.split(key)
    params = init_params(key, D_IN, D_OUT, N_CLASS, n_layers=2)
    x = jax.random.normal(kx, (B, T, D_IN), jnp.float32)   # batch_first input

    fwd = jax.jit(ctc_forward)
    out = jax.block_until_ready(fwd(params, x))

    ref = jax.block_until_ready(reference_forward(params, x))
    assert out.shape == (T, B, N_CLASS)
    err = float(jnp.max(jnp.abs(out - ref)))
    assert jnp.allclose(out, ref, rtol=1e-4, atol=3e-4), err

    print("KERNEL_OK")
</pallas_src>

<mosaic_0001>
module attributes {stable_mosaic.version = 11 : i64} {
  func.func @_ctc_fused_kernel(%arg0: i32, %arg1: memref<16x16xf32, #tpu.memory_space<vmem>>, %arg2: memref<16x128xf32, #tpu.memory_space<vmem>>, %arg3: memref<1x128xf32, #tpu.memory_space<vmem>>, %arg4: memref<32x128xf32, #tpu.memory_space<vmem>>, %arg5: memref<64x128xf32, #tpu.memory_space<vmem>>, %arg6: memref<1x128xf32, #tpu.memory_space<vmem>>, %arg7: memref<32x128xf32, #tpu.memory_space<vmem>>, %arg8: memref<1x128xf32, #tpu.memory_space<vmem>>, %arg9: memref<8x2x128xf32, #tpu.memory_space<vmem>>) attributes {dimension_semantics = [#tpu.dimension_semantics<arbitrary>], iteration_bounds = array<i64: 1>, scalar_prefetch = 0 : i64, scratch_operands = 0 : i64, tpu.core_type = #tpu.core_type<tc>, window_params = [{pipeline_mode = #tpu.pipeline_mode<synchronous>, transform_indices = @transform_0, window_bounds = array<i64: 16, 16>}, {pipeline_mode = #tpu.pipeline_mode<synchronous>, transform_indices = @transform_1, window_bounds = array<i64: 16, 128>}, {pipeline_mode = #tpu.pipeline_mode<synchronous>, transform_indices = @transform_2, window_bounds = array<i64: 1, 128>}, {pipeline_mode = #tpu.pipeline_mode<synchronous>, transform_indices = @transform_3, window_bounds = array<i64: 32, 128>}, {pipeline_mode = #tpu.pipeline_mode<synchronous>, transform_indices = @transform_4, window_bounds = array<i64: 64, 128>}, {pipeline_mode = #tpu.pipeline_mode<synchronous>, transform_indices = @transform_5, window_bounds = array<i64: 1, 128>}, {pipeline_mode = #tpu.pipeline_mode<synchronous>, transform_indices = @transform_6, window_bounds = array<i64: 32, 128>}, {pipeline_mode = #tpu.pipeline_mode<synchronous>, transform_indices = @transform_7, window_bounds = array<i64: 1, 128>}, {pipeline_mode = #tpu.pipeline_mode<synchronous>, transform_indices = @transform_8, window_bounds = array<i64: 8, 2, 128>}]} {
    %c0 = arith.constant 0 : index
    %c0_0 = arith.constant 0 : index
    %0 = vector.load %arg1[%c0, %c0_0] : memref<16x16xf32, #tpu.memory_space<vmem>>, vector<16x16xf32>
    %c0_1 = arith.constant 0 : index
    %c0_2 = arith.constant 0 : index
    %1 = vector.load %arg2[%c0_1, %c0_2] : memref<16x128xf32, #tpu.memory_space<vmem>>, vector<16x128xf32>
    %cst = arith.constant dense<0.000000e+00> : vector<16x128xf32>
    %2 = tpu.matmul %0, %1, %cst {dimension_numbers = #tpu.dot_dimension_numbers<[1], [0], [0], [1], [0, 0, 1, 1], [], []>} : vector<16x16xf32>, vector<16x128xf32>, vector<16x128xf32> -> vector<16x128xf32>
    %c0_3 = arith.constant 0 : index
    %c0_4 = arith.constant 0 : index
    %3 = vector.load %arg3[%c0_3, %c0_4] : memref<1x128xf32, #tpu.memory_space<vmem>>, vector<1x128xf32>
    %4 = vector.broadcast %3 : vector<1x128xf32> to vector<16x128xf32>
    %5 = arith.addf %2, %4 : vector<16x128xf32>
    %c0_5 = arith.constant 0 : index
    %c0_6 = arith.constant 0 : index
    %6 = vector.load %arg4[%c0_5, %c0_6] : memref<32x128xf32, #tpu.memory_space<vmem>>, vector<32x128xf32>
    %c0_7 = arith.constant 0 : index
    %c0_8 = arith.constant 0 : index
    %7 = vector.load %arg5[%c0_7, %c0_8] : memref<64x128xf32, #tpu.memory_space<vmem>>, vector<64x128xf32>
    %c0_9 = arith.constant 0 : index
    %c0_10 = arith.constant 0 : index
    %8 = vector.load %arg6[%c0_9, %c0_10] : memref<1x128xf32, #tpu.memory_space<vmem>>, vector<1x128xf32>
    %c0_11 = arith.constant 0 : index
    %c0_12 = arith.constant 0 : index
    %9 = vector.load %arg7[%c0_11, %c0_12] : memref<32x128xf32, #tpu.memory_space<vmem>>, vector<32x128xf32>
    %c0_13 = arith.constant 0 : index
    %c0_14 = arith.constant 0 : index
    %10 = vector.load %arg8[%c0_13, %c0_14] : memref<1x128xf32, #tpu.memory_space<vmem>>, vector<1x128xf32>
    %cst_15 = arith.constant 0.000000e+00 : f32
    %11 = vector.broadcast %cst_15 : f32 to vector<2x32xf32>
    %12 = vector.extract_strided_slice %5 {offsets = [0, 0], sizes = [2, 128], strides = [1, 1]} : vector<16x128xf32> to vector<2x128xf32>
    %cst_16 = arith.constant dense<0.000000e+00> : vector<2x128xf32>
    %13 = tpu.matmul %11, %6, %cst_16 {dimension_numbers = #tpu.dot_dimension_numbers<[1], [0], [0], [1], [0, 0, 1, 1], [], []>} : vector<2x32xf32>, vector<32x128xf32>, vector<2x128xf32> -> vector<2x128xf32>
    %14 = arith.addf %12, %13 : vector<2x128xf32>
    %15 = vector.extract_strided_slice %14 {offsets = [0, 0], sizes = [2, 32], strides = [1, 1]} : vector<2x128xf32> to vector<2x32xf32>
    %16 = arith.negf %15 : vector<2x32xf32>
    %17 = math.exp %16 : vector<2x32xf32>
    %cst_17 = arith.constant 1.000000e+00 : f32
    %18 = vector.broadcast %cst_17 : f32 to vector<2x32xf32>
    %19 = arith.addf %18, %17 : vector<2x32xf32>
    %20 = arith.divf %18, %19 : vector<2x32xf32>
    %21 = vector.extract_strided_slice %14 {offsets = [0, 32], sizes = [2, 32], strides = [1, 1]} : vector<2x128xf32> to vector<2x32xf32>
    %22 = arith.negf %21 : vector<2x32xf32>
    %23 = math.exp %22 : vector<2x32xf32>
    %cst_18 = arith.constant 1.000000e+00 : f32
    %24 = vector.broadcast %cst_18 : f32 to vector<2x32xf32>
    %25 = arith.addf %24, %23 : vector<2x32xf32>
    %26 = arith.divf %24, %25 : vector<2x32xf32>
    %27 = vector.extract_strided_slice %14 {offsets = [0, 64], sizes = [2, 32], strides = [1, 1]} : vector<2x128xf32> to vector<2x32xf32>
    %28 = math.tanh %27 : vector<2x32xf32>
    %29 = vector.extract_strided_slice %14 {offsets = [0, 96], sizes = [2, 32], strides = [1, 1]} : vector<2x128xf32> to vector<2x32xf32>
    %30 = arith.negf %29 : vector<2x32xf32>
    %31 = math.exp %30 : vector<2x32xf32>
    %cst_19 = arith.constant 1.000000e+00 : f32
    %32 = vector.broadcast %cst_19 : f32 to vector<2x32xf32>
    %33 = arith.addf %32, %31 : vector<2x32xf32>
    %34 = arith.divf %32, %33 : vector<2x32xf32>
    %35 = arith.mulf %26, %11 : vector<2x32xf32>
    %36 = arith.mulf %20, %28 : vector<2x32xf32>
    %37 = arith.addf %35, %36 : vector<2x32xf32>
    %38 = math.tanh %37 : vector<2x32xf32>
    %39 = arith.mulf %34, %38 : vector<2x32xf32>
    %40 = tpu.concatenate %39, %11 in 1 : vector<2x32xf32>, vector<2x32xf32> -> vector<2x64xf32>
    %cst_20 = arith.constant dense<0.000000e+00> : vector<2x128xf32>
    %41 = tpu.matmul %40, %7, %cst_20 {dimension_numbers = #tpu.dot_dimension_numbers<[1], [0], [0], [1], [0, 0, 1, 1], [], []>} : vector<2x64xf32>, vector<64x128xf32>, vector<2x128xf32> -> vector<2x128xf32>
    %42 = vector.broadcast %8 : vector<1x128xf32> to vector<2x128xf32>
    %43 = arith.addf %41, %42 : vector<2x128xf32>
    %44 = vector.extract_strided_slice %43 {offsets = [0, 0], sizes = [2, 32], strides = [1, 1]} : vector<2x128xf32> to vector<2x32xf32>
    %45 = arith.negf %44 : vector<2x32xf32>
    %46 = math.exp %45 : vector<2x32xf32>
    %cst_21 = arith.constant 1.000000e+00 : f32
    %47 = vector.broadcast %cst_21 : f32 to vector<2x32xf32>
    %48 = arith.addf %47, %46 : vector<2x32xf32>
    %49 = arith.divf %47, %48 : vector<2x32xf32>
    %50 = vector.extract_strided_slice %43 {offsets = [0, 32], sizes = [2, 32], strides = [1, 1]} : vector<2x128xf32> to vector<2x32xf32>
    %51 = arith.negf %50 : vector<2x32xf32>
    %52 = math.exp %51 : vector<2x32xf32>
    %cst_22 = arith.constant 1.000000e+00 : f32
    %53 = vector.broadcast %cst_22 : f32 to vector<2x32xf32>
    %54 = arith.addf %53, %52 : vector<2x32xf32>
    %55 = arith.divf %53, %54 : vector<2x32xf32>
    %56 = vector.extract_strided_slice %43 {offsets = [0, 64], sizes = [2, 32], strides = [1, 1]} : vector<2x128xf32> to vector<2x32xf32>
    %57 = math.tanh %56 : vector<2x32xf32>
    %58 = vector.extract_strided_slice %43 {offsets = [0, 96], sizes = [2, 32], strides = [1, 1]} : vector<2x128xf32> to vector<2x32xf32>
    %59 = arith.negf %58 : vector<2x32xf32>
    %60 = math.exp %59 : vector<2x32xf32>
    %cst_23 = arith.constant 1.000000e+00 : f32
    %61 = vector.broadcast %cst_23 : f32 to vector<2x32xf32>
    %62 = arith.addf %61, %60 : vector<2x32xf32>
    %63 = arith.divf %61, %62 : vector<2x32xf32>
    %64 = arith.mulf %55, %11 : vector<2x32xf32>
    %65 = arith.mulf %49, %57 : vector<2x32xf32>
    %66 = arith.addf %64, %65 : vector<2x32xf32>
    %67 = math.tanh %66 : vector<2x32xf32>
    %68 = arith.mulf %63, %67 : vector<2x32xf32>
    %cst_24 = arith.constant dense<0.000000e+00> : vector<2x128xf32>
    %69 = tpu.matmul %68, %9, %cst_24 {dimension_numbers = #tpu.dot_dimension_numbers<[1], [0], [0], [1], [0, 0, 1, 1], [], []>} : vector<2x32xf32>, vector<32x128xf32>, vector<2x128xf32> -> vector<2x128xf32>
    %70 = vector.broadcast %10 : vector<1x128xf32> to vector<2x128xf32>
    %71 = arith.addf %69, %70 : vector<2x128xf32>
    %c0_25 = arith.constant 0 : index
    %c0_26 = arith.constant 0 : index
    %c0_27 = arith.constant 0 : index
    %72 = vector.load %arg9[%c0_25, %c0_26, %c0_27] : memref<8x2x128xf32, #tpu.memory_space<vmem>>, vector<1x2x128xf32>
    %73 = vector.shape_cast %72 : vector<1x2x128xf32> to vector<2x128xf32>
    %74 = vector.shape_cast %71 : vector<2x128xf32> to vector<1x2x128xf32>
    tpu.vector_store %arg9[%c0_25, %c0_26, %c0_27], %74 {strides = array<i32>} : memref<8x2x128xf32, #tpu.memory_space<vmem>>, vector<1x2x128xf32>,
    %75 = vector.extract_strided_slice %5 {offsets = [2, 0], sizes = [2, 128], strides = [1, 1]} : vector<16x128xf32> to vector<2x128xf32>
    %cst_28 = arith.constant dense<0.000000e+00> : vector<2x128xf32>
    %76 = tpu.matmul %39, %6, %cst_28 {dimension_numbers = #tpu.dot_dimension_numbers<[1], [0], [0], [1], [0, 0, 1, 1], [], []>} : vector<2x32xf32>, vector<32x128xf32>, vector<2x128xf32> -> vector<2x128xf32>
    %77 = arith.addf %75, %76 : vector<2x128xf32>
    %78 = vector.extract_strided_slice %77 {offsets = [0, 0], sizes = [2, 32], strides = [1, 1]} : vector<2x128xf32> to vector<2x32xf32>
    %79 = arith.negf %78 : vector<2x32xf32>
    %80 = math.exp %79 : vector<2x32xf32>
    %cst_29 = arith.constant 1.000000e+00 : f32
    %81 = vector.broadcast %cst_29 : f32 to vector<2x32xf32>
    %82 = arith.addf %81, %80 : vector<2x32xf32>
    %83 = arith.divf %81, %82 : vector<2x32xf32>
    %84 = vector.extract_strided_slice %77 {offsets = [0, 32], sizes = [2, 32], strides = [1, 1]} : vector<2x128xf32> to vector<2x32xf32>
    %85 = arith.negf %84 : vector<2x32xf32>
    %86 = math.exp %85 : vector<2x32xf32>
    %cst_30 = arith.constant 1.000000e+00 : f32
    %87 = vector.broadcast %cst_30 : f32 to vector<2x32xf32>
    %88 = arith.addf %87, %86 : vector<2x32xf32>
    %89 = arith.divf %87, %88 : vector<2x32xf32>
    %90 = vector.extract_strided_slice %77 {offsets = [0, 64], sizes = [2, 32], strides = [1, 1]} : vector<2x128xf32> to vector<2x32xf32>
    %91 = math.tanh %90 : vector<2x32xf32>
    %92 = vector.extract_strided_slice %77 {offsets = [0, 96], sizes = [2, 32], strides = [1, 1]} : vector<2x128xf32> to vector<2x32xf32>
    %93 = arith.negf %92 : vector<2x32xf32>
    %94 = math.exp %93 : vector<2x32xf32>
    %cst_31 = arith.constant 1.000000e+00 : f32
    %95 = vector.broadcast %cst_31 : f32 to vector<2x32xf32>
    %96 = arith.addf %95, %94 : vector<2x32xf32>
    %97 = arith.divf %95, %96 : vector<2x32xf32>
    %98 = arith.mulf %89, %37 : vector<2x32xf32>
    %99 = arith.mulf %83, %91 : vector<2x32xf32>
    %100 = arith.addf %98, %99 : vector<2x32xf32>
    %101 = math.tanh %100 : vector<2x32xf32>
    %102 = arith.mulf %97, %101 : vector<2x32xf32>
    %103 = tpu.concatenate %102, %68 in 1 : vector<2x32xf32>, vector<2x32xf32> -> vector<2x64xf32>
    %cst_32 = arith.constant dense<0.000000e+00> : vector<2x128xf32>
    %104 = tpu.matmul %103, %7, %cst_32 {dimension_numbers = #tpu.dot_dimension_numbers<[1], [0], [0], [1], [0, 0, 1, 1], [], []>} : vector<2x64xf32>, vector<64x128xf32>, vector<2x128xf32> -> vector<2x128xf32>
    %105 = vector.broadcast %8 : vector<1x128xf32> to vector<2x128xf32>
    %106 = arith.addf %104, %105 : vector<2x128xf32>
    %107 = vector.extract_strided_slice %106 {offsets = [0, 0], sizes = [2, 32], strides = [1, 1]} : vector<2x128xf32> to vector<2x32xf32>
    %108 = arith.negf %107 : vector<2x32xf32>
    %109 = math.exp %108 : vector<2x32xf32>
    %cst_33 = arith.constant 1.000000e+00 : f32
    %110 = vector.broadcast %cst_33 : f32 to vector<2x32xf32>
    %111 = arith.addf %110, %109 : vector<2x32xf32>
    %112 = arith.divf %110, %111 : vector<2x32xf32>
    %113 = vector.extract_strided_slice %106 {offsets = [0, 32], sizes = [2, 32], strides = [1, 1]} : vector<2x128xf32> to vector<2x32xf32>
    %114 = arith.negf %113 : vector<2x32xf32>
    %115 = math.exp %114 : vector<2x32xf32>
    %cst_34 = arith.constant 1.000000e+00 : f32
    %116 = vector.broadcast %cst_34 : f32 to vector<2x32xf32>
    %117 = arith.addf %116, %115 : vector<2x32xf32>
    %118 = arith.divf %116, %117 : vector<2x32xf32>
    %119 = vector.extract_strided_slice %106 {offsets = [0, 64], sizes = [2, 32], strides = [1, 1]} : vector<2x128xf32> to vector<2x32xf32>
    %120 = math.tanh %119 : vector<2x32xf32>
    %121 = vector.extract_strided_slice %106 {offsets = [0, 96], sizes = [2, 32], strides = [1, 1]} : vector<2x128xf32> to vector<2x32xf32>
    %122 = arith.negf %121 : vector<2x32xf32>
    %123 = math.exp %122 : vector<2x32xf32>
    %cst_35 = arith.constant 1.000000e+00 : f32
    %124 = vector.broadcast %cst_35 : f32 to vector<2x32xf32>
    %125 = arith.addf %124, %123 : vector<2x32xf32>
    %126 = arith.divf %124, %125 : vector<2x32xf32>
    %127 = arith.mulf %118, %66 : vector<2x32xf32>
    %128 = arith.mulf %112, %120 : vector<2x32xf32>
    %129 = arith.addf %127, %128 : vector<2x32xf32>
    %130 = math.tanh %129 : vector<2x32xf32>
    %131 = arith.mulf %126, %130 : vector<2x32xf32>
    %cst_36 = arith.constant dense<0.000000e+00> : vector<2x128xf32>
    %132 = tpu.matmul %131, %9, %cst_36 {dimension_numbers = #tpu.dot_dimension_numbers<[1], [0], [0], [1], [0, 0, 1, 1], [], []>} : vector<2x32xf32>, vector<32x128xf32>, vector<2x128xf32> -> vector<2x128xf32>
    %133 = vector.broadcast %10 : vector<1x128xf32> to vector<2x128xf32>
    %134 = arith.addf %132, %133 : vector<2x128xf32>
    %c1 = arith.constant 1 : index
    %c0_37 = arith.constant 0 : index
    %c0_38 = arith.constant 0 : index
    %135 = vector.load %arg9[%c1, %c0_37, %c0_38] : memref<8x2x128xf32, #tpu.memory_space<vmem>>, vector<1x2x128xf32>
    %136 = vector.shape_cast %135 : vector<1x2x128xf32> to vector<2x128xf32>
    %137 = vector.shape_cast %134 : vector<2x128xf32> to vector<1x2x128xf32>
    tpu.vector_store %arg9[%c1, %c0_37, %c0_38], %137 {strides = array<i32>} : memref<8x2x128xf32, #tpu.memory_space<vmem>>, vector<1x2x128xf32>,
    %138 = vector.extract_strided_slice %5 {offsets = [4, 0], sizes = [2, 128], strides = [1, 1]} : vector<16x128xf32> to vector<2x128xf32>
    %cst_39 = arith.constant dense<0.000000e+00> : vector<2x128xf32>
    %139 = tpu.matmul %102, %6, %cst_39 {dimension_numbers = #tpu.dot_dimension_numbers<[1], [0], [0], [1], [0, 0, 1, 1], [], []>} : vector<2x32xf32>, vector<32x128xf32>, vector<2x128xf32> -> vector<2x128xf32>
    %140 = arith.addf %138, %139 : vector<2x128xf32>
    %141 = vector.extract_strided_slice %140 {offsets = [0, 0], sizes = [2, 32], strides = [1, 1]} : vector<2x128xf32> to vector<2x32xf32>
    %142 = arith.negf %141 : vector<2x32xf32>
    %143 = math.exp %142 : vector<2x32xf32>
    %cst_40 = arith.constant 1.000000e+00 : f32
    %144 = vector.broadcast %cst_40 : f32 to vector<2x32xf32>
    %145 = arith.addf %144, %143 : vector<2x32xf32>
    %146 = arith.divf %144, %145 : vector<2x32xf32>
    %147 = vector.extract_strided_slice %140 {offsets = [0, 32], sizes = [2, 32], strides = [1, 1]} : vector<2x128xf32> to vector<2x32xf32>
    %148 = arith.negf %147 : vector<2x32xf32>
    %149 = math.exp %148 : vector<2x32xf32>
    %cst_41 = arith.constant 1.000000e+00 : f32
    %150 = vector.broadcast %cst_41 : f32 to vector<2x32xf32>
    %151 = arith.addf %150, %149 : vector<2x32xf32>
    %152 = arith.divf %150, %151 : vector<2x32xf32>
    %153 = vector.extract_strided_slice %140 {offsets = [0, 64], sizes = [2, 32], strides = [1, 1]} : vector<2x128xf32> to vector<2x32xf32>
    %154 = math.tanh %153 : vector<2x32xf32>
    %155 = vector.extract_strided_slice %140 {offsets = [0, 96], sizes = [2, 32], strides = [1, 1]} : vector<2x128xf32> to vector<2x32xf32>
    %156 = arith.negf %155 : vector<2x32xf32>
    %157 = math.exp %156 : vector<2x32xf32>
    %cst_42 = arith.constant 1.000000e+00 : f32
    %158 = vector.broadcast %cst_42 : f32 to vector<2x32xf32>
    %159 = arith.addf %158, %157 : vector<2x32xf32>
    %160 = arith.divf %158, %159 : vector<2x32xf32>
    %161 = arith.mulf %152, %100 : vector<2x32xf32>
    %162 = arith.mulf %146, %154 : vector<2x32xf32>
    %163 = arith.addf %161, %162 : vector<2x32xf32>
    %164 = math.tanh %163 : vector<2x32xf32>
    %165 = arith.mulf %160, %164 : vector<2x32xf32>
    %166 = tpu.concatenate %165, %131 in 1 : vector<2x32xf32>, vector<2x32xf32> -> vector<2x64xf32>
    %cst_43 = arith.constant dense<0.000000e+00> : vector<2x128xf32>
    %167 = tpu.matmul %166, %7, %cst_43 {dimension_numbers = #tpu.dot_dimension_numbers<[1], [0], [0], [1], [0, 0, 1, 1], [], []>} : vector<2x64xf32>, vector<64x128xf32>, vector<2x128xf32> -> vector<2x128xf32>
    %168 = vector.broadcast %8 : vector<1x128xf32> to vector<2x128xf32>
    %169 = arith.addf %167, %168 : vector<2x128xf32>
    %170 = vector.extract_strided_slice %169 {offsets = [0, 0], sizes = [2, 32], strides = [1, 1]} : vector<2x128xf32> to vector<2x32xf32>
    %171 = arith.negf %170 : vector<2x32xf32>
    %172 = math.exp %171 : vector<2x32xf32>
    %cst_44 = arith.constant 1.000000e+00 : f32
    %173 = vector.broadcast %cst_44 : f32 to vector<2x32xf32>
    %174 = arith.addf %173, %172 : vector<2x32xf32>
    %175 = arith.divf %173, %174 : vector<2x32xf32>
    %176 = vector.extract_strided_slice %169 {offsets = [0, 32], sizes = [2, 32], strides = [1, 1]} : vector<2x128xf32> to vector<2x32xf32>
    %177 = arith.negf %176 : vector<2x32xf32>
    %178 = math.exp %177 : vector<2x32xf32>
    %cst_45 = arith.constant 1.000000e+00 : f32
    %179 = vector.broadcast %cst_45 : f32 to vector<2x32xf32>
    %180 = arith.addf %179, %178 : vector<2x32xf32>
    %181 = arith.divf %179, %180 : vector<2x32xf32>
    %182 = vector.extract_strided_slice %169 {offsets = [0, 64], sizes = [2, 32], strides = [1, 1]} : vector<2x128xf32> to vector<2x32xf32>
    %183 = math.tanh %182 : vector<2x32xf32>
    %184 = vector.extract_strided_slice %169 {offsets = [0, 96], sizes = [2, 32], strides = [1, 1]} : vector<2x128xf32> to vector<2x32xf32>
    %185 = arith.negf %184 : vector<2x32xf32>
    %186 = math.exp %185 : vector<2x32xf32>
    %cst_46 = arith.constant 1.000000e+00 : f32
    %187 = vector.broadcast %cst_46 : f32 to vector<2x32xf32>
    %188 = arith.addf %187, %186 : vector<2x32xf32>
    %189 = arith.divf %187, %188 : vector<2x32xf32>
    %190 = arith.mulf %181, %129 : vector<2x32xf32>
    %191 = arith.mulf %175, %183 : vector<2x32xf32>
    %192 = arith.addf %190, %191 : vector<2x32xf32>
    %193 = math.tanh %192 : vector<2x32xf32>
    %194 = arith.mulf %189, %193 : vector<2x32xf32>
    %cst_47 = arith.constant dense<0.000000e+00> : vector<2x128xf32>
    %195 = tpu.matmul %194, %9, %cst_47 {dimension_numbers = #tpu.dot_dimension_numbers<[1], [0], [0], [1], [0, 0, 1, 1], [], []>} : vector<2x32xf32>, vector<32x128xf32>, vector<2x128xf32> -> vector<2x128xf32>
    %196 = vector.broadcast %10 : vector<1x128xf32> to vector<2x128xf32>
    %197 = arith.addf %195, %196 : vector<2x128xf32>
    %c2 = arith.constant 2 : index
    %c0_48 = arith.constant 0 : index
    %c0_49 = arith.constant 0 : index
    %198 = vector.load %arg9[%c2, %c0_48, %c0_49] : memref<8x2x128xf32, #tpu.memory_space<vmem>>, vector<1x2x128xf32>
    %199 = vector.shape_cast %198 : vector<1x2x128xf32> to vector<2x128xf32>
    %200 = vector.shape_cast %197 : vector<2x128xf32> to vector<1x2x128xf32>
    tpu.vector_store %arg9[%c2, %c0_48, %c0_49], %200 {strides = array<i32>} : memref<8x2x128xf32, #tpu.memory_space<vmem>>, vector<1x2x128xf32>,
    %201 = vector.extract_strided_slice %5 {offsets = [6, 0], sizes = [2, 128], strides = [1, 1]} : vector<16x128xf32> to vector<2x128xf32>
    %cst_50 = arith.constant dense<0.000000e+00> : vector<2x128xf32>
    %202 = tpu.matmul %165, %6, %cst_50 {dimension_numbers = #tpu.dot_dimension_numbers<[1], [0], [0], [1], [0, 0, 1, 1], [], []>} : vector<2x32xf32>, vector<32x128xf32>, vector<2x128xf32> -> vector<2x128xf32>
    %203 = arith.addf %201, %202 : vector<2x128xf32>
    %204 = vector.extract_strided_slice %203 {offsets = [0, 0], sizes = [2, 32], strides = [1, 1]} : vector<2x128xf32> to vector<2x32xf32>
    %205 = arith.negf %204 : vector<2x32xf32>
    %206 = math.exp %205 : vector<2x32xf32>
    %cst_51 = arith.constant 1.000000e+00 : f32
    %207 = vector.broadcast %cst_51 : f32 to vector<2x32xf32>
    %208 = arith.addf %207, %206 : vector<2x32xf32>
    %209 = arith.divf %207, %208 : vector<2x32xf32>
    %210 = vector.extract_strided_slice %203 {offsets = [0, 32], sizes = [2, 32], strides = [1, 1]} : vector<2x128xf32> to vector<2x32xf32>
    %211 = arith.negf %210 : vector<2x32xf32>
    %212 = math.exp %211 : vector<2x32xf32>
    %cst_52 = arith.constant 1.000000e+00 : f32
    %213 = vector.broadcast %cst_52 : f32 to vector<2x32xf32>
    %214 = arith.addf %213, %212 : vector<2x32xf32>
    %215 = arith.divf %213, %214 : vector<2x32xf32>
    %216 = vector.extract_strided_slice %203 {offsets = [0, 64], sizes = [2, 32], strides = [1, 1]} : vector<2x128xf32> to vector<2x32xf32>
    %217 = math.tanh %216 : vector<2x32xf32>
    %218 = vector.extract_strided_slice %203 {offsets = [0, 96], sizes = [2, 32], strides = [1, 1]} : vector<2x128xf32> to vector<2x32xf32>
    %219 = arith.negf %218 : vector<2x32xf32>
    %220 = math.exp %219 : vector<2x32xf32>
    %cst_53 = arith.constant 1.000000e+00 : f32
    %221 = vector.broadcast %cst_53 : f32 to vector<2x32xf32>
    %222 = arith.addf %221, %220 : vector<2x32xf32>
    %223 = arith.divf %221, %222 : vector<2x32xf32>
    %224 = arith.mulf %215, %163 : vector<2x32xf32>
    %225 = arith.mulf %209, %217 : vector<2x32xf32>
    %226 = arith.addf %224, %225 : vector<2x32xf32>
    %227 = math.tanh %226 : vector<2x32xf32>
    %228 = arith.mulf %223, %227 : vector<2x32xf32>
    %229 = tpu.concatenate %228, %194 in 1 : vector<2x32xf32>, vector<2x32xf32> -> vector<2x64xf32>
    %cst_54 = arith.constant dense<0.000000e+00> : vector<2x128xf32>
    %230 = tpu.matmul %229, %7, %cst_54 {dimension_numbers = #tpu.dot_dimension_numbers<[1], [0], [0], [1], [0, 0, 1, 1], [], []>} : vector<2x64xf32>, vector<64x128xf32>, vector<2x128xf32> -> vector<2x128xf32>
    %231 = vector.broadcast %8 : vector<1x128xf32> to vector<2x128xf32>
    %232 = arith.addf %230, %231 : vector<2x128xf32>
    %233 = vector.extract_strided_slice %232 {offsets = [0, 0], sizes = [2, 32], strides = [1, 1]} : vector<2x128xf32> to vector<2x32xf32>
    %234 = arith.negf %233 : vector<2x32xf32>
    %235 = math.exp %234 : vector<2x32xf32>
    %cst_55 = arith.constant 1.000000e+00 : f32
    %236 = vector.broadcast %cst_55 : f32 to vector<2x32xf32>
    %237 = arith.addf %236, %235 : vector<2x32xf32>
    %238 = arith.divf %236, %237 : vector<2x32xf32>
    %239 = vector.extract_strided_slice %232 {offsets = [0, 32], sizes = [2, 32], strides = [1, 1]} : vector<2x128xf32> to vector<2x32xf32>
    %240 = arith.negf %239 : vector<2x32xf32>
    %241 = math.exp %240 : vector<2x32xf32>
    %cst_56 = arith.constant 1.000000e+00 : f32
    %242 = vector.broadcast %cst_56 : f32 to vector<2x32xf32>
    %243 = arith.addf %242, %241 : vector<2x32xf32>
    %244 = arith.divf %242, %243 : vector<2x32xf32>
    %245 = vector.extract_strided_slice %232 {offsets = [0, 64], sizes = [2, 32], strides = [1, 1]} : vector<2x128xf32> to vector<2x32xf32>
    %246 = math.tanh %245 : vector<2x32xf32>
    %247 = vector.extract_strided_slice %232 {offsets = [0, 96], sizes = [2, 32], strides = [1, 1]} : vector<2x128xf32> to vector<2x32xf32>
    %248 = arith.negf %247 : vector<2x32xf32>
    %249 = math.exp %248 : vector<2x32xf32>
    %cst_57 = arith.constant 1.000000e+00 : f32
    %250 = vector.broadcast %cst_57 : f32 to vector<2x32xf32>
    %251 = arith.addf %250, %249 : vector<2x32xf32>
    %252 = arith.divf %250, %251 : vector<2x32xf32>
    %253 = arith.mulf %244, %192 : vector<2x32xf32>
    %254 = arith.mulf %238, %246 : vector<2x32xf32>
    %255 = arith.addf %253, %254 : vector<2x32xf32>
    %256 = math.tanh %255 : vector<2x32xf32>
    %257 = arith.mulf %252, %256 : vector<2x32xf32>
    %cst_58 = arith.constant dense<0.000000e+00> : vector<2x128xf32>
    %258 = tpu.matmul %257, %9, %cst_58 {dimension_numbers = #tpu.dot_dimension_numbers<[1], [0], [0], [1], [0, 0, 1, 1], [], []>} : vector<2x32xf32>, vector<32x128xf32>, vector<2x128xf32> -> vector<2x128xf32>
    %259 = vector.broadcast %10 : vector<1x128xf32> to vector<2x128xf32>
    %260 = arith.addf %258, %259 : vector<2x128xf32>
    %c3 = arith.constant 3 : index
    %c0_59 = arith.constant 0 : index
    %c0_60 = arith.constant 0 : index
    %261 = vector.load %arg9[%c3, %c0_59, %c0_60] : memref<8x2x128xf32, #tpu.memory_space<vmem>>, vector<1x2x128xf32>
    %262 = vector.shape_cast %261 : vector<1x2x128xf32> to vector<2x128xf32>
    %263 = vector.shape_cast %260 : vector<2x128xf32> to vector<1x2x128xf32>
    tpu.vector_store %arg9[%c3, %c0_59, %c0_60], %263 {strides = array<i32>} : memref<8x2x128xf32, #tpu.memory_space<vmem>>, vector<1x2x128xf32>,
    %264 = vector.extract_strided_slice %5 {offsets = [8, 0], sizes = [2, 128], strides = [1, 1]} : vector<16x128xf32> to vector<2x128xf32>
    %cst_61 = arith.constant dense<0.000000e+00> : vector<2x128xf32>
    %265 = tpu.matmul %228, %6, %cst_61 {dimension_numbers = #tpu.dot_dimension_numbers<[1], [0], [0], [1], [0, 0, 1, 1], [], []>} : vector<2x32xf32>, vector<32x128xf32>, vector<2x128xf32> -> vector<2x128xf32>
    %266 = arith.addf %264, %265 : vector<2x128xf32>
    %267 = vector.extract_strided_slice %266 {offsets = [0, 0], sizes = [2, 32], strides = [1, 1]} : vector<2x128xf32> to vector<2x32xf32>
    %268 = arith.negf %267 : vector<2x32xf32>
    %269 = math.exp %268 : vector<2x32xf32>
    %cst_62 = arith.constant 1.000000e+00 : f32
    %270 = vector.broadcast %cst_62 : f32 to vector<2x32xf32>
    %271 = arith.addf %270, %269 : vector<2x32xf32>
    %272 = arith.divf %270, %271 : vector<2x32xf32>
    %273 = vector.extract_strided_slice %266 {offsets = [0, 32], sizes = [2, 32], strides = [1, 1]} : vector<2x128xf32> to vector<2x32xf32>
    %274 = arith.negf %273 : vector<2x32xf32>
    %275 = math.exp %274 : vector<2x32xf32>
    %cst_63 = arith.constant 1.000000e+00 : f32
    %276 = vector.broadcast %cst_63 : f32 to vector<2x32xf32>
    %277 = arith.addf %276, %275 : vector<2x32xf32>
    %278 = arith.divf %276, %277 : vector<2x32xf32>
    %279 = vector.extract_strided_slice %266 {offsets = [0, 64], sizes = [2, 32], strides = [1, 1]} : vector<2x128xf32> to vector<2x32xf32>
    %280 = math.tanh %279 : vector<2x32xf32>
    %281 = vector.extract_strided_slice %266 {offsets = [0, 96], sizes = [2, 32], strides = [1, 1]} : vector<2x128xf32> to vector<2x32xf32>
    %282 = arith.negf %281 : vector<2x32xf32>
    %283 = math.exp %282 : vector<2x32xf32>
    %cst_64 = arith.constant 1.000000e+00 : f32
    %284 = vector.broadcast %cst_64 : f32 to vector<2x32xf32>
    %285 = arith.addf %284, %283 : vector<2x32xf32>
    %286 = arith.divf %284, %285 : vector<2x32xf32>
    %287 = arith.mulf %278, %226 : vector<2x32xf32>
    %288 = arith.mulf %272, %280 : vector<2x32xf32>
    %289 = arith.addf %287, %288 : vector<2x32xf32>
    %290 = math.tanh %289 : vector<2x32xf32>
    %291 = arith.mulf %286, %290 : vector<2x32xf32>
    %292 = tpu.concatenate %291, %257 in 1 : vector<2x32xf32>, vector<2x32xf32> -> vector<2x64xf32>
    %cst_65 = arith.constant dense<0.000000e+00> : vector<2x128xf32>
    %293 = tpu.matmul %292, %7, %cst_65 {dimension_numbers = #tpu.dot_dimension_numbers<[1], [0], [0], [1], [0, 0, 1, 1], [], []>} : vector<2x64xf32>, vector<64x128xf32>, vector<2x128xf32> -> vector<2x128xf32>
    %294 = vector.broadcast %8 : vector<1x128xf32> to vector<2x128xf32>
    %295 = arith.addf %293, %294 : vector<2x128xf32>
    %296 = vector.extract_strided_slice %295 {offsets = [0, 0], sizes = [2, 32], strides = [1, 1]} : vector<2x128xf32> to vector<2x32xf32>
    %297 = arith.negf %296 : vector<2x32xf32>
    %298 = math.exp %297 : vector<2x32xf32>
    %cst_66 = arith.constant 1.000000e+00 : f32
    %299 = vector.broadcast %cst_66 : f32 to vector<2x32xf32>
    %300 = arith.addf %299, %298 : vector<2x32xf32>
    %301 = arith.divf %299, %300 : vector<2x32xf32>
    %302 = vector.extract_strided_slice %295 {offsets = [0, 32], sizes = [2, 32], strides = [1, 1]} : vector<2x128xf32> to vector<2x32xf32>
    %303 = arith.negf %302 : vector<2x32xf32>
    %304 = math.exp %303 : vector<2x32xf32>
    %cst_67 = arith.constant 1.000000e+00 : f32
    %305 = vector.broadcast %cst_67 : f32 to vector<2x32xf32>
    %306 = arith.addf %305, %304 : vector<2x32xf32>
    %307 = arith.divf %305, %306 : vector<2x32xf32>
    %308 = vector.extract_strided_slice %295 {offsets = [0, 64], sizes = [2, 32], strides = [1, 1]} : vector<2x128xf32> to vector<2x32xf32>
    %309 = math.tanh %308 : vector<2x32xf32>
    %310 = vector.extract_strided_slice %295 {offsets = [0, 96], sizes = [2, 32], strides = [1, 1]} : vector<2x128xf32> to vector<2x32xf32>
    %311 = arith.negf %310 : vector<2x32xf32>
    %312 = math.exp %311 : vector<2x32xf32>
    %cst_68 = arith.constant 1.000000e+00 : f32
    %313 = vector.broadcast %cst_68 : f32 to vector<2x32xf32>
    %314 = arith.addf %313, %312 : vector<2x32xf32>
    %315 = arith.divf %313, %314 : vector<2x32xf32>
    %316 = arith.mulf %307, %255 : vector<2x32xf32>
    %317 = arith.mulf %301, %309 : vector<2x32xf32>
    %318 = arith.addf %316, %317 : vector<2x32xf32>
    %319 = math.tanh %318 : vector<2x32xf32>
    %320 = arith.mulf %315, %319 : vector<2x32xf32>
    %cst_69 = arith.constant dense<0.000000e+00> : vector<2x128xf32>
    %321 = tpu.matmul %320, %9, %cst_69 {dimension_numbers = #tpu.dot_dimension_numbers<[1], [0], [0], [1], [0, 0, 1, 1], [], []>} : vector<2x32xf32>, vector<32x128xf32>, vector<2x128xf32> -> vector<2x128xf32>
    %322 = vector.broadcast %10 : vector<1x128xf32> to vector<2x128xf32>
    %323 = arith.addf %321, %322 : vector<2x128xf32>
    %c4 = arith.constant 4 : index
    %c0_70 = arith.constant 0 : index
    %c0_71 = arith.constant 0 : index
    %324 = vector.load %arg9[%c4, %c0_70, %c0_71] : memref<8x2x128xf32, #tpu.memory_space<vmem>>, vector<1x2x128xf32>
    %325 = vector.shape_cast %324 : vector<1x2x128xf32> to vector<2x128xf32>
    %326 = vector.shape_cast %323 : vector<2x128xf32> to vector<1x2x128xf32>
    tpu.vector_store %arg9[%c4, %c0_70, %c0_71], %326 {strides = array<i32>} : memref<8x2x128xf32, #tpu.memory_space<vmem>>, vector<1x2x128xf32>,
    %327 = vector.extract_strided_slice %5 {offsets = [10, 0], sizes = [2, 128], strides = [1, 1]} : vector<16x128xf32> to vector<2x128xf32>
    %cst_72 = arith.constant dense<0.000000e+00> : vector<2x128xf32>
    %328 = tpu.matmul %291, %6, %cst_72 {dimension_numbers = #tpu.dot_dimension_numbers<[1], [0], [0], [1], [0, 0, 1, 1], [], []>} : vector<2x32xf32>, vector<32x128xf32>, vector<2x128xf32> -> vector<2x128xf32>
    %329 = arith.addf %327, %328 : vector<2x128xf32>
    %330 = vector.extract_strided_slice %329 {offsets = [0, 0], sizes = [2, 32], strides = [1, 1]} : vector<2x128xf32> to vector<2x32xf32>
    %331 = arith.negf %330 : vector<2x32xf32>
    %332 = math.exp %331 : vector<2x32xf32>
    %cst_73 = arith.constant 1.000000e+00 : f32
    %333 = vector.broadcast %cst_73 : f32 to vector<2x32xf32>
    %334 = arith.addf %333, %332 : vector<2x32xf32>
    %335 = arith.divf %333, %334 : vector<2x32xf32>
    %336 = vector.extract_strided_slice %329 {offsets = [0, 32], sizes = [2, 32], strides = [1, 1]} : vector<2x128xf32> to vector<2x32xf32>
    %337 = arith.negf %336 : vector<2x32xf32>
    %338 = math.exp %337 : vector<2x32xf32>
    %cst_74 = arith.constant 1.000000e+00 : f32
    %339 = vector.broadcast %cst_74 : f32 to vector<2x32xf32>
    %340 = arith.addf %339, %338 : vector<2x32xf32>
    %341 = arith.divf %339, %340 : vector<2x32xf32>
    %342 = vector.extract_strided_slice %329 {offsets = [0, 64], sizes = [2, 32], strides = [1, 1]} : vector<2x128xf32> to vector<2x32xf32>
    %343 = math.tanh %342 : vector<2x32xf32>
    %344 = vector.extract_strided_slice %329 {offsets = [0, 96], sizes = [2, 32], strides = [1, 1]} : vector<2x128xf32> to vector<2x32xf32>
    %345 = arith.negf %344 : vector<2x32xf32>
    %346 = math.exp %345 : vector<2x32xf32>
    %cst_75 = arith.constant 1.000000e+00 : f32
    %347 = vector.broadcast %cst_75 : f32 to vector<2x32xf32>
    %348 = arith.addf %347, %346 : vector<2x32xf32>
    %349 = arith.divf %347, %348 : vector<2x32xf32>
    %350 = arith.mulf %341, %289 : vector<2x32xf32>
    %351 = arith.mulf %335, %343 : vector<2x32xf32>
    %352 = arith.addf %350, %351 : vector<2x32xf32>
    %353 = math.tanh %352 : vector<2x32xf32>
    %354 = arith.mulf %349, %353 : vector<2x32xf32>
    %355 = tpu.concatenate %354, %320 in 1 : vector<2x32xf32>, vector<2x32xf32> -> vector<2x64xf32>
    %cst_76 = arith.constant dense<0.000000e+00> : vector<2x128xf32>
    %356 = tpu.matmul %355, %7, %cst_76 {dimension_numbers = #tpu.dot_dimension_numbers<[1], [0], [0], [1], [0, 0, 1, 1], [], []>} : vector<2x64xf32>, vector<64x128xf32>, vector<2x128xf32> -> vector<2x128xf32>
    %357 = vector.broadcast %8 : vector<1x128xf32> to vector<2x128xf32>
    %358 = arith.addf %356, %357 : vector<2x128xf32>
    %359 = vector.extract_strided_slice %358 {offsets = [0, 0], sizes = [2, 32], strides = [1, 1]} : vector<2x128xf32> to vector<2x32xf32>
    %360 = arith.negf %359 : vector<2x32xf32>
    %361 = math.exp %360 : vector<2x32xf32>
    %cst_77 = arith.constant 1.000000e+00 : f32
    %362 = vector.broadcast %cst_77 : f32 to vector<2x32xf32>
    %363 = arith.addf %362, %361 : vector<2x32xf32>
    %364 = arith.divf %362, %363 : vector<2x32xf32>
    %365 = vector.extract_strided_slice %358 {offsets = [0, 32], sizes = [2, 32], strides = [1, 1]} : vector<2x128xf32> to vector<2x32xf32>
    %366 = arith.negf %365 : vector<2x32xf32>
    %367 = math.exp %366 : vector<2x32xf32>
    %cst_78 = arith.constant 1.000000e+00 : f32
    %368 = vector.broadcast %cst_78 : f32 to vector<2x32xf32>
    %369 = arith.addf %368, %367 : vector<2x32xf32>
    %370 = arith.divf %368, %369 : vector<2x32xf32>
    %371 = vector.extract_strided_slice %358 {offsets = [0, 64], sizes = [2, 32], strides = [1, 1]} : vector<2x128xf32> to vector<2x32xf32>
    %372 = math.tanh %371 : vector<2x32xf32>
    %373 = vector.extract_strided_slice %358 {offsets = [0, 96], sizes = [2, 32], strides = [1, 1]} : vector<2x128xf32> to vector<2x32xf32>
    %374 = arith.negf %373 : vector<2x32xf32>
    %375 = math.exp %374 : vector<2x32xf32>
    %cst_79 = arith.constant 1.000000e+00 : f32
    %376 = vector.broadcast %cst_79 : f32 to vector<2x32xf32>
    %377 = arith.addf %376, %375 : vector<2x32xf32>
    %378 = arith.divf %376, %377 : vector<2x32xf32>
    %379 = arith.mulf %370, %318 : vector<2x32xf32>
    %380 = arith.mulf %364, %372 : vector<2x32xf32>
    %381 = arith.addf %379, %380 : vector<2x32xf32>
    %382 = math.tanh %381 : vector<2x32xf32>
    %383 = arith.mulf %378, %382 : vector<2x32xf32>
    %cst_80 = arith.constant dense<0.000000e+00> : vector<2x128xf32>
    %384 = tpu.matmul %383, %9, %cst_80 {dimension_numbers = #tpu.dot_dimension_numbers<[1], [0], [0], [1], [0, 0, 1, 1], [], []>} : vector<2x32xf32>, vector<32x128xf32>, vector<2x128xf32> -> vector<2x128xf32>
    %385 = vector.broadcast %10 : vector<1x128xf32> to vector<2x128xf32>
    %386 = arith.addf %384, %385 : vector<2x128xf32>
    %c5 = arith.constant 5 : index
    %c0_81 = arith.constant 0 : index
    %c0_82 = arith.constant 0 : index
    %387 = vector.load %arg9[%c5, %c0_81, %c0_82] : memref<8x2x128xf32, #tpu.memory_space<vmem>>, vector<1x2x128xf32>
    %388 = vector.shape_cast %387 : vector<1x2x128xf32> to vector<2x128xf32>
    %389 = vector.shape_cast %386 : vector<2x128xf32> to vector<1x2x128xf32>
    tpu.vector_store %arg9[%c5, %c0_81, %c0_82], %389 {strides = array<i32>} : memref<8x2x128xf32, #tpu.memory_space<vmem>>, vector<1x2x128xf32>,
    %390 = vector.extract_strided_slice %5 {offsets = [12, 0], sizes = [2, 128], strides = [1, 1]} : vector<16x128xf32> to vector<2x128xf32>
    %cst_83 = arith.constant dense<0.000000e+00> : vector<2x128xf32>
    %391 = tpu.matmul %354, %6, %cst_83 {dimension_numbers = #tpu.dot_dimension_numbers<[1], [0], [0], [1], [0, 0, 1, 1], [], []>} : vector<2x32xf32>, vector<32x128xf32>, vector<2x128xf32> -> vector<2x128xf32>
    %392 = arith.addf %390, %391 : vector<2x128xf32>
    %393 = vector.extract_strided_slice %392 {offsets = [0, 0], sizes = [2, 32], strides = [1, 1]} : vector<2x128xf32> to vector<2x32xf32>
    %394 = arith.negf %393 : vector<2x32xf32>
    %395 = math.exp %394 : vector<2x32xf32>
    %cst_84 = arith.constant 1.000000e+00 : f32
    %396 = vector.broadcast %cst_84 : f32 to vector<2x32xf32>
    %397 = arith.addf %396, %395 : vector<2x32xf32>
    %398 = arith.divf %396, %397 : vector<2x32xf32>
    %399 = vector.extract_strided_slice %392 {offsets = [0, 32], sizes = [2, 32], strides = [1, 1]} : vector<2x128xf32> to vector<2x32xf32>
    %400 = arith.negf %399 : vector<2x32xf32>
    %401 = math.exp %400 : vector<2x32xf32>
    %cst_85 = arith.constant 1.000000e+00 : f32
    %402 = vector.broadcast %cst_85 : f32 to vector<2x32xf32>
    %403 = arith.addf %402, %401 : vector<2x32xf32>
    %404 = arith.divf %402, %403 : vector<2x32xf32>
    %405 = vector.extract_strided_slice %392 {offsets = [0, 64], sizes = [2, 32], strides = [1, 1]} : vector<2x128xf32> to vector<2x32xf32>
    %406 = math.tanh %405 : vector<2x32xf32>
    %407 = vector.extract_strided_slice %392 {offsets = [0, 96], sizes = [2, 32], strides = [1, 1]} : vector<2x128xf32> to vector<2x32xf32>
    %408 = arith.negf %407 : vector<2x32xf32>
    %409 = math.exp %408 : vector<2x32xf32>
    %cst_86 = arith.constant 1.000000e+00 : f32
    %410 = vector.broadcast %cst_86 : f32 to vector<2x32xf32>
    %411 = arith.addf %410, %409 : vector<2x32xf32>
    %412 = arith.divf %410, %411 : vector<2x32xf32>
    %413 = arith.mulf %404, %352 : vector<2x32xf32>
    %414 = arith.mulf %398, %406 : vector<2x32xf32>
    %415 = arith.addf %413, %414 : vector<2x32xf32>
    %416 = math.tanh %415 : vector<2x32xf32>
    %417 = arith.mulf %412, %416 : vector<2x32xf32>
    %418 = tpu.concatenate %417, %383 in 1 : vector<2x32xf32>, vector<2x32xf32> -> vector<2x64xf32>
    %cst_87 = arith.constant dense<0.000000e+00> : vector<2x128xf32>
    %419 = tpu.matmul %418, %7, %cst_87 {dimension_numbers = #tpu.dot_dimension_numbers<[1], [0], [0], [1], [0, 0, 1, 1], [], []>} : vector<2x64xf32>, vector<64x128xf32>, vector<2x128xf32> -> vector<2x128xf32>
    %420 = vector.broadcast %8 : vector<1x128xf32> to vector<2x128xf32>
    %421 = arith.addf %419, %420 : vector<2x128xf32>
    %422 = vector.extract_strided_slice %421 {offsets = [0, 0], sizes = [2, 32], strides = [1, 1]} : vector<2x128xf32> to vector<2x32xf32>
    %423 = arith.negf %422 : vector<2x32xf32>
    %424 = math.exp %423 : vector<2x32xf32>
    %cst_88 = arith.constant 1.000000e+00 : f32
    %425 = vector.broadcast %cst_88 : f32 to vector<2x32xf32>
    %426 = arith.addf %425, %424 : vector<2x32xf32>
    %427 = arith.divf %425, %426 : vector<2x32xf32>
    %428 = vector.extract_strided_slice %421 {offsets = [0, 32], sizes = [2, 32], strides = [1, 1]} : vector<2x128xf32> to vector<2x32xf32>
    %429 = arith.negf %428 : vector<2x32xf32>
    %430 = math.exp %429 : vector<2x32xf32>
    %cst_89 = arith.constant 1.000000e+00 : f32
    %431 = vector.broadcast %cst_89 : f32 to vector<2x32xf32>
    %432 = arith.addf %431, %430 : vector<2x32xf32>
    %433 = arith.divf %431, %432 : vector<2x32xf32>
    %434 = vector.extract_strided_slice %421 {offsets = [0, 64], sizes = [2, 32], strides = [1, 1]} : vector<2x128xf32> to vector<2x32xf32>
    %435 = math.tanh %434 : vector<2x32xf32>
    %436 = vector.extract_strided_slice %421 {offsets = [0, 96], sizes = [2, 32], strides = [1, 1]} : vector<2x128xf32> to vector<2x32xf32>
    %437 = arith.negf %436 : vector<2x32xf32>
    %438 = math.exp %437 : vector<2x32xf32>
    %cst_90 = arith.constant 1.000000e+00 : f32
    %439 = vector.broadcast %cst_90 : f32 to vector<2x32xf32>
    %440 = arith.addf %439, %438 : vector<2x32xf32>
    %441 = arith.divf %439, %440 : vector<2x32xf32>
    %442 = arith.mulf %433, %381 : vector<2x32xf32>
    %443 = arith.mulf %427, %435 : vector<2x32xf32>
    %444 = arith.addf %442, %443 : vector<2x32xf32>
    %445 = math.tanh %444 : vector<2x32xf32>
    %446 = arith.mulf %441, %445 : vector<2x32xf32>
    %cst_91 = arith.constant dense<0.000000e+00> : vector<2x128xf32>
    %447 = tpu.matmul %446, %9, %cst_91 {dimension_numbers = #tpu.dot_dimension_numbers<[1], [0], [0], [1], [0, 0, 1, 1], [], []>} : vector<2x32xf32>, vector<32x128xf32>, vector<2x128xf32> -> vector<2x128xf32>
    %448 = vector.broadcast %10 : vector<1x128xf32> to vector<2x128xf32>
    %449 = arith.addf %447, %448 : vector<2x128xf32>
    %c6 = arith.constant 6 : index
    %c0_92 = arith.constant 0 : index
    %c0_93 = arith.constant 0 : index
    %450 = vector.load %arg9[%c6, %c0_92, %c0_93] : memref<8x2x128xf32, #tpu.memory_space<vmem>>, vector<1x2x128xf32>
    %451 = vector.shape_cast %450 : vector<1x2x128xf32> to vector<2x128xf32>
    %452 = vector.shape_cast %449 : vector<2x128xf32> to vector<1x2x128xf32>
    tpu.vector_store %arg9[%c6, %c0_92, %c0_93], %452 {strides = array<i32>} : memref<8x2x128xf32, #tpu.memory_space<vmem>>, vector<1x2x128xf32>,
    %453 = vector.extract_strided_slice %5 {offsets = [14, 0], sizes = [2, 128], strides = [1, 1]} : vector<16x128xf32> to vector<2x128xf32>
    %cst_94 = arith.constant dense<0.000000e+00> : vector<2x128xf32>
    %454 = tpu.matmul %417, %6, %cst_94 {dimension_numbers = #tpu.dot_dimension_numbers<[1], [0], [0], [1], [0, 0, 1, 1], [], []>} : vector<2x32xf32>, vector<32x128xf32>, vector<2x128xf32> -> vector<2x128xf32>
    %455 = arith.addf %453, %454 : vector<2x128xf32>
    %456 = vector.extract_strided_slice %455 {offsets = [0, 0], sizes = [2, 32], strides = [1, 1]} : vector<2x128xf32> to vector<2x32xf32>
    %457 = arith.negf %456 : vector<2x32xf32>
    %458 = math.exp %457 : vector<2x32xf32>
    %cst_95 = arith.constant 1.000000e+00 : f32
    %459 = vector.broadcast %cst_95 : f32 to vector<2x32xf32>
    %460 = arith.addf %459, %458 : vector<2x32xf32>
    %461 = arith.divf %459, %460 : vector<2x32xf32>
    %462 = vector.extract_strided_slice %455 {offsets = [0, 32], sizes = [2, 32], strides = [1, 1]} : vector<2x128xf32> to vector<2x32xf32>
    %463 = arith.negf %462 : vector<2x32xf32>
    %464 = math.exp %463 : vector<2x32xf32>
    %cst_96 = arith.constant 1.000000e+00 : f32
    %465 = vector.broadcast %cst_96 : f32 to vector<2x32xf32>
    %466 = arith.addf %465, %464 : vector<2x32xf32>
    %467 = arith.divf %465, %466 : vector<2x32xf32>
    %468 = vector.extract_strided_slice %455 {offsets = [0, 64], sizes = [2, 32], strides = [1, 1]} : vector<2x128xf32> to vector<2x32xf32>
    %469 = math.tanh %468 : vector<2x32xf32>
    %470 = vector.extract_strided_slice %455 {offsets = [0, 96], sizes = [2, 32], strides = [1, 1]} : vector<2x128xf32> to vector<2x32xf32>
    %471 = arith.negf %470 : vector<2x32xf32>
    %472 = math.exp %471 : vector<2x32xf32>
    %cst_97 = arith.constant 1.000000e+00 : f32
    %473 = vector.broadcast %cst_97 : f32 to vector<2x32xf32>
    %474 = arith.addf %473, %472 : vector<2x32xf32>
    %475 = arith.divf %473, %474 : vector<2x32xf32>
    %476 = arith.mulf %467, %415 : vector<2x32xf32>
    %477 = arith.mulf %461, %469 : vector<2x32xf32>
    %478 = arith.addf %476, %477 : vector<2x32xf32>
    %479 = math.tanh %478 : vector<2x32xf32>
    %480 = arith.mulf %475, %479 : vector<2x32xf32>
    %481 = tpu.concatenate %480, %446 in 1 : vector<2x32xf32>, vector<2x32xf32> -> vector<2x64xf32>
    %cst_98 = arith.constant dense<0.000000e+00> : vector<2x128xf32>
    %482 = tpu.matmul %481, %7, %cst_98 {dimension_numbers = #tpu.dot_dimension_numbers<[1], [0], [0], [1], [0, 0, 1, 1], [], []>} : vector<2x64xf32>, vector<64x128xf32>, vector<2x128xf32> -> vector<2x128xf32>
    %483 = vector.broadcast %8 : vector<1x128xf32> to vector<2x128xf32>
    %484 = arith.addf %482, %483 : vector<2x128xf32>
    %485 = vector.extract_strided_slice %484 {offsets = [0, 0], sizes = [2, 32], strides = [1, 1]} : vector<2x128xf32> to vector<2x32xf32>
    %486 = arith.negf %485 : vector<2x32xf32>
    %487 = math.exp %486 : vector<2x32xf32>
    %cst_99 = arith.constant 1.000000e+00 : f32
    %488 = vector.broadcast %cst_99 : f32 to vector<2x32xf32>
    %489 = arith.addf %488, %487 : vector<2x32xf32>
    %490 = arith.divf %488, %489 : vector<2x32xf32>
    %491 = vector.extract_strided_slice %484 {offsets = [0, 32], sizes = [2, 32], strides = [1, 1]} : vector<2x128xf32> to vector<2x32xf32>
    %492 = arith.negf %491 : vector<2x32xf32>
    %493 = math.exp %492 : vector<2x32xf32>
    %cst_100 = arith.constant 1.000000e+00 : f32
    %494 = vector.broadcast %cst_100 : f32 to vector<2x32xf32>
    %495 = arith.addf %494, %493 : vector<2x32xf32>
    %496 = arith.divf %494, %495 : vector<2x32xf32>
    %497 = vector.extract_strided_slice %484 {offsets = [0, 64], sizes = [2, 32], strides = [1, 1]} : vector<2x128xf32> to vector<2x32xf32>
    %498 = math.tanh %497 : vector<2x32xf32>
    %499 = vector.extract_strided_slice %484 {offsets = [0, 96], sizes = [2, 32], strides = [1, 1]} : vector<2x128xf32> to vector<2x32xf32>
    %500 = arith.negf %499 : vector<2x32xf32>
    %501 = math.exp %500 : vector<2x32xf32>
    %cst_101 = arith.constant 1.000000e+00 : f32
    %502 = vector.broadcast %cst_101 : f32 to vector<2x32xf32>
    %503 = arith.addf %502, %501 : vector<2x32xf32>
    %504 = arith.divf %502, %503 : vector<2x32xf32>
    %505 = arith.mulf %496, %444 : vector<2x32xf32>
    %506 = arith.mulf %490, %498 : vector<2x32xf32>
    %507 = arith.addf %505, %506 : vector<2x32xf32>
    %508 = math.tanh %507 : vector<2x32xf32>
    %509 = arith.mulf %504, %508 : vector<2x32xf32>
    %cst_102 = arith.constant dense<0.000000e+00> : vector<2x128xf32>
    %510 = tpu.matmul %509, %9, %cst_102 {dimension_numbers = #tpu.dot_dimension_numbers<[1], [0], [0], [1], [0, 0, 1, 1], [], []>} : vector<2x32xf32>, vector<32x128xf32>, vector<2x128xf32> -> vector<2x128xf32>
    %511 = vector.broadcast %10 : vector<1x128xf32> to vector<2x128xf32>
    %512 = arith.addf %510, %511 : vector<2x128xf32>
    %c7 = arith.constant 7 : index
    %c0_103 = arith.constant 0 : index
    %c0_104 = arith.constant 0 : index
    %513 = vector.load %arg9[%c7, %c0_103, %c0_104] : memref<8x2x128xf32, #tpu.memory_space<vmem>>, vector<1x2x128xf32>
    %514 = vector.shape_cast %513 : vector<1x2x128xf32> to vector<2x128xf32>
    %515 = vector.shape_cast %512 : vector<2x128xf32> to vector<1x2x128xf32>
    tpu.vector_store %arg9[%c7, %c0_103, %c0_104], %515 {strides = array<i32>} : memref<8x2x128xf32, #tpu.memory_space<vmem>>, vector<1x2x128xf32>,
    %c0_105 = arith.constant 0 : index
    %c0_106 = arith.constant 0 : index
    %c0_107 = arith.constant 0 : index
    %516 = vector.load %arg9[%c0_105, %c0_106, %c0_107] : memref<8x2x128xf32, #tpu.memory_space<vmem>>, vector<8x2x128xf32>
    %cst_108 = arith.constant dense<0xFF800000> : vector<2x128xf32>
    %517 = vector.multi_reduction <maximumf>, %516, %cst_108 [0] : vector<8x2x128xf32> to vector<2x128xf32>
    %518 = vector.shape_cast %517 : vector<2x128xf32> to vector<1x2x128xf32>
    %519 = vector.broadcast %518 : vector<1x2x128xf32> to vector<8x2x128xf32>
    %520 = arith.subf %516, %519 : vector<8x2x128xf32>
    %521 = math.exp %520 : vector<8x2x128xf32>
    %cst_109 = arith.constant dense<0.000000e+00> : vector<2x128xf32>
    %522 = vector.multi_reduction <add>, %521, %cst_109 [0] : vector<8x2x128xf32> to vector<2x128xf32>
    %523 = vector.shape_cast %522 : vector<2x128xf32> to vector<1x2x128xf32>
    %524 = math.log %523 : vector<1x2x128xf32>
    %525 = vector.broadcast %524 : vector<1x2x128xf32> to vector<8x2x128xf32>
    %526 = arith.subf %520, %525 : vector<8x2x128xf32>
    %c0_110 = arith.constant 0 : index
    %c0_111 = arith.constant 0 : index
    %c0_112 = arith.constant 0 : index
    %527 = vector.load %arg9[%c0_110, %c0_111, %c0_112] : memref<8x2x128xf32, #tpu.memory_space<vmem>>, vector<8x2x128xf32>
    tpu.vector_store %arg9[%c0_110, %c0_111, %c0_112], %526 {strides = array<i32>} : memref<8x2x128xf32, #tpu.memory_space<vmem>>, vector<8x2x128xf32>,
    return
  }
  func.func @transform_0(%arg0: i32) -> (i32, i32) {
    %c0_i32 = arith.constant 0 : i32
    %c0_i32_0 = arith.constant 0 : i32
    %c0_i32_1 = arith.constant 0 : i32
    return %c0_i32, %c0_i32_0 : i32, i32
  }
  func.func @transform_1(%arg0: i32) -> (i32, i32) {
    %c0_i32 = arith.constant 0 : i32
    %c0_i32_0 = arith.constant 0 : i32
    %c0_i32_1 = arith.constant 0 : i32
    return %c0_i32, %c0_i32_0 : i32, i32
  }
  func.func @transform_2(%arg0: i32) -> (i32, i32) {
    %c0_i32 = arith.constant 0 : i32
    %c0_i32_0 = arith.constant 0 : i32
    %c0_i32_1 = arith.constant 0 : i32
    return %c0_i32, %c0_i32_0 : i32, i32
  }
  func.func @transform_3(%arg0: i32) -> (i32, i32) {
    %c0_i32 = arith.constant 0 : i32
    %c0_i32_0 = arith.constant 0 : i32
    %c0_i32_1 = arith.constant 0 : i32
    return %c0_i32, %c0_i32_0 : i32, i32
  }
  func.func @transform_4(%arg0: i32) -> (i32, i32) {
    %c0_i32 = arith.constant 0 : i32
    %c0_i32_0 = arith.constant 0 : i32
    %c0_i32_1 = arith.constant 0 : i32
    return %c0_i32, %c0_i32_0 : i32, i32
  }
  func.func @transform_5(%arg0: i32) -> (i32, i32) {
    %c0_i32 = arith.constant 0 : i32
    %c0_i32_0 = arith.constant 0 : i32
    %c0_i32_1 = arith.constant 0 : i32
    return %c0_i32, %c0_i32_0 : i32, i32
  }
  func.func @transform_6(%arg0: i32) -> (i32, i32) {
    %c0_i32 = arith.constant 0 : i32
    %c0_i32_0 = arith.constant 0 : i32
    %c0_i32_1 = arith.constant 0 : i32
    return %c0_i32, %c0_i32_0 : i32, i32
  }
  func.func @transform_7(%arg0: i32) -> (i32, i32) {
    %c0_i32 = arith.constant 0 : i32
    %c0_i32_0 = arith.constant 0 : i32
    %c0_i32_1 = arith.constant 0 : i32
    return %c0_i32, %c0_i32_0 : i32, i32
  }
  func.func @transform_8(%arg0: i32) -> (i32, i32, i32) {
    %c0_i32 = arith.constant 0 : i32
    %c0_i32_0 = arith.constant 0 : i32
    %c0_i32_1 = arith.constant 0 : i32
    %c0_i32_2 = arith.constant 0 : i32
    return %c0_i32, %c0_i32_0, %c0_i32_1 : i32, i32, i32
  }
}

</mosaic_0001>

<llo_original>
// kernel: ctc_forward.1
$region0: #{ctc_forward.1}
  #allocation0 [shape = 'u32[]', space=smem, size = 0x4, offset = 0x4, fixed_abs, tag = 'smem constant byte address 0x4 - core index']
  #allocation1 [shape = 'u32[144,128]{1,0:T(1,128)}', space=vmem, size = 0x12000, scoped, tag = 'internal scratch']
  %s0 = inlined_call_operand.vmem [shape: f32[16,16], index: 0, kind: input, shape index: {}]
  %s1 = inlined_call_operand.vmem [shape: f32[16,128], index: 1, kind: input, shape index: {}]
  %s2 = inlined_call_operand.vmem [shape: f32[1,128], index: 2, kind: input, shape index: {}]
  %s3 = inlined_call_operand.vmem [shape: f32[32,128], index: 3, kind: input, shape index: {}]
  %s4 = inlined_call_operand.vmem [shape: f32[64,128], index: 4, kind: input, shape index: {}]
  %s5 = inlined_call_operand.vmem [shape: f32[1,128], index: 5, kind: input, shape index: {}]
  %s6 = inlined_call_operand.vmem [shape: f32[32,128], index: 6, kind: input, shape index: {}]
  %s7 = inlined_call_operand.vmem [shape: f32[1,128], index: 7, kind: input, shape index: {}]
  %s8 = inlined_call_operand.hbm [shape: f32[8,2,128], index: 8, kind: output, shape index: {}]
  %s9 = sld [smem:[#allocation0]]
  $region42: #{ctc_forward.1} parent=0
    _
  %s11 = ssub.s32 1, %s9
  %s12 = scalar_select 0, %s11, %s9
  $region1: #{ctc_forward.1} parent=0
    #allocation2 [shape = 'u8[8192]{0}', space=vmem, size = 0x2000, scoped, tag = 'output window, operand 0, single buffered']
    #allocation3 [shape = 's32[1]{0}', space=sflag, size = 0x4, scoped, tag = 'scoped memory for ctc_forward.1']
    %13 = vsyncpa [#allocation3], 0
    // Predicated region
    $region2: #{ctc_forward.1} parent=1 // pred_check
      _
    $region3: #{ctc_forward.1} parent=1 // pred_check_branch
      %15 = sbr.rel (0) target = $region5
    $region4: #{ctc_forward.1} parent=1 // pred_region
      _
    $region5: #{ctc_forward.1} parent=1 // pred_fallthru
      _
    // Predicated region
    $region6: #{ctc_forward.1} parent=1 // pred_check
      _
    $region7: #{ctc_forward.1} parent=1 // pred_check_branch
      %17 = sbr.rel (0) target = $region9
    $region8: #{ctc_forward.1} parent=1 // pred_region
      _
    $region9: #{ctc_forward.1} parent=1 // pred_fallthru
      _
    // Predicated region
    $region10: #{ctc_forward.1} parent=1 // pred_check
      _
    $region11: #{ctc_forward.1} parent=1 // pred_check_branch
      %19 = sbr.rel (0) target = $region13
    $region12: #{ctc_forward.1} parent=1 // pred_region
      _
    $region13: #{ctc_forward.1} parent=1 // pred_fallthru
      _
    // Predicated region
    $region14: #{ctc_forward.1} parent=1 // pred_check
      _
    $region15: #{ctc_forward.1} parent=1 // pred_check_branch
      %21 = sbr.rel (0) target = $region17
    $region16: #{ctc_forward.1} parent=1 // pred_region
      _
    $region17: #{ctc_forward.1} parent=1 // pred_fallthru
      _
    // Predicated region
    $region18: #{ctc_forward.1} parent=1 // pred_check
      _
    $region19: #{ctc_forward.1} parent=1 // pred_check_branch
      %23 = sbr.rel (0) target = $region21
    $region20: #{ctc_forward.1} parent=1 // pred_region
      _
    $region21: #{ctc_forward.1} parent=1 // pred_fallthru
      _
    // Predicated region
    $region22: #{ctc_forward.1} parent=1 // pred_check
      _
    $region23: #{ctc_forward.1} parent=1 // pred_check_branch
      %25 = sbr.rel (0) target = $region25
    $region24: #{ctc_forward.1} parent=1 // pred_region
      _
    $region25: #{ctc_forward.1} parent=1 // pred_fallthru
      _
    // Predicated region
    $region26: #{ctc_forward.1} parent=1 // pred_check
      _
    $region27: #{ctc_forward.1} parent=1 // pred_check_branch
      %27 = sbr.rel (0) target = $region29
    $region28: #{ctc_forward.1} parent=1 // pred_region
      _
    $region29: #{ctc_forward.1} parent=1 // pred_fallthru
      _
    // Predicated region
    $region30: #{ctc_forward.1} parent=1 // pred_check
      _
    $region31: #{ctc_forward.1} parent=1 // pred_check_branch
      %29 = sbr.rel (0) target = $region33
    $region32: #{ctc_forward.1} parent=1 // pred_region
      _
    $region33: #{ctc_forward.1} parent=1 // pred_fallthru
      _
    %v30 = vld [vmem:[%s0] sm:$0xff]
    %v31 = vld [vmem:[%s0 + $0x8] sm:$0xff]
    %v32 = vld [vmem:[%s1] sm:$0xff]
    %v33 = vld [vmem:[%s1 + $0x8] sm:$0xff]
    %v34 = vld [vmem:[%s2] sm:$0x1]
    %v36 = vlaneseq
    %v37 = vshrl.u32 %v36, 7
    %v38 = vsub.s32 0, %v37
    %v39 = vrot.slane %v34, %v38
    %vm41 = vcmask 130048
    %v43 = vsel %vm41, %v30, 0
    %v46 = vsel %vm41, %v31, 0
    %48 = vmatprep.subr.mxu0 0.0
    %49 = vmatpush1.msra.mxu0 %v32
    %50 = vmatprep.subr.mxu0 0.0
    %51 = vmatpush1.msra.mxu0 %v33
    %52 = vmatprep.subr.mxu0 0.0
    %53 = vmatpush1.msra.mxu0 0.0
    %54 = vmatprep.subr.mxu0 0.0
    %55 = vmatpush1.msra.mxu0 0.0
    %56 = vmatprep.subr.mxu0 0.0
    %57 = vmatpush1.msra.mxu0 0.0
    %58 = vmatprep.subr.mxu0 0.0
    %59 = vmatpush1.msra.mxu0 0.0
    %60 = vmatprep.subr.mxu0 0.0
    %61 = vmatpush1.msra.mxu0 0.0
    %62 = vmatprep.subr.mxu0 0.0
    %63 = vmatpush1.msra.mxu0 0.0
    %64 = vmatprep.subr.mxu0 0.0
    %65 = vmatpush1.msra.mxu0 0.0
    %66 = vmatprep.subr.mxu0 0.0
    %67 = vmatpush1.msra.mxu0 0.0
    %68 = vmatprep.subr.mxu0 0.0
    %69 = vmatpush1.msra.mxu0 0.0
    %70 = vmatprep.subr.mxu0 0.0
    %71 = vmatpush1.msra.mxu0 0.0
    %72 = vmatprep.subr.mxu0 0.0
    %73 = vmatpush1.msra.mxu0 0.0
    %74 = vmatprep.subr.mxu0 0.0
    %75 = vmatpush1.msra.mxu0 0.0
    %76 = vmatprep.subr.mxu0 0.0
    %77 = vmatpush1.msra.mxu0 0.0
    %78 = vmatprep.subr.mxu0 0.0
    %79 = vmatpush1.msra.mxu0 0.0
    %80 = vmatprep.subr.mxu0 0.0
    %81 = vmatpush1.msra.mxu0 0.0
    %82 = vmatprep.subr.mxu0 0.0
    %83 = vmatpush1.msra.mxu0 0.0
    %84 = vmatprep.subr.mxu0 0.0
    %85 = vmatpush1.msra.mxu0 0.0
    %86 = vmatprep.subr.mxu0 0.0
    %87 = vmatpush1.msra.mxu0 0.0
    %88 = vmatprep.subr.mxu0 0.0
    %89 = vmatpush1.msra.mxu0 0.0
    %90 = vmatprep.subr.mxu0 0.0
    %91 = vmatpush1.msra.mxu0 0.0
    %92 = vmatprep.subr.mxu0 0.0
    %93 = vmatpush1.msra.mxu0 0.0
    %94 = vmatprep.subr.mxu0 0.0
    %95 = vmatpush1.msra.mxu0 0.0
    %96 = vmatprep.subr.mxu0 0.0
    %97 = vmatpush1.msra.mxu0 0.0
    %98 = vmatprep.subr.mxu0 0.0
    %99 = vmatpush1.msra.mxu0 0.0
    %100 = vmatprep.subr.mxu0 0.0
    %101 = vmatpush1.msra.mxu0 0.0
    %102 = vmatprep.subr.mxu0 0.0
    %103 = vmatpush1.msra.mxu0 0.0
    %104 = vmatprep.subr.mxu0 0.0
    %105 = vmatpush1.msra.mxu0 0.0
    %106 = vmatprep.subr.mxu0 0.0
    %107 = vmatpush1.msra.mxu0 0.0
    %108 = vmatprep.subr.mxu0 0.0
    %109 = vmatpush1.msra.mxu0 0.0
    %110 = vmatprep.subr.mxu0 0.0
    %111 = vmatpush1.msra.mxu0 0.0
    %112 = vmatprep.mubr.f32.mxu0 0.0
    %113 = vmatmul.mubr.f32.gmra.mrb[0].mxu0 %v43
    %v114 = vpop.f32.mrb[0].mxu0
    %v115 = vadd.f32 %v39, %v114
    %v116 = vpop.f32.mrb[0].mxu0
    %117 = vmatprep.mubr.f32.mxu0 0.0
    %118 = vmatmul.mubr.f32.gmra.mrb[0].mxu0 %v46
    %v119 = vpop.f32.mrb[0].mxu0
    %v120 = vadd.f32 %v39, %v119
    %v121 = vpop.f32.mrb[0].mxu0
    %122 = vdwg.mxu0
    %v123 = vld [vmem:[%s3] sm:$0xff]
    %v124 = vld [vmem:[%s3 + $0x8] sm:$0xff]
    %v125 = vld [vmem:[%s3 + $0x10] sm:$0xff]
    %v126 = vld [vmem:[%s3 + $0x18] sm:$0xff]
    %v127 = vld [vmem:[%s4] sm:$0xff]
    %v128 = vld [vmem:[%s4 + $0x8] sm:$0xff]
    %v129 = vld [vmem:[%s4 + $0x10] sm:$0xff]
    %v130 = vld [vmem:[%s4 + $0x18] sm:$0xff]
    %v131 = vld [vmem:[%s4 + $0x20] sm:$0xff]
    %v132 = vld [vmem:[%s4 + $0x28] sm:$0xff]
    %v133 = vld [vmem:[%s4 + $0x30] sm:$0xff]
    %v134 = vld [vmem:[%s4 + $0x38] sm:$0xff]
    %v135 = vld [vmem:[%s5] sm:$0x1]
    %v136 = vld [vmem:[%s6] sm:$0xff]
    %v137 = vld [vmem:[%s6 + $0x8] sm:$0xff]
    %v138 = vld [vmem:[%s6 + $0x10] sm:$0xff]
    %v139 = vld [vmem:[%s6 + $0x18] sm:$0xff]
    %v140 = vld [vmem:[%s7] sm:$0x1]
    %vm141 = vcmask 261120
    %v143 = vsel %vm141, 0.0, 0
    %145 = vmatprep.subr.mxu0 0.0
    %146 = vmatpush1.msra.mxu0 %v123
    %147 = vmatprep.subr.mxu0 0.0
    %148 = vmatpush1.msra.mxu0 %v124
    %149 = vmatprep.subr.mxu0 0.0
    %150 = vmatpush1.msra.mxu0 %v125
    %151 = vmatprep.subr.mxu0 0.0
    %152 = vmatpush1.msra.mxu0 %v126
    %153 = vmatprep.subr.mxu0 0.0
    %154 = vmatpush1.msra.mxu0 0.0
    %155 = vmatprep.subr.mxu0 0.0
    %156 = vmatpush1.msra.mxu0 0.0
    %157 = vmatprep.subr.mxu0 0.0
    %158 = vmatpush1.msra.mxu0 0.0
    %159 = vmatprep.subr.mxu0 0.0
    %160 = vmatpush1.msra.mxu0 0.0
    %161 = vmatprep.subr.mxu0 0.0
    %162 = vmatpush1.msra.mxu0 0.0
    %163 = vmatprep.subr.mxu0 0.0
    %164 = vmatpush1.msra.mxu0 0.0
    %165 = vmatprep.subr.mxu0 0.0
    %166 = vmatpush1.msra.mxu0 0.0
    %167 = vmatprep.subr.mxu0 0.0
    %168 = vmatpush1.msra.mxu0 0.0
    %169 = vmatprep.subr.mxu0 0.0
    %170 = vmatpush1.msra.mxu0 0.0
    %171 = vmatprep.subr.mxu0 0.0
    %172 = vmatpush1.msra.mxu0 0.0
    %173 = vmatprep.subr.mxu0 0.0
    %174 = vmatpush1.msra.mxu0 0.0
    %175 = vmatprep.subr.mxu0 0.0
    %176 = vmatpush1.msra.mxu0 0.0
    %177 = vmatprep.subr.mxu0 0.0
    %178 = vmatpush1.msra.mxu0 0.0
    %179 = vmatprep.subr.mxu0 0.0
    %180 = vmatpush1.msra.mxu0 0.0
    %181 = vmatprep.subr.mxu0 0.0
    %182 = vmatpush1.msra.mxu0 0.0
    %183 = vmatprep.subr.mxu0 0.0
    %184 = vmatpush1.msra.mxu0 0.0
    %185 = vmatprep.subr.mxu0 0.0
    %186 = vmatpush1.msra.mxu0 0.0
    %187 = vmatprep.subr.mxu0 0.0
    %188 = vmatpush1.msra.mxu0 0.0
    %189 = vmatprep.subr.mxu0 0.0
    %190 = vmatpush1.msra.mxu0 0.0
    %191 = vmatprep.subr.mxu0 0.0
    %192 = vmatpush1.msra.mxu0 0.0
    %193 = vmatprep.subr.mxu0 0.0
    %194 = vmatpush1.msra.mxu0 0.0
    %195 = vmatprep.subr.mxu0 0.0
    %196 = vmatpush1.msra.mxu0 0.0
    %197 = vmatprep.subr.mxu0 0.0
    %198 = vmatpush1.msra.mxu0 0.0
    %199 = vmatprep.subr.mxu0 0.0
    %200 = vmatpush1.msra.mxu0 0.0
    %201 = vmatprep.subr.mxu0 0.0
    %202 = vmatpush1.msra.mxu0 0.0
    %203 = vmatprep.subr.mxu0 0.0
    %204 = vmatpush1.msra.mxu0 0.0
    %205 = vmatprep.subr.mxu0 0.0
    %206 = vmatpush1.msra.mxu0 0.0
    %207 = vmatprep.subr.mxu0 0.0
    %208 = vmatpush1.msra.mxu0 0.0
    %209 = vmatprep.mubr.f32.mxu0 0.0
    %210 = vmatmul.mubr.f32.gmra.mrb[0].mxu0 %v143
    %v211 = vpop.f32.mrb[0].mxu0
    %v212 = vadd.f32 0.0, %v211
    %v213 = vpop.f32.mrb[0].mxu0
    %214 = vdwg.mxu0
    %v215 = vadd.f32 %v115, %v212
    %v216 = vxor.u32 %v215, 2147483648
    %v217 = vmul.f32 %v216, 1.442695
    %v218 = vpow.pop %v217
    %v219 = vadd.f32 %v218, 1.0
    %v220 = vrcp.pop %v219
    %v221 = vmul.f32 1.0, %v220
    %v222 = vtanh.pop %v215
    %v223 = vmul.f32 %v221, 0.0
    %225 = vrot.lane.b32.xlu0 %v222, 64
    %v226 = vpop.permute.xlu0 %225
    %v228 = vmul.f32 %v221, %v226
    %230 = vrot.lane.b32.xlu0 %v228, 32
    %v231 = vpop.permute.xlu0 %230
    %v233 = vadd.f32 %v223, %v231
    %v234 = vtanh.pop %v233
    %236 = vrot.lane.b32.xlu0 %v234, 64
    %v237 = vpop.permute.xlu0 %236
    %v239 = vmul.f32 %v221, %v237
    %241 = vrot.lane.b32.xlu0 %v239, 32
    %v242 = vpop.permute.xlu0 %241
    %v244 = vsel %vm141, %v242, 0.0
    %v246 = vlaneseq
    %v247 = vshrl.u32 %v246, 7
    %v248 = vsub.s32 0, %v247
    %v249 = vrot.slane %v135, %v248
    %vm251 = vcmask 523264
    %v253 = vsel %vm251, %v244, 0
    %255 = vmatprep.subr.mxu0 0.0
    %256 = vmatpush1.msra.mxu0 %v127
    %257 = vmatprep.subr.mxu0 0.0
    %258 = vmatpush1.msra.mxu0 %v128
    %259 = vmatprep.subr.mxu0 0.0
    %260 = vmatpush1.msra.mxu0 %v129
    %261 = vmatprep.subr.mxu0 0.0
    %262 = vmatpush1.msra.mxu0 %v130
    %263 = vmatprep.subr.mxu0 0.0
    %264 = vmatpush1.msra.mxu0 %v131
    %265 = vmatprep.subr.mxu0 0.0
    %266 = vmatpush1.msra.mxu0 %v132
    %267 = vmatprep.subr.mxu0 0.0
    %268 = vmatpush1.msra.mxu0 %v133
    %269 = vmatprep.subr.mxu0 0.0
    %270 = vmatpush1.msra.mxu0 %v134
    %271 = vmatprep.subr.mxu0 0.0
    %272 = vmatpush1.msra.mxu0 0.0
    %273 = vmatprep.subr.mxu0 0.0
    %274 = vmatpush1.msra.mxu0 0.0
    %275 = vmatprep.subr.mxu0 0.0
    %276 = vmatpush1.msra.mxu0 0.0
    %277 = vmatprep.subr.mxu0 0.0
    %278 = vmatpush1.msra.mxu0 0.0
    %279 = vmatprep.subr.mxu0 0.0
    %280 = vmatpush1.msra.mxu0 0.0
    %281 = vmatprep.subr.mxu0 0.0
    %282 = vmatpush1.msra.mxu0 0.0
    %283 = vmatprep.subr.mxu0 0.0
    %284 = vmatpush1.msra.mxu0 0.0
    %285 = vmatprep.subr.mxu0 0.0
    %286 = vmatpush1.msra.mxu0 0.0
    %287 = vmatprep.subr.mxu0 0.0
    %288 = vmatpush1.msra.mxu0 0.0
    %289 = vmatprep.subr.mxu0 0.0
    %290 = vmatpush1.msra.mxu0 0.0
    %291 = vmatprep.subr.mxu0 0.0
    %292 = vmatpush1.msra.mxu0 0.0
    %293 = vmatprep.subr.mxu0 0.0
    %294 = vmatpush1.msra.mxu0 0.0
    %295 = vmatprep.subr.mxu0 0.0
    %296 = vmatpush1.msra.mxu0 0.0
    %297 = vmatprep.subr.mxu0 0.0
    %298 = vmatpush1.msra.mxu0 0.0
    %299 = vmatprep.subr.mxu0 0.0
    %300 = vmatpush1.msra.mxu0 0.0
    %301 = vmatprep.subr.mxu0 0.0
    %302 = vmatpush1.msra.mxu0 0.0
    %303 = vmatprep.subr.mxu0 0.0
    %304 = vmatpush1.msra.mxu0 0.0
    %305 = vmatprep.subr.mxu0 0.0
    %306 = vmatpush1.msra.mxu0 0.0
    %307 = vmatprep.subr.mxu0 0.0
    %308 = vmatpush1.msra.mxu0 0.0
    %309 = vmatprep.subr.mxu0 0.0
    %310 = vmatpush1.msra.mxu0 0.0
    %311 = vmatprep.subr.mxu0 0.0
    %312 = vmatpush1.msra.mxu0 0.0
    %313 = vmatprep.subr.mxu0 0.0
    %314 = vmatpush1.msra.mxu0 0.0
    %315 = vmatprep.subr.mxu0 0.0
    %316 = vmatpush1.msra.mxu0 0.0
    %317 = vmatprep.subr.mxu0 0.0
    %318 = vmatpush1.msra.mxu0 0.0
    %319 = vmatprep.mubr.f32.mxu0 0.0
    %320 = vmatmul.mubr.f32.gmra.mrb[0].mxu0 %v253
    %v321 = vpop.f32.mrb[0].mxu0
    %v322 = vadd.f32 %v249, %v321
    %v323 = vpop.f32.mrb[0].mxu0
    %324 = vdwg.mxu0
    %v325 = vxor.u32 %v322, 2147483648
    %v326 = vmul.f32 %v325, 1.442695
    %v327 = vpow.pop %v326
    %v328 = vadd.f32 %v327, 1.0
    %v329 = vrcp.pop %v328
    %v330 = vmul.f32 1.0, %v329
    %v331 = vtanh.pop %v322
    %v332 = vmul.f32 %v330, 0.0
    %334 = vrot.lane.b32.xlu0 %v331, 64
    %v335 = vpop.permute.xlu0 %334
    %v337 = vmul.f32 %v330, %v335
    %339 = vrot.lane.b32.xlu0 %v337, 32
    %v340 = vpop.permute.xlu0 %339
    %v342 = vadd.f32 %v332, %v340
    %v343 = vtanh.pop %v342
    %345 = vrot.lane.b32.xlu0 %v343, 64
    %v346 = vpop.permute.xlu0 %345
    %v348 = vmul.f32 %v330, %v346
    %v350 = vlaneseq
    %v351 = vshrl.u32 %v350, 7
    %v352 = vsub.s32 0, %v351
    %v353 = vrot.slane %v140, %v352
    %356 = vrot.lane.b32.xlu0 %v348, 32
    %v357 = vpop.permute.xlu0 %356
    %v358 = vsel %vm141, %v357, 0
    %360 = vmatprep.subr.mxu0 0.0
    %361 = vmatpush1.msra.mxu0 %v136
    %362 = vmatprep.subr.mxu0 0.0
    %363 = vmatpush1.msra.mxu0 %v137
    %364 = vmatprep.subr.mxu0 0.0
    %365 = vmatpush1.msra.mxu0 %v138
    %366 = vmatprep.subr.mxu0 0.0
    %367 = vmatpush1.msra.mxu0 %v139
    %368 = vmatprep.subr.mxu0 0.0
    %369 = vmatpush1.msra.mxu0 0.0
    %370 = vmatprep.subr.mxu0 0.0
    %371 = vmatpush1.msra.mxu0 0.0
    %372 = vmatprep.subr.mxu0 0.0
    %373 = vmatpush1.msra.mxu0 0.0
    %374 = vmatprep.subr.mxu0 0.0
    %375 = vmatpush1.msra.mxu0 0.0
    %376 = vmatprep.subr.mxu0 0.0
    %377 = vmatpush1.msra.mxu0 0.0
    %378 = vmatprep.subr.mxu0 0.0
    %379 = vmatpush1.msra.mxu0 0.0
    %380 = vmatprep.subr.mxu0 0.0
    %381 = vmatpush1.msra.mxu0 0.0
    %382 = vmatprep.subr.mxu0 0.0
    %383 = vmatpush1.msra.mxu0 0.0
    %384 = vmatprep.subr.mxu0 0.0
    %385 = vmatpush1.msra.mxu0 0.0
    %386 = vmatprep.subr.mxu0 0.0
    %387 = vmatpush1.msra.mxu0 0.0
    %388 = vmatprep.subr.mxu0 0.0
    %389 = vmatpush1.msra.mxu0 0.0
    %390 = vmatprep.subr.mxu0 0.0
    %391 = vmatpush1.msra.mxu0 0.0
    %392 = vmatprep.subr.mxu0 0.0
    %393 = vmatpush1.msra.mxu0 0.0
    %394 = vmatprep.subr.mxu0 0.0
    %395 = vmatpush1.msra.mxu0 0.0
    %396 = vmatprep.subr.mxu0 0.0
    %397 = vmatpush1.msra.mxu0 0.0
    %398 = vmatprep.subr.mxu0 0.0
    %399 = vmatpush1.msra.mxu0 0.0
    %400 = vmatprep.subr.mxu0 0.0
    %401 = vmatpush1.msra.mxu0 0.0
    %402 = vmatprep.subr.mxu0 0.0
    %403 = vmatpush1.msra.mxu0 0.0
    %404 = vmatprep.subr.mxu0 0.0
    %405 = vmatpush1.msra.mxu0 0.0
    %406 = vmatprep.subr.mxu0 0.0
    %407 = vmatpush1.msra.mxu0 0.0
    %408 = vmatprep.subr.mxu0 0.0
    %409 = vmatpush1.msra.mxu0 0.0
    %410 = vmatprep.subr.mxu0 0.0
    %411 = vmatpush1.msra.mxu0 0.0
    %412 = vmatprep.subr.mxu0 0.0
    %413 = vmatpush1.msra.mxu0 0.0
    %414 = vmatprep.subr.mxu0 0.0
    %415 = vmatpush1.msra.mxu0 0.0
    %416 = vmatprep.subr.mxu0 0.0
    %417 = vmatpush1.msra.mxu0 0.0
    %418 = vmatprep.subr.mxu0 0.0
    %419 = vmatpush1.msra.mxu0 0.0
    %420 = vmatprep.subr.mxu0 0.0
    %421 = vmatpush1.msra.mxu0 0.0
    %422 = vmatprep.subr.mxu0 0.0
    %423 = vmatpush1.msra.mxu0 0.0
    %424 = vmatprep.mubr.f32.mxu0 0.0
    %425 = vmatmul.mubr.f32.gmra.mrb[0].mxu0 %v358
    %v426 = vpop.f32.mrb[0].mxu0
    %v427 = vadd.f32 %v353, %v426
    %v428 = vpop.f32.mrb[0].mxu0
    %429 = vdwg.mxu0
    %430 = vst [vmem:[#allocation2] sm:$0x3] %v427
    %v431 = vsel %vm141, %v242, 0
    %433 = vmatprep.subr.mxu0 0.0
    %434 = vmatpush1.msra.mxu0 %v123
    %435 = vmatprep.subr.mxu0 0.0
    %436 = vmatpush1.msra.mxu0 %v124
    %437 = vmatprep.subr.mxu0 0.0
    %438 = vmatpush1.msra.mxu0 %v125
    %439 = vmatprep.subr.mxu0 0.0
    %440 = vmatpush1.msra.mxu0 %v126
    %441 = vmatprep.subr.mxu0 0.0
    %442 = vmatpush1.msra.mxu0 0.0
    %443 = vmatprep.subr.mxu0 0.0
    %444 = vmatpush1.msra.mxu0 0.0
    %445 = vmatprep.subr.mxu0 0.0
    %446 = vmatpush1.msra.mxu0 0.0
    %447 = vmatprep.subr.mxu0 0.0
    %448 = vmatpush1.msra.mxu0 0.0
    %449 = vmatprep.subr.mxu0 0.0
    %450 = vmatpush1.msra.mxu0 0.0
    %451 = vmatprep.subr.mxu0 0.0
    %452 = vmatpush1.msra.mxu0 0.0
    %453 = vmatprep.subr.mxu0 0.0
    %454 = vmatpush1.msra.mxu0 0.0
    %455 = vmatprep.subr.mxu0 0.0
    %456 = vmatpush1.msra.mxu0 0.0
    %457 = vmatprep.subr.mxu0 0.0
    %458 = vmatpush1.msra.mxu0 0.0
    %459 = vmatprep.subr.mxu0 0.0
    %460 = vmatpush1.msra.mxu0 0.0
    %461 = vmatprep.subr.mxu0 0.0
    %462 = vmatpush1.msra.mxu0 0.0
    %463 = vmatprep.subr.mxu0 0.0
    %464 = vmatpush1.msra.mxu0 0.0
    %465 = vmatprep.subr.mxu0 0.0
    %466 = vmatpush1.msra.mxu0 0.0
    %467 = vmatprep.subr.mxu0 0.0
    %468 = vmatpush1.msra.mxu0 0.0
    %469 = vmatprep.subr.mxu0 0.0
    %470 = vmatpush1.msra.mxu0 0.0
    %471 = vmatprep.subr.mxu0 0.0
    %472 = vmatpush1.msra.mxu0 0.0
    %473 = vmatprep.subr.mxu0 0.0
    %474 = vmatpush1.msra.mxu0 0.0
    %475 = vmatprep.subr.mxu0 0.0
    %476 = vmatpush1.msra.mxu0 0.0
    %477 = vmatprep.subr.mxu0 0.0
    %478 = vmatpush1.msra.mxu0 0.0
    %479 = vmatprep.subr.mxu0 0.0
    %480 = vmatpush1.msra.mxu0 0.0
    %481 = vmatprep.subr.mxu0 0.0
    %482 = vmatpush1.msra.mxu0 0.0
    %483 = vmatprep.subr.mxu0 0.0
    %484 = vmatpush1.msra.mxu0 0.0
    %485 = vmatprep.subr.mxu0 0.0
    %486 = vmatpush1.msra.mxu0 0.0
    %487 = vmatprep.subr.mxu0 0.0
    %488 = vmatpush1.msra.mxu0 0.0
    %489 = vmatprep.subr.mxu0 0.0
    %490 = vmatpush1.msra.mxu0 0.0
    %491 = vmatprep.subr.mxu0 0.0
    %492 = vmatpush1.msra.mxu0 0.0
    %493 = vmatprep.subr.mxu0 0.0
    %494 = vmatpush1.msra.mxu0 0.0
    %495 = vmatprep.subr.mxu0 0.0
    %496 = vmatpush1.msra.mxu0 0.0
    %497 = vmatprep.mubr.f32.mxu0 0.0
    %498 = vmatmul.mubr.f32.gmra.mrb[0].mxu0 %v431
    %v499 = vpop.f32.mrb[0].mxu0
    %v500 = vadd.f32 0.0, %v499
    %v501 = vpop.f32.mrb[0].mxu0
    %502 = vdwg.mxu0
    %v504 = vrot.slane %v500, 6
    %v506 = vadd.f32 %v115, %v504
    %v507 = vxor.u32 %v506, 2147483648
    %v508 = vmul.f32 %v507, 1.442695
    %v509 = vpow.pop %v508
    %v510 = vadd.f32 %v509, 1.0
    %v511 = vrcp.pop %v510
    %v512 = vmul.f32 1.0, %v511
    %v513 = vtanh.pop %v506
    %v515 = vrot.slane %v233, 6
    %v517 = vmul.f32 %v512, %v515
    %519 = vrot.lane.b32.xlu0 %v513, 64
    %v520 = vpop.permute.xlu0 %519
    %v522 = vmul.f32 %v512, %v520
    %524 = vrot.lane.b32.xlu0 %v522, 32
    %v525 = vpop.permute.xlu0 %524
    %v527 = vadd.f32 %v517, %v525
    %v528 = vtanh.pop %v527
    %530 = vrot.lane.b32.xlu0 %v528, 64
    %v531 = vpop.permute.xlu0 %530
    %v533 = vmul.f32 %v512, %v531
    %535 = vrot.lane.b32.xlu0 %v533, 32
    %v536 = vpop.permute.xlu0 %535
    %v538 = vrot.slane %v348, 6
    %539 = vrot.lane.b32.xlu0 %v538, 64
    %v540 = vpop.permute.xlu0 %539
    %v542 = vsel %vm141, %v536, %v540
    %v544 = vrot.slane %v542, 2
    %v545 = vsel %vm251, %v544, 0
    %547 = vmatprep.subr.mxu0 0.0
    %548 = vmatpush1.msra.mxu0 %v127
    %549 = vmatprep.subr.mxu0 0.0
    %550 = vmatpush1.msra.mxu0 %v128
    %551 = vmatprep.subr.mxu0 0.0
    %552 = vmatpush1.msra.mxu0 %v129
    %553 = vmatprep.subr.mxu0 0.0
    %554 = vmatpush1.msra.mxu0 %v130
    %555 = vmatprep.subr.mxu0 0.0
    %556 = vmatpush1.msra.mxu0 %v131
    %557 = vmatprep.subr.mxu0 0.0
    %558 = vmatpush1.msra.mxu0 %v132
    %559 = vmatprep.subr.mxu0 0.0
    %560 = vmatpush1.msra.mxu0 %v133
    %561 = vmatprep.subr.mxu0 0.0
    %562 = vmatpush1.msra.mxu0 %v134
    %563 = vmatprep.subr.mxu0 0.0
    %564 = vmatpush1.msra.mxu0 0.0
    %565 = vmatprep.subr.mxu0 0.0
    %566 = vmatpush1.msra.mxu0 0.0
    %567 = vmatprep.subr.mxu0 0.0
    %568 = vmatpush1.msra.mxu0 0.0
    %569 = vmatprep.subr.mxu0 0.0
    %570 = vmatpush1.msra.mxu0 0.0
    %571 = vmatprep.subr.mxu0 0.0
    %572 = vmatpush1.msra.mxu0 0.0
    %573 = vmatprep.subr.mxu0 0.0
    %574 = vmatpush1.msra.mxu0 0.0
    %575 = vmatprep.subr.mxu0 0.0
    %576 = vmatpush1.msra.mxu0 0.0
    %577 = vmatprep.subr.mxu0 0.0
    %578 = vmatpush1.msra.mxu0 0.0
    %579 = vmatprep.subr.mxu0 0.0
    %580 = vmatpush1.msra.mxu0 0.0
    %581 = vmatprep.subr.mxu0 0.0
    %582 = vmatpush1.msra.mxu0 0.0
    %583 = vmatprep.subr.mxu0 0.0
    %584 = vmatpush1.msra.mxu0 0.0
    %585 = vmatprep.subr.mxu0 0.0
    %586 = vmatpush1.msra.mxu0 0.0
    %587 = vmatprep.subr.mxu0 0.0
    %588 = vmatpush1.msra.mxu0 0.0
    %589 = vmatprep.subr.mxu0 0.0
    %590 = vmatpush1.msra.mxu0 0.0
    %591 = vmatprep.subr.mxu0 0.0
    %592 = vmatpush1.msra.mxu0 0.0
    %593 = vmatprep.subr.mxu0 0.0
    %594 = vmatpush1.msra.mxu0 0.0
    %595 = vmatprep.subr.mxu0 0.0
    %596 = vmatpush1.msra.mxu0 0.0
    %597 = vmatprep.subr.mxu0 0.0
    %598 = vmatpush1.msra.mxu0 0.0
    %599 = vmatprep.subr.mxu0 0.0
    %600 = vmatpush1.msra.mxu0 0.0
    %601 = vmatprep.subr.mxu0 0.0
    %602 = vmatpush1.msra.mxu0 0.0
    %603 = vmatprep.subr.mxu0 0.0
    %604 = vmatpush1.msra.mxu0 0.0
    %605 = vmatprep.subr.mxu0 0.0
    %606 = vmatpush1.msra.mxu0 0.0
    %607 = vmatprep.subr.mxu0 0.0
    %608 = vmatpush1.msra.mxu0 0.0
    %609 = vmatprep.subr.mxu0 0.0
    %610 = vmatpush1.msra.mxu0 0.0
    %611 = vmatprep.mubr.f32.mxu0 0.0
    %612 = vmatmul.mubr.f32.gmra.mrb[0].mxu0 %v545
    %v613 = vpop.f32.mrb[0].mxu0
    %v614 = vadd.f32 %v249, %v613
    %v615 = vpop.f32.mrb[0].mxu0
    %616 = vdwg.mxu0
    %v617 = vxor.u32 %v614, 2147483648
    %v618 = vmul.f32 %v617, 1.442695
    %v619 = vpow.pop %v618
    %v620 = vadd.f32 %v619, 1.0
    %v621 = vrcp.pop %v620
    %v622 = vmul.f32 1.0, %v621
    %v623 = vtanh.pop %v614
    %v624 = vmul.f32 %v622, %v342
    %626 = vrot.lane.b32.xlu0 %v623, 64
    %v627 = vpop.permute.xlu0 %626
    %v629 = vmul.f32 %v622, %v627
    %631 = vrot.lane.b32.xlu0 %v629, 32
    %v632 = vpop.permute.xlu0 %631
    %v634 = vadd.f32 %v624, %v632
    %v635 = vtanh.pop %v634
    %637 = vrot.lane.b32.xlu0 %v635, 64
    %v638 = vpop.permute.xlu0 %637
    %v640 = vmul.f32 %v622, %v638
    %642 = vrot.lane.b32.xlu0 %v640, 32
    %v643 = vpop.permute.xlu0 %642
    %v644 = vsel %vm141, %v643, 0
    %646 = vmatprep.subr.mxu0 0.0
    %647 = vmatpush1.msra.mxu0 %v136
    %648 = vmatprep.subr.mxu0 0.0
    %649 = vmatpush1.msra.mxu0 %v137
    %650 = vmatprep.subr.mxu0 0.0
    %651 = vmatpush1.msra.mxu0 %v138
    %652 = vmatprep.subr.mxu0 0.0
    %653 = vmatpush1.msra.mxu0 %v139
    %654 = vmatprep.subr.mxu0 0.0
    %655 = vmatpush1.msra.mxu0 0.0
    %656 = vmatprep.subr.mxu0 0.0
    %657 = vmatpush1.msra.mxu0 0.0
    %658 = vmatprep.subr.mxu0 0.0
    %659 = vmatpush1.msra.mxu0 0.0
    %660 = vmatprep.subr.mxu0 0.0
    %661 = vmatpush1.msra.mxu0 0.0
    %662 = vmatprep.subr.mxu0 0.0
    %663 = vmatpush1.msra.mxu0 0.0
    %664 = vmatprep.subr.mxu0 0.0
    %665 = vmatpush1.msra.mxu0 0.0
    %666 = vmatprep.subr.mxu0 0.0
    %667 = vmatpush1.msra.mxu0 0.0
    %668 = vmatprep.subr.mxu0 0.0
    %669 = vmatpush1.msra.mxu0 0.0
    %670 = vmatprep.subr.mxu0 0.0
    %671 = vmatpush1.msra.mxu0 0.0
    %672 = vmatprep.subr.mxu0 0.0
    %673 = vmatpush1.msra.mxu0 0.0
    %674 = vmatprep.subr.mxu0 0.0
    %675 = vmatpush1.msra.mxu0 0.0
    %676 = vmatprep.subr.mxu0 0.0
    %677 = vmatpush1.msra.mxu0 0.0
    %678 = vmatprep.subr.mxu0 0.0
    %679 = vmatpush1.msra.mxu0 0.0
    %680 = vmatprep.subr.mxu0 0.0
    %681 = vmatpush1.msra.mxu0 0.0
    %682 = vmatprep.subr.mxu0 0.0
    %683 = vmatpush1.msra.mxu0 0.0
    %684 = vmatprep.subr.mxu0 0.0
    %685 = vmatpush1.msra.mxu0 0.0
    %686 = vmatprep.subr.mxu0 0.0
    %687 = vmatpush1.msra.mxu0 0.0
    %688 = vmatprep.subr.mxu0 0.0
    %689 = vmatpush1.msra.mxu0 0.0
    %690 = vmatprep.subr.mxu0 0.0
    %691 = vmatpush1.msra.mxu0 0.0
    %692 = vmatprep.subr.mxu0 0.0
    %693 = vmatpush1.msra.mxu0 0.0
    %694 = vmatprep.subr.mxu0 0.0
    %695 = vmatpush1.msra.mxu0 0.0
    %696 = vmatprep.subr.mxu0 0.0
    %697 = vmatpush1.msra.mxu0 0.0
    %698 = vmatprep.subr.mxu0 0.0
    %699 = vmatpush1.msra.mxu0 0.0
    %700 = vmatprep.subr.mxu0 0.0
    %701 = vmatpush1.msra.mxu0 0.0
    %702 = vmatprep.subr.mxu0 0.0
    %703 = vmatpush1.msra.mxu0 0.0
    %704 = vmatprep.subr.mxu0 0.0
    %705 = vmatpush1.msra.mxu0 0.0
    %706 = vmatprep.subr.mxu0 0.0
    %707 = vmatpush1.msra.mxu0 0.0
    %708 = vmatprep.subr.mxu0 0.0
    %709 = vmatpush1.msra.mxu0 0.0
    %710 = vmatprep.mubr.f32.mxu0 0.0
    %711 = vmatmul.mubr.f32.gmra.mrb[0].mxu0 %v644
    %v712 = vpop.f32.mrb[0].mxu0
    %v713 = vadd.f32 %v353, %v712
    %v714 = vpop.f32.mrb[0].mxu0
    %715 = vdwg.mxu0
    %s716 = scalar_lea.vmem [#allocation2], 2
    %717 = vst [vmem:[%s716] sm:$0x3] %v713
    %v718 = vrot.slane %v533, 2
    %719 = vrot.lane.b32.xlu0 %v718, 32
    %v720 = vpop.permute.xlu0 %719
    %v721 = vsel %vm141, %v720, 0
    %723 = vmatprep.subr.mxu0 0.0
    %724 = vmatpush1.msra.mxu0 %v123
    %725 = vmatprep.subr.mxu0 0.0
    %726 = vmatpush1.msra.mxu0 %v124
    %727 = vmatprep.subr.mxu0 0.0
    %728 = vmatpush1.msra.mxu0 %v125
    %729 = vmatprep.subr.mxu0 0.0
    %730 = vmatpush1.msra.mxu0 %v126
    %731 = vmatprep.subr.mxu0 0.0
    %732 = vmatpush1.msra.mxu0 0.0
    %733 = vmatprep.subr.mxu0 0.0
    %734 = vmatpush1.msra.mxu0 0.0
    %735 = vmatprep.subr.mxu0 0.0
    %736 = vmatpush1.msra.mxu0 0.0
    %737 = vmatprep.subr.mxu0 0.0
    %738 = vmatpush1.msra.mxu0 0.0
    %739 = vmatprep.subr.mxu0 0.0
    %740 = vmatpush1.msra.mxu0 0.0
    %741 = vmatprep.subr.mxu0 0.0
    %742 = vmatpush1.msra.mxu0 0.0
    %743 = vmatprep.subr.mxu0 0.0
    %744 = vmatpush1.msra.mxu0 0.0
    %745 = vmatprep.subr.mxu0 0.0
    %746 = vmatpush1.msra.mxu0 0.0
    %747 = vmatprep.subr.mxu0 0.0
    %748 = vmatpush1.msra.mxu0 0.0
    %749 = vmatprep.subr.mxu0 0.0
    %750 = vmatpush1.msra.mxu0 0.0
    %751 = vmatprep.subr.mxu0 0.0
    %752 = vmatpush1.msra.mxu0 0.0
    %753 = vmatprep.subr.mxu0 0.0
    %754 = vmatpush1.msra.mxu0 0.0
    %755 = vmatprep.subr.mxu0 0.0
    %756 = vmatpush1.msra.mxu0 0.0
    %757 = vmatprep.subr.mxu0 0.0
    %758 = vmatpush1.msra.mxu0 0.0
    %759 = vmatprep.subr.mxu0 0.0
    %760 = vmatpush1.msra.mxu0 0.0
    %761 = vmatprep.subr.mxu0 0.0
    %762 = vmatpush1.msra.mxu0 0.0
    %763 = vmatprep.subr.mxu0 0.0
    %764 = vmatpush1.msra.mxu0 0.0
    %765 = vmatprep.subr.mxu0 0.0
    %766 = vmatpush1.msra.mxu0 0.0
    %767 = vmatprep.subr.mxu0 0.0
    %768 = vmatpush1.msra.mxu0 0.0
    %769 = vmatprep.subr.mxu0 0.0
    %770 = vmatpush1.msra.mxu0 0.0
    %771 = vmatprep.subr.mxu0 0.0
    %772 = vmatpush1.msra.mxu0 0.0
    %773 = vmatprep.subr.mxu0 0.0
    %774 = vmatpush1.msra.mxu0 0.0
    %775 = vmatprep.subr.mxu0 0.0
    %776 = vmatpush1.msra.mxu0 0.0
    %777 = vmatprep.subr.mxu0 0.0
    %778 = vmatpush1.msra.mxu0 0.0
    %779 = vmatprep.subr.mxu0 0.0
    %780 = vmatpush1.msra.mxu0 0.0
    %781 = vmatprep.subr.mxu0 0.0
    %782 = vmatpush1.msra.mxu0 0.0
    %783 = vmatprep.subr.mxu0 0.0
    %784 = vmatpush1.msra.mxu0 0.0
    %785 = vmatprep.subr.mxu0 0.0
    %786 = vmatpush1.msra.mxu0 0.0
    %787 = vmatprep.mubr.f32.mxu0 0.0
    %788 = vmatmul.mubr.f32.gmra.mrb[0].mxu0 %v721
    %v789 = vpop.f32.mrb[0].mxu0
    %v790 = vadd.f32 0.0, %v789
    %v791 = vpop.f32.mrb[0].mxu0
    %792 = vdwg.mxu0
    %v794 = vrot.slane %v790, 4
    %v796 = vadd.f32 %v115, %v794
    %v797 = vxor.u32 %v796, 2147483648
    %v798 = vmul.f32 %v797, 1.442695
    %v799 = vpow.pop %v798
    %v800 = vadd.f32 %v799, 1.0
    %v801 = vrcp.pop %v800
    %v802 = vmul.f32 1.0, %v801
    %v803 = vtanh.pop %v796
    %v805 = vrot.slane %v527, 6
    %v807 = vmul.f32 %v802, %v805
    %809 = vrot.lane.b32.xlu0 %v803, 64
    %v810 = vpop.permute.xlu0 %809
    %v812 = vmul.f32 %v802, %v810
    %814 = vrot.lane.b32.xlu0 %v812, 32
    %v815 = vpop.permute.xlu0 %814
    %v817 = vadd.f32 %v807, %v815
    %v818 = vtanh.pop %v817
    %820 = vrot.lane.b32.xlu0 %v818, 64
    %v821 = vpop.permute.xlu0 %820
    %v823 = vmul.f32 %v802, %v821
    %825 = vrot.lane.b32.xlu0 %v823, 32
    %v826 = vpop.permute.xlu0 %825
    %v828 = vrot.slane %v640, 4
    %829 = vrot.lane.b32.xlu0 %v828, 64
    %v830 = vpop.permute.xlu0 %829
    %v832 = vsel %vm141, %v826, %v830
    %v834 = vrot.slane %v832, 4
    %v835 = vsel %vm251, %v834, 0
    %837 = vmatprep.subr.mxu0 0.0
    %838 = vmatpush1.msra.mxu0 %v127
    %839 = vmatprep.subr.mxu0 0.0
    %840 = vmatpush1.msra.mxu0 %v128
    %841 = vmatprep.subr.mxu0 0.0
    %842 = vmatpush1.msra.mxu0 %v129
    %843 = vmatprep.subr.mxu0 0.0
    %844 = vmatpush1.msra.mxu0 %v130
    %845 = vmatprep.subr.mxu0 0.0
    %846 = vmatpush1.msra.mxu0 %v131
    %847 = vmatprep.subr.mxu0 0.0
    %848 = vmatpush1.msra.mxu0 %v132
    %849 = vmatprep.subr.mxu0 0.0
    %850 = vmatpush1.msra.mxu0 %v133
    %851 = vmatprep.subr.mxu0 0.0
    %852 = vmatpush1.msra.mxu0 %v134
    %853 = vmatprep.subr.mxu0 0.0
    %854 = vmatpush1.msra.mxu0 0.0
    %855 = vmatprep.subr.mxu0 0.0
    %856 = vmatpush1.msra.mxu0 0.0
    %857 = vmatprep.subr.mxu0 0.0
    %858 = vmatpush1.msra.mxu0 0.0
    %859 = vmatprep.subr.mxu0 0.0
    %860 = vmatpush1.msra.mxu0 0.0
    %861 = vmatprep.subr.mxu0 0.0
    %862 = vmatpush1.msra.mxu0 0.0
    %863 = vmatprep.subr.mxu0 0.0
    %864 = vmatpush1.msra.mxu0 0.0
    %865 = vmatprep.subr.mxu0 0.0
    %866 = vmatpush1.msra.mxu0 0.0
    %867 = vmatprep.subr.mxu0 0.0
    %868 = vmatpush1.msra.mxu0 0.0
    %869 = vmatprep.subr.mxu0 0.0
    %870 = vmatpush1.msra.mxu0 0.0
    %871 = vmatprep.subr.mxu0 0.0
    %872 = vmatpush1.msra.mxu0 0.0
    %873 = vmatprep.subr.mxu0 0.0
    %874 = vmatpush1.msra.mxu0 0.0
    %875 = vmatprep.subr.mxu0 0.0
    %876 = vmatpush1.msra.mxu0 0.0
    %877 = vmatprep.subr.mxu0 0.0
    %878 = vmatpush1.msra.mxu0 0.0
    %879 = vmatprep.subr.mxu0 0.0
    %880 = vmatpush1.msra.mxu0 0.0
    %881 = vmatprep.subr.mxu0 0.0
    %882 = vmatpush1.msra.mxu0 0.0
    %883 = vmatprep.subr.mxu0 0.0
    %884 = vmatpush1.msra.mxu0 0.0
    %885 = vmatprep.subr.mxu0 0.0
    %886 = vmatpush1.msra.mxu0 0.0
    %887 = vmatprep.subr.mxu0 0.0
    %888 = vmatpush1.msra.mxu0 0.0
    %889 = vmatprep.subr.mxu0 0.0
    %890 = vmatpush1.msra.mxu0 0.0
    %891 = vmatprep.subr.mxu0 0.0
    %892 = vmatpush1.msra.mxu0 0.0
    %893 = vmatprep.subr.mxu0 0.0
    %894 = vmatpush1.msra.mxu0 0.0
    %895 = vmatprep.subr.mxu0 0.0
    %896 = vmatpush1.msra.mxu0 0.0
    %897 = vmatprep.subr.mxu0 0.0
    %898 = vmatpush1.msra.mxu0 0.0
    %899 = vmatprep.subr.mxu0 0.0
    %900 = vmatpush1.msra.mxu0 0.0
    %901 = vmatprep.mubr.f32.mxu0 0.0
    %902 = vmatmul.mubr.f32.gmra.mrb[0].mxu0 %v835
    %v903 = vpop.f32.mrb[0].mxu0
    %v904 = vadd.f32 %v249, %v903
    %v905 = vpop.f32.mrb[0].mxu0
    %906 = vdwg.mxu0
    %v907 = vxor.u32 %v904, 2147483648
    %v908 = vmul.f32 %v907, 1.442695
    %v909 = vpow.pop %v908
    %v910 = vadd.f32 %v909, 1.0
    %v911 = vrcp.pop %v910
    %v912 = vmul.f32 1.0, %v911
    %v913 = vtanh.pop %v904
    %v914 = vmul.f32 %v912, %v634
    %916 = vrot.lane.b32.xlu0 %v913, 64
    %v917 = vpop.permute.xlu0 %916
    %v919 = vmul.f32 %v912, %v917
    %921 = vrot.lane.b32.xlu0 %v919, 32
    %v922 = vpop.permute.xlu0 %921
    %v924 = vadd.f32 %v914, %v922
    %v925 = vtanh.pop %v924
    %927 = vrot.lane.b32.xlu0 %v925, 64
    %v928 = vpop.permute.xlu0 %927
    %v930 = vmul.f32 %v912, %v928
    %932 = vrot.lane.b32.xlu0 %v930, 32
    %v933 = vpop.permute.xlu0 %932
    %v934 = vsel %vm141, %v933, 0
    %936 = vmatprep.subr.mxu0 0.0
    %937 = vmatpush1.msra.mxu0 %v136
    %938 = vmatprep.subr.mxu0 0.0
    %939 = vmatpush1.msra.mxu0 %v137
    %940 = vmatprep.subr.mxu0 0.0
    %941 = vmatpush1.msra.mxu0 %v138
    %942 = vmatprep.subr.mxu0 0.0
    %943 = vmatpush1.msra.mxu0 %v139
    %944 = vmatprep.subr.mxu0 0.0
    %945 = vmatpush1.msra.mxu0 0.0
    %946 = vmatprep.subr.mxu0 0.0
    %947 = vmatpush1.msra.mxu0 0.0
    %948 = vmatprep.subr.mxu0 0.0
    %949 = vmatpush1.msra.mxu0 0.0
    %950 = vmatprep.subr.mxu0 0.0
    %951 = vmatpush1.msra.mxu0 0.0
    %952 = vmatprep.subr.mxu0 0.0
    %953 = vmatpush1.msra.mxu0 0.0
    %954 = vmatprep.subr.mxu0 0.0
    %955 = vmatpush1.msra.mxu0 0.0
    %956 = vmatprep.subr.mxu0 0.0
    %957 = vmatpush1.msra.mxu0 0.0
    %958 = vmatprep.subr.mxu0 0.0
    %959 = vmatpush1.msra.mxu0 0.0
    %960 = vmatprep.subr.mxu0 0.0
    %961 = vmatpush1.msra.mxu0 0.0
    %962 = vmatprep.subr.mxu0 0.0
    %963 = vmatpush1.msra.mxu0 0.0
    %964 = vmatprep.subr.mxu0 0.0
    %965 = vmatpush1.msra.mxu0 0.0
    %966 = vmatprep.subr.mxu0 0.0
    %967 = vmatpush1.msra.mxu0 0.0
    %968 = vmatprep.subr.mxu0 0.0
    %969 = vmatpush1.msra.mxu0 0.0
    %970 = vmatprep.subr.mxu0 0.0
    %971 = vmatpush1.msra.mxu0 0.0
    %972 = vmatprep.subr.mxu0 0.0
    %973 = vmatpush1.msra.mxu0 0.0
    %974 = vmatprep.subr.mxu0 0.0
    %975 = vmatpush1.msra.mxu0 0.0
    %976 = vmatprep.subr.mxu0 0.0
    %977 = vmatpush1.msra.mxu0 0.0
    %978 = vmatprep.subr.mxu0 0.0
    %979 = vmatpush1.msra.mxu0 0.0
    %980 = vmatprep.subr.mxu0 0.0
    %981 = vmatpush1.msra.mxu0 0.0
    %982 = vmatprep.subr.mxu0 0.0
    %983 = vmatpush1.msra.mxu0 0.0
    %984 = vmatprep.subr.mxu0 0.0
    %985 = vmatpush1.msra.mxu0 0.0
    %986 = vmatprep.subr.mxu0 0.0
    %987 = vmatpush1.msra.mxu0 0.0
    %988 = vmatprep.subr.mxu0 0.0
    %989 = vmatpush1.msra.mxu0 0.0
    %990 = vmatprep.subr.mxu0 0.0
    %991 = vmatpush1.msra.mxu0 0.0
    %992 = vmatprep.subr.mxu0 0.0
    %993 = vmatpush1.msra.mxu0 0.0
    %994 = vmatprep.subr.mxu0 0.0
    %995 = vmatpush1.msra.mxu0 0.0
    %996 = vmatprep.subr.mxu0 0.0
    %997 = vmatpush1.msra.mxu0 0.0
    %998 = vmatprep.subr.mxu0 0.0
    %999 = vmatpush1.msra.mxu0 0.0
    %1000 = vmatprep.mubr.f32.mxu0 0.0
    %1001 = vmatmul.mubr.f32.gmra.mrb[0].mxu0 %v934
    %v1002 = vpop.f32.mrb[0].mxu0
    %v1003 = vadd.f32 %v353, %v1002
    %v1004 = vpop.f32.mrb[0].mxu0
    %1005 = vdwg.mxu0
    %s1006 = scalar_lea.vmem [#allocation2], 4
    %1007 = vst [vmem:[%s1006] sm:$0x3] %v1003
    %v1008 = vrot.slane %v823, 4
    %1009 = vrot.lane.b32.xlu0 %v1008, 32
    %v1010 = vpop.permute.xlu0 %1009
    %v1011 = vsel %vm141, %v1010, 0
    %1013 = vmatprep.subr.mxu0 0.0
    %1014 = vmatpush1.msra.mxu0 %v123
    %1015 = vmatprep.subr.mxu0 0.0
    %1016 = vmatpush1.msra.mxu0 %v124
    %1017 = vmatprep.subr.mxu0 0.0
    %1018 = vmatpush1.msra.mxu0 %v125
    %1019 = vmatprep.subr.mxu0 0.0
    %1020 = vmatpush1.msra.mxu0 %v126
    %1021 = vmatprep.subr.mxu0 0.0
    %1022 = vmatpush1.msra.mxu0 0.0
    %1023 = vmatprep.subr.mxu0 0.0
    %1024 = vmatpush1.msra.mxu0 0.0
    %1025 = vmatprep.subr.mxu0 0.0
    %1026 = vmatpush1.msra.mxu0 0.0
    %1027 = vmatprep.subr.mxu0 0.0
    %1028 = vmatpush1.msra.mxu0 0.0
    %1029 = vmatprep.subr.mxu0 0.0
    %1030 = vmatpush1.msra.mxu0 0.0
    %1031 = vmatprep.subr.mxu0 0.0
    %1032 = vmatpush1.msra.mxu0 0.0
    %1033 = vmatprep.subr.mxu0 0.0
    %1034 = vmatpush1.msra.mxu0 0.0
    %1035 = vmatprep.subr.mxu0 0.0
    %1036 = vmatpush1.msra.mxu0 0.0
    %1037 = vmatprep.subr.mxu0 0.0
    %1038 = vmatpush1.msra.mxu0 0.0
    %1039 = vmatprep.subr.mxu0 0.0
    %1040 = vmatpush1.msra.mxu0 0.0
    %1041 = vmatprep.subr.mxu0 0.0
    %1042 = vmatpush1.msra.mxu0 0.0
    %1043 = vmatprep.subr.mxu0 0.0
    %1044 = vmatpush1.msra.mxu0 0.0
    %1045 = vmatprep.subr.mxu0 0.0
    %1046 = vmatpush1.msra.mxu0 0.0
    %1047 = vmatprep.subr.mxu0 0.0
    %1048 = vmatpush1.msra.mxu0 0.0
    %1049 = vmatprep.subr.mxu0 0.0
    %1050 = vmatpush1.msra.mxu0 0.0
    %1051 = vmatprep.subr.mxu0 0.0
    %1052 = vmatpush1.msra.mxu0 0.0
    %1053 = vmatprep.subr.mxu0 0.0
    %1054 = vmatpush1.msra.mxu0 0.0
    %1055 = vmatprep.subr.mxu0 0.0
    %1056 = vmatpush1.msra.mxu0 0.0
    %1057 = vmatprep.subr.mxu0 0.0
    %1058 = vmatpush1.msra.mxu0 0.0
    %1059 = vmatprep.subr.mxu0 0.0
    %1060 = vmatpush1.msra.mxu0 0.0
    %1061 = vmatprep.subr.mxu0 0.0
    %1062 = vmatpush1.msra.mxu0 0.0
    %1063 = vmatprep.subr.mxu0 0.0
    %1064 = vmatpush1.msra.mxu0 0.0
    %1065 = vmatprep.subr.mxu0 0.0
    %1066 = vmatpush1.msra.mxu0 0.0
    %1067 = vmatprep.subr.mxu0 0.0
    %1068 = vmatpush1.msra.mxu0 0.0
    %1069 = vmatprep.subr.mxu0 0.0
    %1070 = vmatpush1.msra.mxu0 0.0
    %1071 = vmatprep.subr.mxu0 0.0
    %1072 = vmatpush1.msra.mxu0 0.0
    %1073 = vmatprep.subr.mxu0 0.0
    %1074 = vmatpush1.msra.mxu0 0.0
    %1075 = vmatprep.subr.mxu0 0.0
    %1076 = vmatpush1.msra.mxu0 0.0
    %1077 = vmatprep.mubr.f32.mxu0 0.0
    %1078 = vmatmul.mubr.f32.gmra.mrb[0].mxu0 %v1011
    %v1079 = vpop.f32.mrb[0].mxu0
    %v1080 = vadd.f32 0.0, %v1079
    %v1081 = vpop.f32.mrb[0].mxu0
    %1082 = vdwg.mxu0
    %v1084 = vrot.slane %v1080, 2
    %v1086 = vadd.f32 %v115, %v1084
    %v1087 = vxor.u32 %v1086, 2147483648
    %v1088 = vmul.f32 %v1087, 1.442695
    %v1089 = vpow.pop %v1088
    %v1090 = vadd.f32 %v1089, 1.0
    %v1091 = vrcp.pop %v1090
    %v1092 = vmul.f32 1.0, %v1091
    %v1093 = vtanh.pop %v1086
    %v1095 = vrot.slane %v817, 6
    %v1097 = vmul.f32 %v1092, %v1095
    %1099 = vrot.lane.b32.xlu0 %v1093, 64
    %v1100 = vpop.permute.xlu0 %1099
    %v1102 = vmul.f32 %v1092, %v1100
    %1104 = vrot.lane.b32.xlu0 %v1102, 32
    %v1105 = vpop.permute.xlu0 %1104
    %v1107 = vadd.f32 %v1097, %v1105
    %v1108 = vtanh.pop %v1107
    %1110 = vrot.lane.b32.xlu0 %v1108, 64
    %v1111 = vpop.permute.xlu0 %1110
    %v1113 = vmul.f32 %v1092, %v1111
    %1115 = vrot.lane.b32.xlu0 %v1113, 32
    %v1116 = vpop.permute.xlu0 %1115
    %v1118 = vrot.slane %v930, 2
    %1119 = vrot.lane.b32.xlu0 %v1118, 64
    %v1120 = vpop.permute.xlu0 %1119
    %v1122 = vsel %vm141, %v1116, %v1120
    %v1124 = vrot.slane %v1122, 6
    %v1125 = vsel %vm251, %v1124, 0
    %1127 = vmatprep.subr.mxu0 0.0
    %1128 = vmatpush1.msra.mxu0 %v127
    %1129 = vmatprep.subr.mxu0 0.0
    %1130 = vmatpush1.msra.mxu0 %v128
    %1131 = vmatprep.subr.mxu0 0.0
    %1132 = vmatpush1.msra.mxu0 %v129
    %1133 = vmatprep.subr.mxu0 0.0
    %1134 = vmatpush1.msra.mxu0 %v130
    %1135 = vmatprep.subr.mxu0 0.0
    %1136 = vmatpush1.msra.mxu0 %v131
    %1137 = vmatprep.subr.mxu0 0.0
    %1138 = vmatpush1.msra.mxu0 %v132
    %1139 = vmatprep.subr.mxu0 0.0
    %1140 = vmatpush1.msra.mxu0 %v133
    %1141 = vmatprep.subr.mxu0 0.0
    %1142 = vmatpush1.msra.mxu0 %v134
    %1143 = vmatprep.subr.mxu0 0.0
    %1144 = vmatpush1.msra.mxu0 0.0
    %1145 = vmatprep.subr.mxu0 0.0
    %1146 = vmatpush1.msra.mxu0 0.0
    %1147 = vmatprep.subr.mxu0 0.0
    %1148 = vmatpush1.msra.mxu0 0.0
    %1149 = vmatprep.subr.mxu0 0.0
    %1150 = vmatpush1.msra.mxu0 0.0
    %1151 = vmatprep.subr.mxu0 0.0
    %1152 = vmatpush1.msra.mxu0 0.0
    %1153 = vmatprep.subr.mxu0 0.0
    %1154 = vmatpush1.msra.mxu0 0.0
    %1155 = vmatprep.subr.mxu0 0.0
    %1156 = vmatpush1.msra.mxu0 0.0
    %1157 = vmatprep.subr.mxu0 0.0
    %1158 = vmatpush1.msra.mxu0 0.0
    %1159 = vmatprep.subr.mxu0 0.0
    %1160 = vmatpush1.msra.mxu0 0.0
    %1161 = vmatprep.subr.mxu0 0.0
    %1162 = vmatpush1.msra.mxu0 0.0
    %1163 = vmatprep.subr.mxu0 0.0
    %1164 = vmatpush1.msra.mxu0 0.0
    %1165 = vmatprep.subr.mxu0 0.0
    %1166 = vmatpush1.msra.mxu0 0.0
    %1167 = vmatprep.subr.mxu0 0.0
    %1168 = vmatpush1.msra.mxu0 0.0
    %1169 = vmatprep.subr.mxu0 0.0
    %1170 = vmatpush1.msra.mxu0 0.0
    %1171 = vmatprep.subr.mxu0 0.0
    %1172 = vmatpush1.msra.mxu0 0.0
    %1173 = vmatprep.subr.mxu0 0.0
    %1174 = vmatpush1.msra.mxu0 0.0
    %1175 = vmatprep.subr.mxu0 0.0
    %1176 = vmatpush1.msra.mxu0 0.0
    %1177 = vmatprep.subr.mxu0 0.0
    %1178 = vmatpush1.msra.mxu0 0.0
    %1179 = vmatprep.subr.mxu0 0.0
    %1180 = vmatpush1.msra.mxu0 0.0
    %1181 = vmatprep.subr.mxu0 0.0
    %1182 = vmatpush1.msra.mxu0 0.0
    %1183 = vmatprep.subr.mxu0 0.0
    %1184 = vmatpush1.msra.mxu0 0.0
    %1185 = vmatprep.subr.mxu0 0.0
    %1186 = vmatpush1.msra.mxu0 0.0
    %1187 = vmatprep.subr.mxu0 0.0
    %1188 = vmatpush1.msra.mxu0 0.0
    %1189 = vmatprep.subr.mxu0 0.0
    %1190 = vmatpush1.msra.mxu0 0.0
    %1191 = vmatprep.mubr.f32.mxu0 0.0
    %1192 = vmatmul.mubr.f32.gmra.mrb[0].mxu0 %v1125
    %v1193 = vpop.f32.mrb[0].mxu0
    %v1194 = vadd.f32 %v249, %v1193
    %v1195 = vpop.f32.mrb[0].mxu0
    %1196 = vdwg.mxu0
    %v1197 = vxor.u32 %v1194, 2147483648
    %v1198 = vmul.f32 %v1197, 1.442695
    %v1199 = vpow.pop %v1198
    %v1200 = vadd.f32 %v1199, 1.0
    %v1201 = vrcp.pop %v1200
    %v1202 = vmul.f32 1.0, %v1201
    %v1203 = vtanh.pop %v1194
    %v1204 = vmul.f32 %v1202, %v924
    %1206 = vrot.lane.b32.xlu0 %v1203, 64
    %v1207 = vpop.permute.xlu0 %1206
    %v1209 = vmul.f32 %v1202, %v1207
    %1211 = vrot.lane.b32.xlu0 %v1209, 32
    %v1212 = vpop.permute.xlu0 %1211
    %v1214 = vadd.f32 %v1204, %v1212
    %v1215 = vtanh.pop %v1214
    %1217 = vrot.lane.b32.xlu0 %v1215, 64
    %v1218 = vpop.permute.xlu0 %1217
    %v1220 = vmul.f32 %v1202, %v1218
    %1222 = vrot.lane.b32.xlu0 %v1220, 32
    %v1223 = vpop.permute.xlu0 %1222
    %v1224 = vsel %vm141, %v1223, 0
    %1226 = vmatprep.subr.mxu0 0.0
    %1227 = vmatpush1.msra.mxu0 %v136
    %1228 = vmatprep.subr.mxu0 0.0
    %1229 = vmatpush1.msra.mxu0 %v137
    %1230 = vmatprep.subr.mxu0 0.0
    %1231 = vmatpush1.msra.mxu0 %v138
    %1232 = vmatprep.subr.mxu0 0.0
    %1233 = vmatpush1.msra.mxu0 %v139
    %1234 = vmatprep.subr.mxu0 0.0
    %1235 = vmatpush1.msra.mxu0 0.0
    %1236 = vmatprep.subr.mxu0 0.0
    %1237 = vmatpush1.msra.mxu0 0.0
    %1238 = vmatprep.subr.mxu0 0.0
    %1239 = vmatpush1.msra.mxu0 0.0
    %1240 = vmatprep.subr.mxu0 0.0
    %1241 = vmatpush1.msra.mxu0 0.0
    %1242 = vmatprep.subr.mxu0 0.0
    %1243 = vmatpush1.msra.mxu0 0.0
    %1244 = vmatprep.subr.mxu0 0.0
    %1245 = vmatpush1.msra.mxu0 0.0
    %1246 = vmatprep.subr.mxu0 0.0
    %1247 = vmatpush1.msra.mxu0 0.0
    %1248 = vmatprep.subr.mxu0 0.0
    %1249 = vmatpush1.msra.mxu0 0.0
    %1250 = vmatprep.subr.mxu0 0.0
    %1251 = vmatpush1.msra.mxu0 0.0
    %1252 = vmatprep.subr.mxu0 0.0
    %1253 = vmatpush1.msra.mxu0 0.0
    %1254 = vmatprep.subr.mxu0 0.0
    %1255 = vmatpush1.msra.mxu0 0.0
    %1256 = vmatprep.subr.mxu0 0.0
    %1257 = vmatpush1.msra.mxu0 0.0
    %1258 = vmatprep.subr.mxu0 0.0
    %1259 = vmatpush1.msra.mxu0 0.0
    %1260 = vmatprep.subr.mxu0 0.0
    %1261 = vmatpush1.msra.mxu0 0.0
    %1262 = vmatprep.subr.mxu0 0.0
    %1263 = vmatpush1.msra.mxu0 0.0
    %1264 = vmatprep.subr.mxu0 0.0
    %1265 = vmatpush1.msra.mxu0 0.0
    %1266 = vmatprep.subr.mxu0 0.0
    %1267 = vmatpush1.msra.mxu0 0.0
    %1268 = vmatprep.subr.mxu0 0.0
    %1269 = vmatpush1.msra.mxu0 0.0
    %1270 = vmatprep.subr.mxu0 0.0
    %1271 = vmatpush1.msra.mxu0 0.0
    %1272 = vmatprep.subr.mxu0 0.0
    %1273 = vmatpush1.msra.mxu0 0.0
    %1274 = vmatprep.subr.mxu0 0.0
    %1275 = vmatpush1.msra.mxu0 0.0
    %1276 = vmatprep.subr.mxu0 0.0
    %1277 = vmatpush1.msra.mxu0 0.0
    %1278 = vmatprep.subr.mxu0 0.0
    %1279 = vmatpush1.msra.mxu0 0.0
    %1280 = vmatprep.subr.mxu0 0.0
    %1281 = vmatpush1.msra.mxu0 0.0
    %1282 = vmatprep.subr.mxu0 0.0
    %1283 = vmatpush1.msra.mxu0 0.0
    %1284 = vmatprep.subr.mxu0 0.0
    %1285 = vmatpush1.msra.mxu0 0.0
    %1286 = vmatprep.subr.mxu0 0.0
    %1287 = vmatpush1.msra.mxu0 0.0
    %1288 = vmatprep.subr.mxu0 0.0
    %1289 = vmatpush1.msra.mxu0 0.0
    %1290 = vmatprep.mubr.f32.mxu0 0.0
    %1291 = vmatmul.mubr.f32.gmra.mrb[0].mxu0 %v1224
    %v1292 = vpop.f32.mrb[0].mxu0
    %v1293 = vadd.f32 %v353, %v1292
    %v1294 = vpop.f32.mrb[0].mxu0
    %1295 = vdwg.mxu0
    %s1296 = scalar_lea.vmem [#allocation2], 6
    %1297 = vst [vmem:[%s1296] sm:$0x3] %v1293
    %v1298 = vrot.slane %v1113, 6
    %1299 = vrot.lane.b32.xlu0 %v1298, 32
    %v1300 = vpop.permute.xlu0 %1299
    %v1301 = vsel %vm141, %v1300, 0
    %1303 = vmatprep.subr.mxu0 0.0
    %1304 = vmatpush1.msra.mxu0 %v123
    %1305 = vmatprep.subr.mxu0 0.0
    %1306 = vmatpush1.msra.mxu0 %v124
    %1307 = vmatprep.subr.mxu0 0.0
    %1308 = vmatpush1.msra.mxu0 %v125
    %1309 = vmatprep.subr.mxu0 0.0
    %1310 = vmatpush1.msra.mxu0 %v126
    %1311 = vmatprep.subr.mxu0 0.0
    %1312 = vmatpush1.msra.mxu0 0.0
    %1313 = vmatprep.subr.mxu0 0.0
    %1314 = vmatpush1.msra.mxu0 0.0
    %1315 = vmatprep.subr.mxu0 0.0
    %1316 = vmatpush1.msra.mxu0 0.0
    %1317 = vmatprep.subr.mxu0 0.0
    %1318 = vmatpush1.msra.mxu0 0.0
    %1319 = vmatprep.subr.mxu0 0.0
    %1320 = vmatpush1.msra.mxu0 0.0
    %1321 = vmatprep.subr.mxu0 0.0
    %1322 = vmatpush1.msra.mxu0 0.0
    %1323 = vmatprep.subr.mxu0 0.0
    %1324 = vmatpush1.msra.mxu0 0.0
    %1325 = vmatprep.subr.mxu0 0.0
    %1326 = vmatpush1.msra.mxu0 0.0
    %1327 = vmatprep.subr.mxu0 0.0
    %1328 = vmatpush1.msra.mxu0 0.0
    %1329 = vmatprep.subr.mxu0 0.0
    %1330 = vmatpush1.msra.mxu0 0.0
    %1331 = vmatprep.subr.mxu0 0.0
    %1332 = vmatpush1.msra.mxu0 0.0
    %1333 = vmatprep.subr.mxu0 0.0
    %1334 = vmatpush1.msra.mxu0 0.0
    %1335 = vmatprep.subr.mxu0 0.0
    %1336 = vmatpush1.msra.mxu0 0.0
    %1337 = vmatprep.subr.mxu0 0.0
    %1338 = vmatpush1.msra.mxu0 0.0
    %1339 = vmatprep.subr.mxu0 0.0
    %1340 = vmatpush1.msra.mxu0 0.0
    %1341 = vmatprep.subr.mxu0 0.0
    %1342 = vmatpush1.msra.mxu0 0.0
    %1343 = vmatprep.subr.mxu0 0.0
    %1344 = vmatpush1.msra.mxu0 0.0
    %1345 = vmatprep.subr.mxu0 0.0
    %1346 = vmatpush1.msra.mxu0 0.0
    %1347 = vmatprep.subr.mxu0 0.0
    %1348 = vmatpush1.msra.mxu0 0.0
    %1349 = vmatprep.subr.mxu0 0.0
    %1350 = vmatpush1.msra.mxu0 0.0
    %1351 = vmatprep.subr.mxu0 0.0
    %1352 = vmatpush1.msra.mxu0 0.0
    %1353 = vmatprep.subr.mxu0 0.0
    %1354 = vmatpush1.msra.mxu0 0.0
    %1355 = vmatprep.subr.mxu0 0.0
    %1356 = vmatpush1.msra.mxu0 0.0
    %1357 = vmatprep.subr.mxu0 0.0
    %1358 = vmatpush1.msra.mxu0 0.0
    %1359 = vmatprep.subr.mxu0 0.0
    %1360 = vmatpush1.msra.mxu0 0.0
    %1361 = vmatprep.subr.mxu0 0.0
    %1362 = vmatpush1.msra.mxu0 0.0
    %1363 = vmatprep.subr.mxu0 0.0
    %1364 = vmatpush1.msra.mxu0 0.0
    %1365 = vmatprep.subr.mxu0 0.0
    %1366 = vmatpush1.msra.mxu0 0.0
    %1367 = vmatprep.mubr.f32.mxu0 0.0
    %1368 = vmatmul.mubr.f32.gmra.mrb[0].mxu0 %v1301
    %v1369 = vpop.f32.mrb[0].mxu0
    %v1370 = vadd.f32 0.0, %v1369
    %v1371 = vpop.f32.mrb[0].mxu0
    %1372 = vdwg.mxu0
    %v1373 = vadd.f32 %v120, %v1370
    %v1374 = vxor.u32 %v1373, 2147483648
    %v1375 = vmul.f32 %v1374, 1.442695
    %v1376 = vpow.pop %v1375
    %v1377 = vadd.f32 %v1376, 1.0
    %v1378 = vrcp.pop %v1377
    %v1379 = vmul.f32 1.0, %v1378
    %v1380 = vtanh.pop %v1373
    %v1382 = vrot.slane %v1107, 6
    %v1384 = vmul.f32 %v1379, %v1382
    %1386 = vrot.lane.b32.xlu0 %v1380, 64
    %v1387 = vpop.permute.xlu0 %1386
    %v1389 = vmul.f32 %v1379, %v1387
    %1391 = vrot.lane.b32.xlu0 %v1389, 32
    %v1392 = vpop.permute.xlu0 %1391
    %v1394 = vadd.f32 %v1384, %v1392
    %v1395 = vtanh.pop %v1394
    %1397 = vrot.lane.b32.xlu0 %v1395, 64
    %v1398 = vpop.permute.xlu0 %1397
    %v1400 = vmul.f32 %v1379, %v1398
    %1402 = vrot.lane.b32.xlu0 %v1400, 32
    %v1403 = vpop.permute.xlu0 %1402
    %1405 = vrot.lane.b32.xlu0 %v1220, 64
    %v1406 = vpop.permute.xlu0 %1405
    %v1408 = vsel %vm141, %v1403, %v1406
    %v1410 = vsel %vm251, %v1408, 0
    %1412 = vmatprep.subr.mxu0 0.0
    %1413 = vmatpush1.msra.mxu0 %v127
    %1414 = vmatprep.subr.mxu0 0.0
    %1415 = vmatpush1.msra.mxu0 %v128
    %1416 = vmatprep.subr.mxu0 0.0
    %1417 = vmatpush1.msra.mxu0 %v129
    %1418 = vmatprep.subr.mxu0 0.0
    %1419 = vmatpush1.msra.mxu0 %v130
    %1420 = vmatprep.subr.mxu0 0.0
    %1421 = vmatpush1.msra.mxu0 %v131
    %1422 = vmatprep.subr.mxu0 0.0
    %1423 = vmatpush1.msra.mxu0 %v132
    %1424 = vmatprep.subr.mxu0 0.0
    %1425 = vmatpush1.msra.mxu0 %v133
    %1426 = vmatprep.subr.mxu0 0.0
    %1427 = vmatpush1.msra.mxu0 %v134
    %1428 = vmatprep.subr.mxu0 0.0
    %1429 = vmatpush1.msra.mxu0 0.0
    %1430 = vmatprep.subr.mxu0 0.0
    %1431 = vmatpush1.msra.mxu0 0.0
    %1432 = vmatprep.subr.mxu0 0.0
    %1433 = vmatpush1.msra.mxu0 0.0
    %1434 = vmatprep.subr.mxu0 0.0
    %1435 = vmatpush1.msra.mxu0 0.0
    %1436 = vmatprep.subr.mxu0 0.0
    %1437 = vmatpush1.msra.mxu0 0.0
    %1438 = vmatprep.subr.mxu0 0.0
    %1439 = vmatpush1.msra.mxu0 0.0
    %1440 = vmatprep.subr.mxu0 0.0
    %1441 = vmatpush1.msra.mxu0 0.0
    %1442 = vmatprep.subr.mxu0 0.0
    %1443 = vmatpush1.msra.mxu0 0.0
    %1444 = vmatprep.subr.mxu0 0.0
    %1445 = vmatpush1.msra.mxu0 0.0
    %1446 = vmatprep.subr.mxu0 0.0
    %1447 = vmatpush1.msra.mxu0 0.0
    %1448 = vmatprep.subr.mxu0 0.0
    %1449 = vmatpush1.msra.mxu0 0.0
    %1450 = vmatprep.subr.mxu0 0.0
    %1451 = vmatpush1.msra.mxu0 0.0
    %1452 = vmatprep.subr.mxu0 0.0
    %1453 = vmatpush1.msra.mxu0 0.0
    %1454 = vmatprep.subr.mxu0 0.0
    %1455 = vmatpush1.msra.mxu0 0.0
    %1456 = vmatprep.subr.mxu0 0.0
    %1457 = vmatpush1.msra.mxu0 0.0
    %1458 = vmatprep.subr.mxu0 0.0
    %1459 = vmatpush1.msra.mxu0 0.0
    %1460 = vmatprep.subr.mxu0 0.0
    %1461 = vmatpush1.msra.mxu0 0.0
    %1462 = vmatprep.subr.mxu0 0.0
    %1463 = vmatpush1.msra.mxu0 0.0
    %1464 = vmatprep.subr.mxu0 0.0
    %1465 = vmatpush1.msra.mxu0 0.0
    %1466 = vmatprep.subr.mxu0 0.0
    %1467 = vmatpush1.msra.mxu0 0.0
    %1468 = vmatprep.subr.mxu0 0.0
    %1469 = vmatpush1.msra.mxu0 0.0
    %1470 = vmatprep.subr.mxu0 0.0
    %1471 = vmatpush1.msra.mxu0 0.0
    %1472 = vmatprep.subr.mxu0 0.0
    %1473 = vmatpush1.msra.mxu0 0.0
    %1474 = vmatprep.subr.mxu0 0.0
    %1475 = vmatpush1.msra.mxu0 0.0
    %1476 = vmatprep.mubr.f32.mxu0 0.0
    %1477 = vmatmul.mubr.f32.gmra.mrb[0].mxu0 %v1410
    %v1478 = vpop.f32.mrb[0].mxu0
    %v1479 = vadd.f32 %v249, %v1478
    %v1480 = vpop.f32.mrb[0].mxu0
    %1481 = vdwg.mxu0
    %v1482 = vxor.u32 %v1479, 2147483648
    %v1483 = vmul.f32 %v1482, 1.442695
    %v1484 = vpow.pop %v1483
    %v1485 = vadd.f32 %v1484, 1.0
    %v1486 = vrcp.pop %v1485
    %v1487 = vmul.f32 1.0, %v1486
    %v1488 = vtanh.pop %v1479
    %v1489 = vmul.f32 %v1487, %v1214
    %1491 = vrot.lane.b32.xlu0 %v1488, 64
    %v1492 = vpop.permute.xlu0 %1491
    %v1494 = vmul.f32 %v1487, %v1492
    %1496 = vrot.lane.b32.xlu0 %v1494, 32
    %v1497 = vpop.permute.xlu0 %1496
    %v1499 = vadd.f32 %v1489, %v1497
    %v1500 = vtanh.pop %v1499
    %1502 = vrot.lane.b32.xlu0 %v1500, 64
    %v1503 = vpop.permute.xlu0 %1502
    %v1505 = vmul.f32 %v1487, %v1503
    %1507 = vrot.lane.b32.xlu0 %v1505, 32
    %v1508 = vpop.permute.xlu0 %1507
    %v1509 = vsel %vm141, %v1508, 0
    %1511 = vmatprep.subr.mxu0 0.0
    %1512 = vmatpush1.msra.mxu0 %v136
    %1513 = vmatprep.subr.mxu0 0.0
    %1514 = vmatpush1.msra.mxu0 %v137
    %1515 = vmatprep.subr.mxu0 0.0
    %1516 = vmatpush1.msra.mxu0 %v138
    %1517 = vmatprep.subr.mxu0 0.0
    %1518 = vmatpush1.msra.mxu0 %v139
    %1519 = vmatprep.subr.mxu0 0.0
    %1520 = vmatpush1.msra.mxu0 0.0
    %1521 = vmatprep.subr.mxu0 0.0
    %1522 = vmatpush1.msra.mxu0 0.0
    %1523 = vmatprep.subr.mxu0 0.0
    %1524 = vmatpush1.msra.mxu0 0.0
    %1525 = vmatprep.subr.mxu0 0.0
    %1526 = vmatpush1.msra.mxu0 0.0
    %1527 = vmatprep.subr.mxu0 0.0
    %1528 = vmatpush1.msra.mxu0 0.0
    %1529 = vmatprep.subr.mxu0 0.0
    %1530 = vmatpush1.msra.mxu0 0.0
    %1531 = vmatprep.subr.mxu0 0.0
    %1532 = vmatpush1.msra.mxu0 0.0
    %1533 = vmatprep.subr.mxu0 0.0
    %1534 = vmatpush1.msra.mxu0 0.0
    %1535 = vmatprep.subr.mxu0 0.0
    %1536 = vmatpush1.msra.mxu0 0.0
    %1537 = vmatprep.subr.mxu0 0.0
    %1538 = vmatpush1.msra.mxu0 0.0
    %1539 = vmatprep.subr.mxu0 0.0
    %1540 = vmatpush1.msra.mxu0 0.0
    %1541 = vmatprep.subr.mxu0 0.0
    %1542 = vmatpush1.msra.mxu0 0.0
    %1543 = vmatprep.subr.mxu0 0.0
    %1544 = vmatpush1.msra.mxu0 0.0
    %1545 = vmatprep.subr.mxu0 0.0
    %1546 = vmatpush1.msra.mxu0 0.0
    %1547 = vmatprep.subr.mxu0 0.0
    %1548 = vmatpush1.msra.mxu0 0.0
    %1549 = vmatprep.subr.mxu0 0.0
    %1550 = vmatpush1.msra.mxu0 0.0
    %1551 = vmatprep.subr.mxu0 0.0
    %1552 = vmatpush1.msra.mxu0 0.0
    %1553 = vmatprep.subr.mxu0 0.0
    %1554 = vmatpush1.msra.mxu0 0.0
    %1555 = vmatprep.subr.mxu0 0.0
    %1556 = vmatpush1.msra.mxu0 0.0
    %1557 = vmatprep.subr.mxu0 0.0
    %1558 = vmatpush1.msra.mxu0 0.0
    %1559 = vmatprep.subr.mxu0 0.0
    %1560 = vmatpush1.msra.mxu0 0.0
    %1561 = vmatprep.subr.mxu0 0.0
    %1562 = vmatpush1.msra.mxu0 0.0
    %1563 = vmatprep.subr.mxu0 0.0
    %1564 = vmatpush1.msra.mxu0 0.0
    %1565 = vmatprep.subr.mxu0 0.0
    %1566 = vmatpush1.msra.mxu0 0.0
    %1567 = vmatprep.subr.mxu0 0.0
    %1568 = vmatpush1.msra.mxu0 0.0
    %1569 = vmatprep.subr.mxu0 0.0
    %1570 = vmatpush1.msra.mxu0 0.0
    %1571 = vmatprep.subr.mxu0 0.0
    %1572 = vmatpush1.msra.mxu0 0.0
    %1573 = vmatprep.subr.mxu0 0.0
    %1574 = vmatpush1.msra.mxu0 0.0
    %1575 = vmatprep.mubr.f32.mxu0 0.0
    %1576 = vmatmul.mubr.f32.gmra.mrb[0].mxu0 %v1509
    %v1577 = vpop.f32.mrb[0].mxu0
    %v1578 = vadd.f32 %v353, %v1577
    %v1579 = vpop.f32.mrb[0].mxu0
    %1580 = vdwg.mxu0
    %s1581 = scalar_lea.vmem [#allocation2], 8
    %1582 = vst [vmem:[%s1581] sm:$0x3] %v1578
    %v1583 = vsel %vm141, %v1403, 0
    %1585 = vmatprep.subr.mxu0 0.0
    %1586 = vmatpush1.msra.mxu0 %v123
    %1587 = vmatprep.subr.mxu0 0.0
    %1588 = vmatpush1.msra.mxu0 %v124
    %1589 = vmatprep.subr.mxu0 0.0
    %1590 = vmatpush1.msra.mxu0 %v125
    %1591 = vmatprep.subr.mxu0 0.0
    %1592 = vmatpush1.msra.mxu0 %v126
    %1593 = vmatprep.subr.mxu0 0.0
    %1594 = vmatpush1.msra.mxu0 0.0
    %1595 = vmatprep.subr.mxu0 0.0
    %1596 = vmatpush1.msra.mxu0 0.0
    %1597 = vmatprep.subr.mxu0 0.0
    %1598 = vmatpush1.msra.mxu0 0.0
    %1599 = vmatprep.subr.mxu0 0.0
    %1600 = vmatpush1.msra.mxu0 0.0
    %1601 = vmatprep.subr.mxu0 0.0
    %1602 = vmatpush1.msra.mxu0 0.0
    %1603 = vmatprep.subr.mxu0 0.0
    %1604 = vmatpush1.msra.mxu0 0.0
    %1605 = vmatprep.subr.mxu0 0.0
    %1606 = vmatpush1.msra.mxu0 0.0
    %1607 = vmatprep.subr.mxu0 0.0
    %1608 = vmatpush1.msra.mxu0 0.0
    %1609 = vmatprep.subr.mxu0 0.0
    %1610 = vmatpush1.msra.mxu0 0.0
    %1611 = vmatprep.subr.mxu0 0.0
    %1612 = vmatpush1.msra.mxu0 0.0
    %1613 = vmatprep.subr.mxu0 0.0
    %1614 = vmatpush1.msra.mxu0 0.0
    %1615 = vmatprep.subr.mxu0 0.0
    %1616 = vmatpush1.msra.mxu0 0.0
    %1617 = vmatprep.subr.mxu0 0.0
    %1618 = vmatpush1.msra.mxu0 0.0
    %1619 = vmatprep.subr.mxu0 0.0
    %1620 = vmatpush1.msra.mxu0 0.0
    %1621 = vmatprep.subr.mxu0 0.0
    %1622 = vmatpush1.msra.mxu0 0.0
    %1623 = vmatprep.subr.mxu0 0.0
    %1624 = vmatpush1.msra.mxu0 0.0
    %1625 = vmatprep.subr.mxu0 0.0
    %1626 = vmatpush1.msra.mxu0 0.0
    %1627 = vmatprep.subr.mxu0 0.0
    %1628 = vmatpush1.msra.mxu0 0.0
    %1629 = vmatprep.subr.mxu0 0.0
    %1630 = vmatpush1.msra.mxu0 0.0
    %1631 = vmatprep.subr.mxu0 0.0
    %1632 = vmatpush1.msra.mxu0 0.0
    %1633 = vmatprep.subr.mxu0 0.0
    %1634 = vmatpush1.msra.mxu0 0.0
    %1635 = vmatprep.subr.mxu0 0.0
    %1636 = vmatpush1.msra.mxu0 0.0
    %1637 = vmatprep.subr.mxu0 0.0
    %1638 = vmatpush1.msra.mxu0 0.0
    %1639 = vmatprep.subr.mxu0 0.0
    %1640 = vmatpush1.msra.mxu0 0.0
    %1641 = vmatprep.subr.mxu0 0.0
    %1642 = vmatpush1.msra.mxu0 0.0
    %1643 = vmatprep.subr.mxu0 0.0
    %1644 = vmatpush1.msra.mxu0 0.0
    %1645 = vmatprep.subr.mxu0 0.0
    %1646 = vmatpush1.msra.mxu0 0.0
    %1647 = vmatprep.subr.mxu0 0.0
    %1648 = vmatpush1.msra.mxu0 0.0
    %1649 = vmatprep.mubr.f32.mxu0 0.0
    %1650 = vmatmul.mubr.f32.gmra.mrb[0].mxu0 %v1583
    %v1651 = vpop.f32.mrb[0].mxu0
    %v1652 = vadd.f32 0.0, %v1651
    %v1653 = vpop.f32.mrb[0].mxu0
    %1654 = vdwg.mxu0
    %v1656 = vrot.slane %v1652, 6
    %v1658 = vadd.f32 %v120, %v1656
    %v1659 = vxor.u32 %v1658, 2147483648
    %v1660 = vmul.f32 %v1659, 1.442695
    %v1661 = vpow.pop %v1660
    %v1662 = vadd.f32 %v1661, 1.0
    %v1663 = vrcp.pop %v1662
    %v1664 = vmul.f32 1.0, %v1663
    %v1665 = vtanh.pop %v1658
    %v1667 = vrot.slane %v1394, 6
    %v1669 = vmul.f32 %v1664, %v1667
    %1671 = vrot.lane.b32.xlu0 %v1665, 64
    %v1672 = vpop.permute.xlu0 %1671
    %v1674 = vmul.f32 %v1664, %v1672
    %1676 = vrot.lane.b32.xlu0 %v1674, 32
    %v1677 = vpop.permute.xlu0 %1676
    %v1679 = vadd.f32 %v1669, %v1677
    %v1680 = vtanh.pop %v1679
    %1682 = vrot.lane.b32.xlu0 %v1680, 64
    %v1683 = vpop.permute.xlu0 %1682
    %v1685 = vmul.f32 %v1664, %v1683
    %1687 = vrot.lane.b32.xlu0 %v1685, 32
    %v1688 = vpop.permute.xlu0 %1687
    %v1690 = vrot.slane %v1505, 6
    %1691 = vrot.lane.b32.xlu0 %v1690, 64
    %v1692 = vpop.permute.xlu0 %1691
    %v1694 = vsel %vm141, %v1688, %v1692
    %v1696 = vrot.slane %v1694, 2
    %v1697 = vsel %vm251, %v1696, 0
    %1699 = vmatprep.subr.mxu0 0.0
    %1700 = vmatpush1.msra.mxu0 %v127
    %1701 = vmatprep.subr.mxu0 0.0
    %1702 = vmatpush1.msra.mxu0 %v128
    %1703 = vmatprep.subr.mxu0 0.0
    %1704 = vmatpush1.msra.mxu0 %v129
    %1705 = vmatprep.subr.mxu0 0.0
    %1706 = vmatpush1.msra.mxu0 %v130
    %1707 = vmatprep.subr.mxu0 0.0
    %1708 = vmatpush1.msra.mxu0 %v131
    %1709 = vmatprep.subr.mxu0 0.0
    %1710 = vmatpush1.msra.mxu0 %v132
    %1711 = vmatprep.subr.mxu0 0.0
    %1712 = vmatpush1.msra.mxu0 %v133
    %1713 = vmatprep.subr.mxu0 0.0
    %1714 = vmatpush1.msra.mxu0 %v134
    %1715 = vmatprep.subr.mxu0 0.0
    %1716 = vmatpush1.msra.mxu0 0.0
    %1717 = vmatprep.subr.mxu0 0.0
    %1718 = vmatpush1.msra.mxu0 0.0
    %1719 = vmatprep.subr.mxu0 0.0
    %1720 = vmatpush1.msra.mxu0 0.0
    %1721 = vmatprep.subr.mxu0 0.0
    %1722 = vmatpush1.msra.mxu0 0.0
    %1723 = vmatprep.subr.mxu0 0.0
    %1724 = vmatpush1.msra.mxu0 0.0
    %1725 = vmatprep.subr.mxu0 0.0
    %1726 = vmatpush1.msra.mxu0 0.0
    %1727 = vmatprep.subr.mxu0 0.0
    %1728 = vmatpush1.msra.mxu0 0.0
    %1729 = vmatprep.subr.mxu0 0.0
    %1730 = vmatpush1.msra.mxu0 0.0
    %1731 = vmatprep.subr.mxu0 0.0
    %1732 = vmatpush1.msra.mxu0 0.0
    %1733 = vmatprep.subr.mxu0 0.0
    %1734 = vmatpush1.msra.mxu0 0.0
    %1735 = vmatprep.subr.mxu0 0.0
    %1736 = vmatpush1.msra.mxu0 0.0
    %1737 = vmatprep.subr.mxu0 0.0
    %1738 = vmatpush1.msra.mxu0 0.0
    %1739 = vmatprep.subr.mxu0 0.0
    %1740 = vmatpush1.msra.mxu0 0.0
    %1741 = vmatprep.subr.mxu0 0.0
    %1742 = vmatpush1.msra.mxu0 0.0
    %1743 = vmatprep.subr.mxu0 0.0
    %1744 = vmatpush1.msra.mxu0 0.0
    %1745 = vmatprep.subr.mxu0 0.0
    %1746 = vmatpush1.msra.mxu0 0.0
    %1747 = vmatprep.subr.mxu0 0.0
    %1748 = vmatpush1.msra.mxu0 0.0
    %1749 = vmatprep.subr.mxu0 0.0
    %1750 = vmatpush1.msra.mxu0 0.0
    %1751 = vmatprep.subr.mxu0 0.0
    %1752 = vmatpush1.msra.mxu0 0.0
    %1753 = vmatprep.subr.mxu0 0.0
    %1754 = vmatpush1.msra.mxu0 0.0
    %1755 = vmatprep.subr.mxu0 0.0
    %1756 = vmatpush1.msra.mxu0 0.0
    %1757 = vmatprep.subr.mxu0 0.0
    %1758 = vmatpush1.msra.mxu0 0.0
    %1759 = vmatprep.subr.mxu0 0.0
    %1760 = vmatpush1.msra.mxu0 0.0
    %1761 = vmatprep.subr.mxu0 0.0
    %1762 = vmatpush1.msra.mxu0 0.0
    %1763 = vmatprep.mubr.f32.mxu0 0.0
    %1764 = vmatmul.mubr.f32.gmra.mrb[0].mxu0 %v1697
    %v1765 = vpop.f32.mrb[0].mxu0
    %v1766 = vadd.f32 %v249, %v1765
    %v1767 = vpop.f32.mrb[0].mxu0
    %1768 = vdwg.mxu0
    %v1769 = vxor.u32 %v1766, 2147483648
    %v1770 = vmul.f32 %v1769, 1.442695
    %v1771 = vpow.pop %v1770
    %v1772 = vadd.f32 %v1771, 1.0
    %v1773 = vrcp.pop %v1772
    %v1774 = vmul.f32 1.0, %v1773
    %v1775 = vtanh.pop %v1766
    %v1776 = vmul.f32 %v1774, %v1499
    %1778 = vrot.lane.b32.xlu0 %v1775, 64
    %v1779 = vpop.permute.xlu0 %1778
    %v1781 = vmul.f32 %v1774, %v1779
    %1783 = vrot.lane.b32.xlu0 %v1781, 32
    %v1784 = vpop.permute.xlu0 %1783
    %v1786 = vadd.f32 %v1776, %v1784
    %v1787 = vtanh.pop %v1786
    %1789 = vrot.lane.b32.xlu0 %v1787, 64
    %v1790 = vpop.permute.xlu0 %1789
    %v1792 = vmul.f32 %v1774, %v1790
    %1794 = vrot.lane.b32.xlu0 %v1792, 32
    %v1795 = vpop.permute.xlu0 %1794
    %v1796 = vsel %vm141, %v1795, 0
    %1798 = vmatprep.subr.mxu0 0.0
    %1799 = vmatpush1.msra.mxu0 %v136
    %1800 = vmatprep.subr.mxu0 0.0
    %1801 = vmatpush1.msra.mxu0 %v137
    %1802 = vmatprep.subr.mxu0 0.0
    %1803 = vmatpush1.msra.mxu0 %v138
    %1804 = vmatprep.subr.mxu0 0.0
    %1805 = vmatpush1.msra.mxu0 %v139
    %1806 = vmatprep.subr.mxu0 0.0
    %1807 = vmatpush1.msra.mxu0 0.0
    %1808 = vmatprep.subr.mxu0 0.0
    %1809 = vmatpush1.msra.mxu0 0.0
    %1810 = vmatprep.subr.mxu0 0.0
    %1811 = vmatpush1.msra.mxu0 0.0
    %1812 = vmatprep.subr.mxu0 0.0
    %1813 = vmatpush1.msra.mxu0 0.0
    %1814 = vmatprep.subr.mxu0 0.0
    %1815 = vmatpush1.msra.mxu0 0.0
    %1816 = vmatprep.subr.mxu0 0.0
    %1817 = vmatpush1.msra.mxu0 0.0
    %1818 = vmatprep.subr.mxu0 0.0
    %1819 = vmatpush1.msra.mxu0 0.0
    %1820 = vmatprep.subr.mxu0 0.0
    %1821 = vmatpush1.msra.mxu0 0.0
    %1822 = vmatprep.subr.mxu0 0.0
    %1823 = vmatpush1.msra.mxu0 0.0
    %1824 = vmatprep.subr.mxu0 0.0
    %1825 = vmatpush1.msra.mxu0 0.0
    %1826 = vmatprep.subr.mxu0 0.0
    %1827 = vmatpush1.msra.mxu0 0.0
    %1828 = vmatprep.subr.mxu0 0.0
    %1829 = vmatpush1.msra.mxu0 0.0
    %1830 = vmatprep.subr.mxu0 0.0
    %1831 = vmatpush1.msra.mxu0 0.0
    %1832 = vmatprep.subr.mxu0 0.0
    %1833 = vmatpush1.msra.mxu0 0.0
    %1834 = vmatprep.subr.mxu0 0.0
    %1835 = vmatpush1.msra.mxu0 0.0
    %1836 = vmatprep.subr.mxu0 0.0
    %1837 = vmatpush1.msra.mxu0 0.0
    %1838 = vmatprep.subr.mxu0 0.0
    %1839 = vmatpush1.msra.mxu0 0.0
    %1840 = vmatprep.subr.mxu0 0.0
    %1841 = vmatpush1.msra.mxu0 0.0
    %1842 = vmatprep.subr.mxu0 0.0
    %1843 = vmatpush1.msra.mxu0 0.0
    %1844 = vmatprep.subr.mxu0 0.0
    %1845 = vmatpush1.msra.mxu0 0.0
    %1846 = vmatprep.subr.mxu0 0.0
    %1847 = vmatpush1.msra.mxu0 0.0
    %1848 = vmatprep.subr.mxu0 0.0
    %1849 = vmatpush1.msra.mxu0 0.0
    %1850 = vmatprep.subr.mxu0 0.0
    %1851 = vmatpush1.msra.mxu0 0.0
    %1852 = vmatprep.subr.mxu0 0.0
    %1853 = vmatpush1.msra.mxu0 0.0
    %1854 = vmatprep.subr.mxu0 0.0
    %1855 = vmatpush1.msra.mxu0 0.0
    %1856 = vmatprep.subr.mxu0 0.0
    %1857 = vmatpush1.msra.mxu0 0.0
    %1858 = vmatprep.subr.mxu0 0.0
    %1859 = vmatpush1.msra.mxu0 0.0
    %1860 = vmatprep.subr.mxu0 0.0
    %1861 = vmatpush1.msra.mxu0 0.0
    %1862 = vmatprep.mubr.f32.mxu0 0.0
    %1863 = vmatmul.mubr.f32.gmra.mrb[0].mxu0 %v1796
    %v1864 = vpop.f32.mrb[0].mxu0
    %v1865 = vadd.f32 %v353, %v1864
    %v1866 = vpop.f32.mrb[0].mxu0
    %1867 = vdwg.mxu0
    %s1868 = scalar_lea.vmem [#allocation2], 10
    %1869 = vst [vmem:[%s1868] sm:$0x3] %v1865
    %v1870 = vrot.slane %v1685, 2
    %1871 = vrot.lane.b32.xlu0 %v1870, 32
    %v1872 = vpop.permute.xlu0 %1871
    %v1873 = vsel %vm141, %v1872, 0
    %1875 = vmatprep.subr.mxu0 0.0
    %1876 = vmatpush1.msra.mxu0 %v123
    %1877 = vmatprep.subr.mxu0 0.0
    %1878 = vmatpush1.msra.mxu0 %v124
    %1879 = vmatprep.subr.mxu0 0.0
    %1880 = vmatpush1.msra.mxu0 %v125
    %1881 = vmatprep.subr.mxu0 0.0
    %1882 = vmatpush1.msra.mxu0 %v126
    %1883 = vmatprep.subr.mxu0 0.0
    %1884 = vmatpush1.msra.mxu0 0.0
    %1885 = vmatprep.subr.mxu0 0.0
    %1886 = vmatpush1.msra.mxu0 0.0
    %1887 = vmatprep.subr.mxu0 0.0
    %1888 = vmatpush1.msra.mxu0 0.0
    %1889 = vmatprep.subr.mxu0 0.0
    %1890 = vmatpush1.msra.mxu0 0.0
    %1891 = vmatprep.subr.mxu0 0.0
    %1892 = vmatpush1.msra.mxu0 0.0
    %1893 = vmatprep.subr.mxu0 0.0
    %1894 = vmatpush1.msra.mxu0 0.0
    %1895 = vmatprep.subr.mxu0 0.0
    %1896 = vmatpush1.msra.mxu0 0.0
    %1897 = vmatprep.subr.mxu0 0.0
    %1898 = vmatpush1.msra.mxu0 0.0
    %1899 = vmatprep.subr.mxu0 0.0
    %1900 = vmatpush1.msra.mxu0 0.0
    %1901 = vmatprep.subr.mxu0 0.0
    %1902 = vmatpush1.msra.mxu0 0.0
    %1903 = vmatprep.subr.mxu0 0.0
    %1904 = vmatpush1.msra.mxu0 0.0
    %1905 = vmatprep.subr.mxu0 0.0
    %1906 = vmatpush1.msra.mxu0 0.0
    %1907 = vmatprep.subr.mxu0 0.0
    %1908 = vmatpush1.msra.mxu0 0.0
    %1909 = vmatprep.subr.mxu0 0.0
    %1910 = vmatpush1.msra.mxu0 0.0
    %1911 = vmatprep.subr.mxu0 0.0
    %1912 = vmatpush1.msra.mxu0 0.0
    %1913 = vmatprep.subr.mxu0 0.0
    %1914 = vmatpush1.msra.mxu0 0.0
    %1915 = vmatprep.subr.mxu0 0.0
    %1916 = vmatpush1.msra.mxu0 0.0
    %1917 = vmatprep.subr.mxu0 0.0
    %1918 = vmatpush1.msra.mxu0 0.0
    %1919 = vmatprep.subr.mxu0 0.0
    %1920 = vmatpush1.msra.mxu0 0.0
    %1921 = vmatprep.subr.mxu0 0.0
    %1922 = vmatpush1.msra.mxu0 0.0
    %1923 = vmatprep.subr.mxu0 0.0
    %1924 = vmatpush1.msra.mxu0 0.0
    %1925 = vmatprep.subr.mxu0 0.0
    %1926 = vmatpush1.msra.mxu0 0.0
    %1927 = vmatprep.subr.mxu0 0.0
    %1928 = vmatpush1.msra.mxu0 0.0
    %1929 = vmatprep.subr.mxu0 0.0
    %1930 = vmatpush1.msra.mxu0 0.0
    %1931 = vmatprep.subr.mxu0 0.0
    %1932 = vmatpush1.msra.mxu0 0.0
    %1933 = vmatprep.subr.mxu0 0.0
    %1934 = vmatpush1.msra.mxu0 0.0
    %1935 = vmatprep.subr.mxu0 0.0
    %1936 = vmatpush1.msra.mxu0 0.0
    %1937 = vmatprep.subr.mxu0 0.0
    %1938 = vmatpush1.msra.mxu0 0.0
    %1939 = vmatprep.mubr.f32.mxu0 0.0
    %1940 = vmatmul.mubr.f32.gmra.mrb[0].mxu0 %v1873
    %v1941 = vpop.f32.mrb[0].mxu0
    %v1942 = vadd.f32 0.0, %v1941
    %v1943 = vpop.f32.mrb[0].mxu0
    %1944 = vdwg.mxu0
    %v1946 = vrot.slane %v1942, 4
    %v1948 = vadd.f32 %v120, %v1946
    %v1949 = vxor.u32 %v1948, 2147483648
    %v1950 = vmul.f32 %v1949, 1.442695
    %v1951 = vpow.pop %v1950
    %v1952 = vadd.f32 %v1951, 1.0
    %v1953 = vrcp.pop %v1952
    %v1954 = vmul.f32 1.0, %v1953
    %v1955 = vtanh.pop %v1948
    %v1957 = vrot.slane %v1679, 6
    %v1959 = vmul.f32 %v1954, %v1957
    %1961 = vrot.lane.b32.xlu0 %v1955, 64
    %v1962 = vpop.permute.xlu0 %1961
    %v1964 = vmul.f32 %v1954, %v1962
    %1966 = vrot.lane.b32.xlu0 %v1964, 32
    %v1967 = vpop.permute.xlu0 %1966
    %v1969 = vadd.f32 %v1959, %v1967
    %v1970 = vtanh.pop %v1969
    %1972 = vrot.lane.b32.xlu0 %v1970, 64
    %v1973 = vpop.permute.xlu0 %1972
    %v1975 = vmul.f32 %v1954, %v1973
    %1977 = vrot.lane.b32.xlu0 %v1975, 32
    %v1978 = vpop.permute.xlu0 %1977
    %v1980 = vrot.slane %v1792, 4
    %1981 = vrot.lane.b32.xlu0 %v1980, 64
    %v1982 = vpop.permute.xlu0 %1981
    %v1984 = vsel %vm141, %v1978, %v1982
    %v1986 = vrot.slane %v1984, 4
    %v1987 = vsel %vm251, %v1986, 0
    %1989 = vmatprep.subr.mxu0 0.0
    %1990 = vmatpush1.msra.mxu0 %v127
    %1991 = vmatprep.subr.mxu0 0.0
    %1992 = vmatpush1.msra.mxu0 %v128
    %1993 = vmatprep.subr.mxu0 0.0
    %1994 = vmatpush1.msra.mxu0 %v129
    %1995 = vmatprep.subr.mxu0 0.0
    %1996 = vmatpush1.msra.mxu0 %v130
    %1997 = vmatprep.subr.mxu0 0.0
    %1998 = vmatpush1.msra.mxu0 %v131
    %1999 = vmatprep.subr.mxu0 0.0
    %2000 = vmatpush1.msra.mxu0 %v132
    %2001 = vmatprep.subr.mxu0 0.0
    %2002 = vmatpush1.msra.mxu0 %v133
    %2003 = vmatprep.subr.mxu0 0.0
    %2004 = vmatpush1.msra.mxu0 %v134
    %2005 = vmatprep.subr.mxu0 0.0
    %2006 = vmatpush1.msra.mxu0 0.0
    %2007 = vmatprep.subr.mxu0 0.0
    %2008 = vmatpush1.msra.mxu0 0.0
    %2009 = vmatprep.subr.mxu0 0.0
    %2010 = vmatpush1.msra.mxu0 0.0
    %2011 = vmatprep.subr.mxu0 0.0
    %2012 = vmatpush1.msra.mxu0 0.0
    %2013 = vmatprep.subr.mxu0 0.0
    %2014 = vmatpush1.msra.mxu0 0.0
    %2015 = vmatprep.subr.mxu0 0.0
    %2016 = vmatpush1.msra.mxu0 0.0
    %2017 = vmatprep.subr.mxu0 0.0
    %2018 = vmatpush1.msra.mxu0 0.0
    %2019 = vmatprep.subr.mxu0 0.0
    %2020 = vmatpush1.msra.mxu0 0.0
    %2021 = vmatprep.subr.mxu0 0.0
    %2022 = vmatpush1.msra.mxu0 0.0
    %2023 = vmatprep.subr.mxu0 0.0
    %2024 = vmatpush1.msra.mxu0 0.0
    %2025 = vmatprep.subr.mxu0 0.0
    %2026 = vmatpush1.msra.mxu0 0.0
    %2027 = vmatprep.subr.mxu0 0.0
    %2028 = vmatpush1.msra.mxu0 0.0
    %2029 = vmatprep.subr.mxu0 0.0
    %2030 = vmatpush1.msra.mxu0 0.0
    %2031 = vmatprep.subr.mxu0 0.0
    %2032 = vmatpush1.msra.mxu0 0.0
    %2033 = vmatprep.subr.mxu0 0.0
    %2034 = vmatpush1.msra.mxu0 0.0
    %2035 = vmatprep.subr.mxu0 0.0
    %2036 = vmatpush1.msra.mxu0 0.0
    %2037 = vmatprep.subr.mxu0 0.0
    %2038 = vmatpush1.msra.mxu0 0.0
    %2039 = vmatprep.subr.mxu0 0.0
    %2040 = vmatpush1.msra.mxu0 0.0
    %2041 = vmatprep.subr.mxu0 0.0
    %2042 = vmatpush1.msra.mxu0 0.0
    %2043 = vmatprep.subr.mxu0 0.0
    %2044 = vmatpush1.msra.mxu0 0.0
    %2045 = vmatprep.subr.mxu0 0.0
    %2046 = vmatpush1.msra.mxu0 0.0
    %2047 = vmatprep.subr.mxu0 0.0
    %2048 = vmatpush1.msra.mxu0 0.0
    %2049 = vmatprep.subr.mxu0 0.0
    %2050 = vmatpush1.msra.mxu0 0.0
    %2051 = vmatprep.subr.mxu0 0.0
    %2052 = vmatpush1.msra.mxu0 0.0
    %2053 = vmatprep.mubr.f32.mxu0 0.0
    %2054 = vmatmul.mubr.f32.gmra.mrb[0].mxu0 %v1987
    %v2055 = vpop.f32.mrb[0].mxu0
    %v2056 = vadd.f32 %v249, %v2055
    %v2057 = vpop.f32.mrb[0].mxu0
    %2058 = vdwg.mxu0
    %v2059 = vxor.u32 %v2056, 2147483648
    %v2060 = vmul.f32 %v2059, 1.442695
    %v2061 = vpow.pop %v2060
    %v2062 = vadd.f32 %v2061, 1.0
    %v2063 = vrcp.pop %v2062
    %v2064 = vmul.f32 1.0, %v2063
    %v2065 = vtanh.pop %v2056
    %v2066 = vmul.f32 %v2064, %v1786
    %2068 = vrot.lane.b32.xlu0 %v2065, 64
    %v2069 = vpop.permute.xlu0 %2068
    %v2071 = vmul.f32 %v2064, %v2069
    %2073 = vrot.lane.b32.xlu0 %v2071, 32
    %v2074 = vpop.permute.xlu0 %2073
    %v2076 = vadd.f32 %v2066, %v2074
    %v2077 = vtanh.pop %v2076
    %2079 = vrot.lane.b32.xlu0 %v2077, 64
    %v2080 = vpop.permute.xlu0 %2079
    %v2082 = vmul.f32 %v2064, %v2080
    %2084 = vrot.lane.b32.xlu0 %v2082, 32
    %v2085 = vpop.permute.xlu0 %2084
    %v2086 = vsel %vm141, %v2085, 0
    %2088 = vmatprep.subr.mxu0 0.0
    %2089 = vmatpush1.msra.mxu0 %v136
    %2090 = vmatprep.subr.mxu0 0.0
    %2091 = vmatpush1.msra.mxu0 %v137
    %2092 = vmatprep.subr.mxu0 0.0
    %2093 = vmatpush1.msra.mxu0 %v138
    %2094 = vmatprep.subr.mxu0 0.0
    %2095 = vmatpush1.msra.mxu0 %v139
    %2096 = vmatprep.subr.mxu0 0.0
    %2097 = vmatpush1.msra.mxu0 0.0
    %2098 = vmatprep.subr.mxu0 0.0
    %2099 = vmatpush1.msra.mxu0 0.0
    %2100 = vmatprep.subr.mxu0 0.0
    %2101 = vmatpush1.msra.mxu0 0.0
    %2102 = vmatprep.subr.mxu0 0.0
    %2103 = vmatpush1.msra.mxu0 0.0
    %2104 = vmatprep.subr.mxu0 0.0
    %2105 = vmatpush1.msra.mxu0 0.0
    %2106 = vmatprep.subr.mxu0 0.0
    %2107 = vmatpush1.msra.mxu0 0.0
    %2108 = vmatprep.subr.mxu0 0.0
    %2109 = vmatpush1.msra.mxu0 0.0
    %2110 = vmatprep.subr.mxu0 0.0
    %2111 = vmatpush1.msra.mxu0 0.0
    %2112 = vmatprep.subr.mxu0 0.0
    %2113 = vmatpush1.msra.mxu0 0.0
    %2114 = vmatprep.subr.mxu0 0.0
    %2115 = vmatpush1.msra.mxu0 0.0
    %2116 = vmatprep.subr.mxu0 0.0
    %2117 = vmatpush1.msra.mxu0 0.0
    %2118 = vmatprep.subr.mxu0 0.0
    %2119 = vmatpush1.msra.mxu0 0.0
    %2120 = vmatprep.subr.mxu0 0.0
    %2121 = vmatpush1.msra.mxu0 0.0
    %2122 = vmatprep.subr.mxu0 0.0
    %2123 = vmatpush1.msra.mxu0 0.0
    %2124 = vmatprep.subr.mxu0 0.0
    %2125 = vmatpush1.msra.mxu0 0.0
    %2126 = vmatprep.subr.mxu0 0.0
    %2127 = vmatpush1.msra.mxu0 0.0
    %2128 = vmatprep.subr.mxu0 0.0
    %2129 = vmatpush1.msra.mxu0 0.0
    %2130 = vmatprep.subr.mxu0 0.0
    %2131 = vmatpush1.msra.mxu0 0.0
    %2132 = vmatprep.subr.mxu0 0.0
    %2133 = vmatpush1.msra.mxu0 0.0
    %2134 = vmatprep.subr.mxu0 0.0
    %2135 = vmatpush1.msra.mxu0 0.0
    %2136 = vmatprep.subr.mxu0 0.0
    %2137 = vmatpush1.msra.mxu0 0.0
    %2138 = vmatprep.subr.mxu0 0.0
    %2139 = vmatpush1.msra.mxu0 0.0
    %2140 = vmatprep.subr.mxu0 0.0
    %2141 = vmatpush1.msra.mxu0 0.0
    %2142 = vmatprep.subr.mxu0 0.0
    %2143 = vmatpush1.msra.mxu0 0.0
    %2144 = vmatprep.subr.mxu0 0.0
    %2145 = vmatpush1.msra.mxu0 0.0
    %2146 = vmatprep.subr.mxu0 0.0
    %2147 = vmatpush1.msra.mxu0 0.0
    %2148 = vmatprep.subr.mxu0 0.0
    %2149 = vmatpush1.msra.mxu0 0.0
    %2150 = vmatprep.subr.mxu0 0.0
    %2151 = vmatpush1.msra.mxu0 0.0
    %2152 = vmatprep.mubr.f32.mxu0 0.0
    %2153 = vmatmul.mubr.f32.gmra.mrb[0].mxu0 %v2086
    %v2154 = vpop.f32.mrb[0].mxu0
    %v2155 = vadd.f32 %v353, %v2154
    %v2156 = vpop.f32.mrb[0].mxu0
    %2157 = vdwg.mxu0
    %s2158 = scalar_lea.vmem [#allocation2], 12
    %2159 = vst [vmem:[%s2158] sm:$0x3] %v2155
    %v2160 = vrot.slane %v1975, 4
    %2161 = vrot.lane.b32.xlu0 %v2160, 32
    %v2162 = vpop.permute.xlu0 %2161
    %v2163 = vsel %vm141, %v2162, 0
    %2165 = vmatprep.subr.mxu0 0.0
    %2166 = vmatpush1.msra.mxu0 %v123
    %2167 = vmatprep.subr.mxu0 0.0
    %2168 = vmatpush1.msra.mxu0 %v124
    %2169 = vmatprep.subr.mxu0 0.0
    %2170 = vmatpush1.msra.mxu0 %v125
    %2171 = vmatprep.subr.mxu0 0.0
    %2172 = vmatpush1.msra.mxu0 %v126
    %2173 = vmatprep.subr.mxu0 0.0
    %2174 = vmatpush1.msra.mxu0 0.0
    %2175 = vmatprep.subr.mxu0 0.0
    %2176 = vmatpush1.msra.mxu0 0.0
    %2177 = vmatprep.subr.mxu0 0.0
    %2178 = vmatpush1.msra.mxu0 0.0
    %2179 = vmatprep.subr.mxu0 0.0
    %2180 = vmatpush1.msra.mxu0 0.0
    %2181 = vmatprep.subr.mxu0 0.0
    %2182 = vmatpush1.msra.mxu0 0.0
    %2183 = vmatprep.subr.mxu0 0.0
    %2184 = vmatpush1.msra.mxu0 0.0
    %2185 = vmatprep.subr.mxu0 0.0
    %2186 = vmatpush1.msra.mxu0 0.0
    %2187 = vmatprep.subr.mxu0 0.0
    %2188 = vmatpush1.msra.mxu0 0.0
    %2189 = vmatprep.subr.mxu0 0.0
    %2190 = vmatpush1.msra.mxu0 0.0
    %2191 = vmatprep.subr.mxu0 0.0
    %2192 = vmatpush1.msra.mxu0 0.0
    %2193 = vmatprep.subr.mxu0 0.0
    %2194 = vmatpush1.msra.mxu0 0.0
    %2195 = vmatprep.subr.mxu0 0.0
    %2196 = vmatpush1.msra.mxu0 0.0
    %2197 = vmatprep.subr.mxu0 0.0
    %2198 = vmatpush1.msra.mxu0 0.0
    %2199 = vmatprep.subr.mxu0 0.0
    %2200 = vmatpush1.msra.mxu0 0.0
    %2201 = vmatprep.subr.mxu0 0.0
    %2202 = vmatpush1.msra.mxu0 0.0
    %2203 = vmatprep.subr.mxu0 0.0
    %2204 = vmatpush1.msra.mxu0 0.0
    %2205 = vmatprep.subr.mxu0 0.0
    %2206 = vmatpush1.msra.mxu0 0.0
    %2207 = vmatprep.subr.mxu0 0.0
    %2208 = vmatpush1.msra.mxu0 0.0
    %2209 = vmatprep.subr.mxu0 0.0
    %2210 = vmatpush1.msra.mxu0 0.0
    %2211 = vmatprep.subr.mxu0 0.0
    %2212 = vmatpush1.msra.mxu0 0.0
    %2213 = vmatprep.subr.mxu0 0.0
    %2214 = vmatpush1.msra.mxu0 0.0
    %2215 = vmatprep.subr.mxu0 0.0
    %2216 = vmatpush1.msra.mxu0 0.0
    %2217 = vmatprep.subr.mxu0 0.0
    %2218 = vmatpush1.msra.mxu0 0.0
    %2219 = vmatprep.subr.mxu0 0.0
    %2220 = vmatpush1.msra.mxu0 0.0
    %2221 = vmatprep.subr.mxu0 0.0
    %2222 = vmatpush1.msra.mxu0 0.0
    %2223 = vmatprep.subr.mxu0 0.0
    %2224 = vmatpush1.msra.mxu0 0.0
    %2225 = vmatprep.subr.mxu0 0.0
    %2226 = vmatpush1.msra.mxu0 0.0
    %2227 = vmatprep.subr.mxu0 0.0
    %2228 = vmatpush1.msra.mxu0 0.0
    %2229 = vmatprep.mubr.f32.mxu0 0.0
    %2230 = vmatmul.mubr.f32.gmra.mrb[0].mxu0 %v2163
    %v2231 = vpop.f32.mrb[0].mxu0
    %v2232 = vadd.f32 0.0, %v2231
    %v2233 = vpop.f32.mrb[0].mxu0
    %2234 = vdwg.mxu0
    %v2236 = vrot.slane %v2232, 2
    %v2238 = vadd.f32 %v120, %v2236
    %v2239 = vxor.u32 %v2238, 2147483648
    %v2240 = vmul.f32 %v2239, 1.442695
    %v2241 = vpow.pop %v2240
    %v2242 = vadd.f32 %v2241, 1.0
    %v2243 = vrcp.pop %v2242
    %v2244 = vmul.f32 1.0, %v2243
    %v2245 = vtanh.pop %v2238
    %v2247 = vrot.slane %v1969, 6
    %v2249 = vmul.f32 %v2244, %v2247
    %2251 = vrot.lane.b32.xlu0 %v2245, 64
    %v2252 = vpop.permute.xlu0 %2251
    %v2254 = vmul.f32 %v2244, %v2252
    %2256 = vrot.lane.b32.xlu0 %v2254, 32
    %v2257 = vpop.permute.xlu0 %2256
    %v2259 = vadd.f32 %v2249, %v2257
    %v2260 = vtanh.pop %v2259
    %2262 = vrot.lane.b32.xlu0 %v2260, 64
    %v2263 = vpop.permute.xlu0 %2262
    %v2265 = vmul.f32 %v2244, %v2263
    %2267 = vrot.lane.b32.xlu0 %v2265, 32
    %v2268 = vpop.permute.xlu0 %2267
    %v2270 = vrot.slane %v2082, 2
    %2271 = vrot.lane.b32.xlu0 %v2270, 64
    %v2272 = vpop.permute.xlu0 %2271
    %v2274 = vsel %vm141, %v2268, %v2272
    %v2276 = vrot.slane %v2274, 6
    %v2277 = vsel %vm251, %v2276, 0
    %2279 = vmatprep.subr.mxu0 0.0
    %2280 = vmatpush1.msra.mxu0 %v127
    %2281 = vmatprep.subr.mxu0 0.0
    %2282 = vmatpush1.msra.mxu0 %v128
    %2283 = vmatprep.subr.mxu0 0.0
    %2284 = vmatpush1.msra.mxu0 %v129
    %2285 = vmatprep.subr.mxu0 0.0
    %2286 = vmatpush1.msra.mxu0 %v130
    %2287 = vmatprep.subr.mxu0 0.0
    %2288 = vmatpush1.msra.mxu0 %v131
    %2289 = vmatprep.subr.mxu0 0.0
    %2290 = vmatpush1.msra.mxu0 %v132
    %2291 = vmatprep.subr.mxu0 0.0
    %2292 = vmatpush1.msra.mxu0 %v133
    %2293 = vmatprep.subr.mxu0 0.0
    %2294 = vmatpush1.msra.mxu0 %v134
    %2295 = vmatprep.subr.mxu0 0.0
    %2296 = vmatpush1.msra.mxu0 0.0
    %2297 = vmatprep.subr.mxu0 0.0
    %2298 = vmatpush1.msra.mxu0 0.0
    %2299 = vmatprep.subr.mxu0 0.0
    %2300 = vmatpush1.msra.mxu0 0.0
    %2301 = vmatprep.subr.mxu0 0.0
    %2302 = vmatpush1.msra.mxu0 0.0
    %2303 = vmatprep.subr.mxu0 0.0
    %2304 = vmatpush1.msra.mxu0 0.0
    %2305 = vmatprep.subr.mxu0 0.0
    %2306 = vmatpush1.msra.mxu0 0.0
    %2307 = vmatprep.subr.mxu0 0.0
    %2308 = vmatpush1.msra.mxu0 0.0
    %2309 = vmatprep.subr.mxu0 0.0
    %2310 = vmatpush1.msra.mxu0 0.0
    %2311 = vmatprep.subr.mxu0 0.0
    %2312 = vmatpush1.msra.mxu0 0.0
    %2313 = vmatprep.subr.mxu0 0.0
    %2314 = vmatpush1.msra.mxu0 0.0
    %2315 = vmatprep.subr.mxu0 0.0
    %2316 = vmatpush1.msra.mxu0 0.0
    %2317 = vmatprep.subr.mxu0 0.0
    %2318 = vmatpush1.msra.mxu0 0.0
    %2319 = vmatprep.subr.mxu0 0.0
    %2320 = vmatpush1.msra.mxu0 0.0
    %2321 = vmatprep.subr.mxu0 0.0
    %2322 = vmatpush1.msra.mxu0 0.0
    %2323 = vmatprep.subr.mxu0 0.0
    %2324 = vmatpush1.msra.mxu0 0.0
    %2325 = vmatprep.subr.mxu0 0.0
    %2326 = vmatpush1.msra.mxu0 0.0
    %2327 = vmatprep.subr.mxu0 0.0
    %2328 = vmatpush1.msra.mxu0 0.0
    %2329 = vmatprep.subr.mxu0 0.0
    %2330 = vmatpush1.msra.mxu0 0.0
    %2331 = vmatprep.subr.mxu0 0.0
    %2332 = vmatpush1.msra.mxu0 0.0
    %2333 = vmatprep.subr.mxu0 0.0
    %2334 = vmatpush1.msra.mxu0 0.0
    %2335 = vmatprep.subr.mxu0 0.0
    %2336 = vmatpush1.msra.mxu0 0.0
    %2337 = vmatprep.subr.mxu0 0.0
    %2338 = vmatpush1.msra.mxu0 0.0
    %2339 = vmatprep.subr.mxu0 0.0
    %2340 = vmatpush1.msra.mxu0 0.0
    %2341 = vmatprep.subr.mxu0 0.0
    %2342 = vmatpush1.msra.mxu0 0.0
    %2343 = vmatprep.mubr.f32.mxu0 0.0
    %2344 = vmatmul.mubr.f32.gmra.mrb[0].mxu0 %v2277
    %v2345 = vpop.f32.mrb[0].mxu0
    %v2346 = vadd.f32 %v249, %v2345
    %v2347 = vpop.f32.mrb[0].mxu0
    %2348 = vdwg.mxu0
    %v2349 = vxor.u32 %v2346, 2147483648
    %v2350 = vmul.f32 %v2349, 1.442695
    %v2351 = vpow.pop %v2350
    %v2352 = vadd.f32 %v2351, 1.0
    %v2353 = vrcp.pop %v2352
    %v2354 = vmul.f32 1.0, %v2353
    %v2355 = vtanh.pop %v2346
    %v2356 = vmul.f32 %v2354, %v2076
    %2358 = vrot.lane.b32.xlu0 %v2355, 64
    %v2359 = vpop.permute.xlu0 %2358
    %v2361 = vmul.f32 %v2354, %v2359
    %2363 = vrot.lane.b32.xlu0 %v2361, 32
    %v2364 = vpop.permute.xlu0 %2363
    %v2366 = vadd.f32 %v2356, %v2364
    %v2367 = vtanh.pop %v2366
    %2369 = vrot.lane.b32.xlu0 %v2367, 64
    %v2370 = vpop.permute.xlu0 %2369
    %v2372 = vmul.f32 %v2354, %v2370
    %2374 = vrot.lane.b32.xlu0 %v2372, 32
    %v2375 = vpop.permute.xlu0 %2374
    %v2376 = vsel %vm141, %v2375, 0
    %2378 = vmatprep.subr.mxu0 0.0
    %2379 = vmatpush1.msra.mxu0 %v136
    %2380 = vmatprep.subr.mxu0 0.0
    %2381 = vmatpush1.msra.mxu0 %v137
    %2382 = vmatprep.subr.mxu0 0.0
    %2383 = vmatpush1.msra.mxu0 %v138
    %2384 = vmatprep.subr.mxu0 0.0
    %2385 = vmatpush1.msra.mxu0 %v139
    %2386 = vmatprep.subr.mxu0 0.0
    %2387 = vmatpush1.msra.mxu0 0.0
    %2388 = vmatprep.subr.mxu0 0.0
    %2389 = vmatpush1.msra.mxu0 0.0
    %2390 = vmatprep.subr.mxu0 0.0
    %2391 = vmatpush1.msra.mxu0 0.0
    %2392 = vmatprep.subr.mxu0 0.0
    %2393 = vmatpush1.msra.mxu0 0.0
    %2394 = vmatprep.subr.mxu0 0.0
    %2395 = vmatpush1.msra.mxu0 0.0
    %2396 = vmatprep.subr.mxu0 0.0
    %2397 = vmatpush1.msra.mxu0 0.0
    %2398 = vmatprep.subr.mxu0 0.0
    %2399 = vmatpush1.msra.mxu0 0.0
    %2400 = vmatprep.subr.mxu0 0.0
    %2401 = vmatpush1.msra.mxu0 0.0
    %2402 = vmatprep.subr.mxu0 0.0
    %2403 = vmatpush1.msra.mxu0 0.0
    %2404 = vmatprep.subr.mxu0 0.0
    %2405 = vmatpush1.msra.mxu0 0.0
    %2406 = vmatprep.subr.mxu0 0.0
    %2407 = vmatpush1.msra.mxu0 0.0
    %2408 = vmatprep.subr.mxu0 0.0
    %2409 = vmatpush1.msra.mxu0 0.0
    %2410 = vmatprep.subr.mxu0 0.0
    %2411 = vmatpush1.msra.mxu0 0.0
    %2412 = vmatprep.subr.mxu0 0.0
    %2413 = vmatpush1.msra.mxu0 0.0
    %2414 = vmatprep.subr.mxu0 0.0
    %2415 = vmatpush1.msra.mxu0 0.0
    %2416 = vmatprep.subr.mxu0 0.0
    %2417 = vmatpush1.msra.mxu0 0.0
    %2418 = vmatprep.subr.mxu0 0.0
    %2419 = vmatpush1.msra.mxu0 0.0
    %2420 = vmatprep.subr.mxu0 0.0
    %2421 = vmatpush1.msra.mxu0 0.0
    %2422 = vmatprep.subr.mxu0 0.0
    %2423 = vmatpush1.msra.mxu0 0.0
    %2424 = vmatprep.subr.mxu0 0.0
    %2425 = vmatpush1.msra.mxu0 0.0
    %2426 = vmatprep.subr.mxu0 0.0
    %2427 = vmatpush1.msra.mxu0 0.0
    %2428 = vmatprep.subr.mxu0 0.0
    %2429 = vmatpush1.msra.mxu0 0.0
    %2430 = vmatprep.subr.mxu0 0.0
    %2431 = vmatpush1.msra.mxu0 0.0
    %2432 = vmatprep.subr.mxu0 0.0
    %2433 = vmatpush1.msra.mxu0 0.0
    %2434 = vmatprep.subr.mxu0 0.0
    %2435 = vmatpush1.msra.mxu0 0.0
    %2436 = vmatprep.subr.mxu0 0.0
    %2437 = vmatpush1.msra.mxu0 0.0
    %2438 = vmatprep.subr.mxu0 0.0
    %2439 = vmatpush1.msra.mxu0 0.0
    %2440 = vmatprep.subr.mxu0 0.0
    %2441 = vmatpush1.msra.mxu0 0.0
    %2442 = vmatprep.mubr.f32.mxu0 0.0
    %2443 = vmatmul.mubr.f32.gmra.mrb[0].mxu0 %v2376
    %v2444 = vpop.f32.mrb[0].mxu0
    %v2445 = vadd.f32 %v353, %v2444
    %v2446 = vpop.f32.mrb[0].mxu0
    %2447 = vdwg.mxu0
    %s2448 = scalar_lea.vmem [#allocation2], 14
    %2449 = vst [vmem:[%s2448] sm:$0x3] %v2445
    %v2450 = vld [vmem:[#allocation2] sm:$0x3]
    %v2451 = vld [vmem:[#allocation2 + $0x2] sm:$0x3]
    %v2452 = vld [vmem:[#allocation2 + $0x4] sm:$0x3]
    %v2453 = vld [vmem:[#allocation2 + $0x6] sm:$0x3]
    %v2454 = vld [vmem:[#allocation2 + $0x8] sm:$0x3]
    %v2455 = vld [vmem:[#allocation2 + $0xa] sm:$0x3]
    %v2456 = vld [vmem:[#allocation2 + $0xc] sm:$0x3]
    %v2457 = vld [vmem:[#allocation2 + $0xe] sm:$0x3]
    %vm2458 = vcmask 1041408
    %v2459 = vsel %vm2458, %v2450, -inf
    %v2460 = vsel %vm2458, %v2451, -inf
    %v2461 = vsel %vm2458, %v2452, -inf
    %v2462 = vsel %vm2458, %v2453, -inf
    %v2463 = vsel %vm2458, %v2454, -inf
    %v2464 = vmax.f32 %v2459, %v2463
    %v2465 = vsel %vm2458, %v2455, -inf
    %v2466 = vmax.f32 %v2460, %v2465
    %v2467 = vsel %vm2458, %v2456, -inf
    %v2468 = vmax.f32 %v2461, %v2467
    %v2469 = vsel %vm2458, %v2457, -inf
    %v2470 = vmax.f32 %v2462, %v2469
    %v2471 = vmax.f32 %v2464, %v2466
    %v2472 = vmax.f32 %v2468, %v2470
    %v2473 = vmax.f32 %v2471, %v2472
    %v2474 = vsub.f32 %v2450, %v2473
    %v2475 = vsub.f32 %v2451, %v2473
    %v2476 = vsub.f32 %v2452, %v2473
    %v2477 = vsub.f32 %v2453, %v2473
    %v2478 = vsub.f32 %v2454, %v2473
    %v2479 = vsub.f32 %v2455, %v2473
    %v2480 = vsub.f32 %v2456, %v2473
    %v2481 = vsub.f32 %v2457, %v2473
    %v2482 = vmul.f32 %v2474, 1.442695
    %v2483 = vpow.pop %v2482
    %v2484 = vmul.f32 %v2475, 1.442695
    %v2485 = vpow.pop %v2484
    %v2486 = vmul.f32 %v2476, 1.442695
    %v2487 = vpow.pop %v2486
    %v2488 = vmul.f32 %v2477, 1.442695
    %v2489 = vpow.pop %v2488
    %v2490 = vmul.f32 %v2478, 1.442695
    %v2491 = vpow.pop %v2490
    %v2492 = vmul.f32 %v2479, 1.442695
    %v2493 = vpow.pop %v2492
    %v2494 = vmul.f32 %v2480, 1.442695
    %v2495 = vpow.pop %v2494
    %v2496 = vmul.f32 %v2481, 1.442695
    %v2497 = vpow.pop %v2496
    %v2498 = vsel %vm2458, %v2483, 0.0
    %v2499 = vsel %vm2458, %v2485, 0.0
    %v2500 = vadd.f32 %v2498, %v2499
    %v2501 = vsel %vm2458, %v2487, 0.0
    %v2502 = vadd.f32 %v2500, %v2501
    %v2503 = vsel %vm2458, %v2489, 0.0
    %v2504 = vadd.f32 %v2502, %v2503
    %v2505 = vsel %vm2458, %v2491, 0.0
    %v2506 = vadd.f32 %v2504, %v2505
    %v2507 = vsel %vm2458, %v2493, 0.0
    %v2508 = vadd.f32 %v2506, %v2507
    %v2509 = vsel %vm2458, %v2495, 0.0
    %v2510 = vadd.f32 %v2508, %v2509
    %v2511 = vsel %vm2458, %v2497, 0.0
    %v2512 = vadd.f32 %v2510, %v2511
    %v2513 = vlog2.pop %v2512
    %v2514 = vmul.f32 %v2513, 0.6931472
    %v2515 = vsub.f32 %v2474, %v2514
    %v2516 = vsub.f32 %v2475, %v2514
    %v2517 = vsub.f32 %v2476, %v2514
    %v2518 = vsub.f32 %v2477, %v2514
    %v2519 = vsub.f32 %v2478, %v2514
    %v2520 = vsub.f32 %v2479, %v2514
    %v2521 = vsub.f32 %v2480, %v2514
    %v2522 = vsub.f32 %v2481, %v2514
    %2523 = vst [vmem:[#allocation2] sm:$0x3] %v2515
    %2524 = vst [vmem:[#allocation2 + $0x2] sm:$0x3] %v2516
    %2525 = vst [vmem:[#allocation2 + $0x4] sm:$0x3] %v2517
    %2526 = vst [vmem:[#allocation2 + $0x6] sm:$0x3] %v2518
    %2527 = vst [vmem:[#allocation2 + $0x8] sm:$0x3] %v2519
    %2528 = vst [vmem:[#allocation2 + $0xa] sm:$0x3] %v2520
    %2529 = vst [vmem:[#allocation2 + $0xc] sm:$0x3] %v2521
    %2530 = vst [vmem:[#allocation2 + $0xe] sm:$0x3] %v2522
    // Predicated region
    $region34: #{ctc_forward.1} parent=1 // pred_check
      _
    $region35: #{ctc_forward.1} parent=1 // pred_check_branch
      %2532 = sbr.rel (0) target = $region37
    $region36: #{ctc_forward.1} parent=1 // pred_region
      %s2534 = ssub.s32 256, 256
      %2535 = vsyncadd [#allocation3], %s2534
      %s2536 = sshll.u32 [#allocation2], 4
      %s2537 = int_to_ptr.vmem [resolvable:$true] %s2536
      %2542 = dma.vmem_to_hbm [thread:$0]  %s2537, 256, %s8, [#allocation3], 32, 32, 2
    $region37: #{ctc_forward.1} parent=1 // pred_fallthru
      _
    // Predicated region
    $region38: #{ctc_forward.1} parent=1 // pred_check
      _
    $region39: #{ctc_forward.1} parent=1 // pred_check_branch
      %2544 = sbr.rel (0) target = $region41
    $region40: #{ctc_forward.1} parent=1 // pred_region
      %2545 = dma.done [#allocation3], 256
    $region41: #{ctc_forward.1} parent=1 // pred_fallthru
      _
    %2546 = vsyncpa [#allocation3], 1

</llo_original>
